<compile_context>
chip_gen: v7x
topology: tpu7x:2x2x1
jax: 0.10.0
libtpu: 0.0.40
codegen_flags: <defaults>
</compile_context>

<pallas_src>
import math

import jax
import jax.numpy as jnp
from jax.experimental import pallas as pl
from jax.experimental.pallas import tpu as pltpu  # noqa: F401  (used when scaling up)

# ------------------------- small synthetic sizes -----------------------------
B = 2
C_IN, H_IN, W_IN = 3, 16, 16        # input image (NCHW reference)
C_FEAT = 64                         # stands in for 2048 backbone channels
H_F = W_F = 8                       # feature map after stride-2 stem
S = H_F * W_F                       # spatial tokens
D_DEC = 64                          # stands in for decoder_embedding = 768
N_HEAD = 8                          # nn.MultiheadAttention default nhead
HD = D_DEC // N_HEAD
D_FF = 128                          # stands in for dim_feedforward = 2048
NUM_CLASSES = 40
L_Q = 40                            # embed_len_decoder = min(100, num_classes)
K_STEM = 32                         # 9*C_IN = 27 padded to 32 (sublane aligned)
LN_EPS = 1e-5


# ------------------------- PositionalEncoding2D (glue, literal semantics) ----
def positional_encoding_2d(init_channels, x, y, org_ch):
    channels = int(math.ceil(init_channels / 4) * 2)
    inv_freq = 1.0 / (10000.0 ** (jnp.arange(0, channels, 2, dtype=jnp.float32) / channels))
    pos_x = jnp.arange(x, dtype=jnp.float32)
    pos_y = jnp.arange(y, dtype=jnp.float32)
    sin_x = pos_x[:, None] * inv_freq[None, :]
    sin_y = pos_y[:, None] * inv_freq[None, :]

    def get_emb(s):
        return jnp.stack([jnp.sin(s), jnp.cos(s)], axis=-1).reshape(s.shape[0], -1)

    emb_x = get_emb(sin_x)[:, None, :]                     # (x, 1, channels)
    emb_y = get_emb(sin_y)[None, :, :]                     # (1, y, channels)
    emb = jnp.zeros((x, y, 2 * channels), dtype=jnp.float32)
    emb = emb.at[:, :, :channels].set(jnp.broadcast_to(emb_x, (x, y, channels)))
    emb = emb.at[:, :, channels:2 * channels].set(jnp.broadcast_to(emb_y, (x, y, channels)))
    return emb[:, :, :org_ch]                              # (x, y, org_ch)


# ------------------------- fused kernel: stem + Summer(PE) + MLDecoder -------
def _backbone_fused_kernel(patches_ref, pe_ref, wconv_ref, bconv_ref,
                           wemb_ref, bemb_ref, qemb_ref,
                           ln1g_ref, ln1b_ref,
                           wq_ref, wkv_ref, bq_ref, bkv_ref,
                           wo_ref, bo_ref,
                           ln2g_ref, ln2b_ref,
                           w1_ref, b1_ref, w2_ref, b2_ref,
                           ln3g_ref, ln3b_ref,
                           dupw_ref, dupb_ref,
                           out_ref):
    f32 = jnp.float32
    bf16 = jnp.bfloat16

    def layer_norm(v, g, b):
        mu = jnp.mean(v, axis=-1, keepdims=True)
        var = jnp.mean((v - mu) * (v - mu), axis=-1, keepdims=True)
        return (v - mu) * jax.lax.rsqrt(var + LN_EPS) * g + b

    # --- conv stem as matmul (rows = B*S = 128 -> full MXU row fill) + ReLU
    feat = jnp.maximum(
        jnp.dot(patches_ref[...], wconv_ref[...], preferred_element_type=f32)
        + bconv_ref[...], 0.0)                                       # (B*S, C_FEAT) f32

    # --- Summer(PositionalEncoding2D): add precomputed PE (broadcast over batch)
    pe = pe_ref[...]
    feat = feat + jnp.concatenate([pe] * B, axis=0)                  # (B*S, C_FEAT)

    # --- MLDecoder.embed_standart + ReLU (batched over all B*S tokens)
    mem = jnp.maximum(
        jnp.dot(feat.astype(bf16), wemb_ref[...], preferred_element_type=f32)
        + bemb_ref[...], 0.0)                                        # (B*S, D)
    mem_bf = mem.astype(bf16)

    # --- TransformerDecoderLayerOptimal, eval mode.
    # tgt = tgt + dropout1(tgt) == 2*tgt in eval mode (reference semantics, not a bug).
    tgt0 = layer_norm(qemb_ref[...] * 2.0, ln1g_ref[...], ln1b_ref[...])   # (L_Q, D)
    tgt0_bf = tgt0.astype(bf16)

    scale = 1.0 / math.sqrt(HD)

    # full-width Q projection (scale folded in once) and fused KV projection:
    # one 128-lane-wide matmul over the memory tokens.
    q_all = jnp.dot(tgt0_bf, wq_ref[...], preferred_element_type=f32) + bq_ref[...]  # (L_Q, D)
    q_bf = (q_all * scale).astype(bf16)
    kv = jnp.dot(mem_bf, wkv_ref[...], preferred_element_type=f32) + bkv_ref[...]    # (B*S, 2D)
    kv_bf = kv.astype(bf16)
    k_bf = kv_bf[:, :D_DEC]                                                          # (B*S, D)
    v_bf = kv_bf[:, D_DEC:]                                                          # (B*S, D)

    attn_batches = []
    for b in range(B):                                 # static, B = 2
        k_b = k_bf[b * S:(b + 1) * S, :]               # (S, D)
        v_b = v_bf[b * S:(b + 1) * S, :]
        head_outs = []
        for h in range(N_HEAD):                        # per-head only for score / PV
            qh = q_bf[:, h * HD:(h + 1) * HD]          # (L_Q, HD)
            kh = k_b[:, h * HD:(h + 1) * HD]           # (S, HD)
            vh = v_b[:, h * HD:(h + 1) * HD]           # (S, HD)
            s = jax.lax.dot_general(qh, kh, (((1,), (1,)), ((), ())),
                                    preferred_element_type=f32)            # (L_Q, S)
            s = s - jnp.max(s, axis=-1, keepdims=True)
            p = jnp.exp(s)
            p = p * pl.reciprocal(jnp.sum(p, axis=-1, keepdims=True), approx=True)
            head_outs.append(
                jnp.dot(p.astype(bf16), vh, preferred_element_type=f32))   # (L_Q, HD)
        attn_batches.append(jnp.concatenate(head_outs, axis=-1))           # (L_Q, D)
    attn_cat = jnp.concatenate(attn_batches, axis=0)                        # (B*L_Q, D)

    # single full-width out-projection (K = D = 64)
    attn_out = jnp.dot(attn_cat.astype(bf16), wo_ref[...],
                       preferred_element_type=f32) + bo_ref[...]            # (B*L_Q, D)

    tgt = jnp.concatenate([tgt0] * B, axis=0) + attn_out
    tgt = layer_norm(tgt, ln2g_ref[...], ln2b_ref[...])

    ff = jnp.maximum(
        jnp.dot(tgt.astype(bf16), w1_ref[...], preferred_element_type=f32)
        + b1_ref[...], 0.0)                                                 # (B*L_Q, D_FF)
    ff = jnp.dot(ff.astype(bf16), w2_ref[...], preferred_element_type=f32) + b2_ref[...]
    tgt = layer_norm(tgt + ff, ln3g_ref[...], ln3b_ref[...])                # (B*L_Q, D)

    # group fully-connected (duplicate_factor == 1): elementwise mul + cross-lane
    # reduce (XLU slot); output stored lane-dense as (B, L_Q).
    dupw = dupw_ref[...]                                                    # (L_Q, D)
    dupb = dupb_ref[0]                                                      # (L_Q,)
    for b in range(B):
        t_b = tgt[b * L_Q:(b + 1) * L_Q, :]
        out_ref[b, :] = jnp.sum(t_b * dupw, axis=-1) + dupb                 # (L_Q,)


# ------------------------- wrapper ------------------------------------------
@jax.jit
def backbone_forward(x_nchw, w_conv, b_conv, dec_params):
    # TODO(synk): the real timm backbone (resnet50/convnext/...) cannot be
    # reproduced in-script; a single 3x3 stride-2 conv + ReLU stands in for
    # self.model.  im2col is done here as cheap layout prep feeding the single
    # fused Pallas kernel.
    x_nhwc = jnp.transpose(x_nchw, (0, 2, 3, 1))
    xp = jnp.pad(x_nhwc, ((0, 0), (1, 1), (1, 1), (0, 0)))
    cols = []
    for dy in range(3):
        for dx in range(3):
            cols.append(xp[:, dy:dy + 2 * H_F:2, dx:dx + 2 * W_F:2, :])
    patches = jnp.concatenate(cols, axis=-1).reshape(B * S, 9 * C_IN)
    patches = jnp.pad(patches, ((0, 0), (0, K_STEM - 9 * C_IN))).astype(jnp.bfloat16)

    # Literal reference semantics: PositionalEncoding2D applied to the NCHW
    # feature map (x=C, y=H, ch=W), trimmed to W channels; flattened NHWC view.
    pe_chw = positional_encoding_2d(C_FEAT, C_FEAT, H_F, W_F)               # (C, H, W)
    pe_flat = jnp.transpose(pe_chw, (1, 2, 0)).reshape(S, C_FEAT)

    logits = pl.pallas_call(
        _backbone_fused_kernel,
        out_shape=jax.ShapeDtypeStruct((B, NUM_CLASSES), jnp.float32),
        # no grid / BlockSpecs: whole working set (<300 KB) is VMEM-resident;
        # a single launch, no serial grid loop, no HBM round trip.
    )(patches, pe_flat, w_conv, b_conv, *dec_params)
    return logits                                                            # (B, 40)


# ------------------------- parameter init (deterministic, synthetic) ---------
def init_params():
    keys = jax.random.split(jax.random.PRNGKey(42), 20)
    n = lambda k, shp, s=0.05: (s * jax.random.normal(k, shp)).astype(jnp.float32)
    nb = lambda k, shp, s=0.05: (s * jax.random.normal(k, shp)).astype(jnp.bfloat16)
    ones = lambda shp: jnp.ones(shp, jnp.float32)
    zeros = lambda shp: jnp.zeros(shp, jnp.float32)

    # conv stem weight, K padded 27 -> 32 with zero rows (no effect on result)
    w_conv = jnp.pad(n(keys[0], (9 * C_IN, C_FEAT)),
                     ((0, K_STEM - 9 * C_IN), (0, 0))).astype(jnp.bfloat16)
    b_conv = n(keys[1], (1, C_FEAT))

    # fused K|V projection weight / bias (heads concatenated along lanes)
    w_kv = jnp.concatenate([nb(keys[6], (D_DEC, D_DEC)),
                            nb(keys[7], (D_DEC, D_DEC))], axis=1)           # (D, 2D)
    b_kv = jnp.concatenate([n(keys[9], (1, D_DEC)),
                            n(keys[10], (1, D_DEC))], axis=1)               # (1, 2D)

    dec_params = (
        nb(keys[2], (C_FEAT, D_DEC)), n(keys[3], (1, D_DEC)),      # embed_standart
        n(keys[4], (L_Q, D_DEC), 0.5),                             # query_embed
        ones((1, D_DEC)), zeros((1, D_DEC)),                       # LN1 gamma/beta
        nb(keys[5], (D_DEC, D_DEC)),                               # Wq (fused heads)
        w_kv,                                                      # Wk|Wv fused
        n(keys[8], (1, D_DEC)),                                    # bq
        b_kv,                                                      # bk|bv fused
        nb(keys[11], (D_DEC, D_DEC)), n(keys[12], (1, D_DEC)),     # out-proj
        ones((1, D_DEC)), zeros((1, D_DEC)),                       # LN2
        nb(keys[13], (D_DEC, D_FF)), n(keys[14], (1, D_FF)),       # linear1
        nb(keys[15], (D_FF, D_DEC)), n(keys[16], (1, D_DEC)),      # linear2
        ones((1, D_DEC)), zeros((1, D_DEC)),                       # LN3
        n(keys[17], (L_Q, D_DEC)),                                 # duplicate_pooling
        zeros((1, L_Q)),                                           # duplicate_pooling_bias
    )
    return w_conv, b_conv, dec_params


if __name__ == "__main__":
    key = jax.random.PRNGKey(0)
    x = jax.random.normal(key, (B, C_IN, H_IN, W_IN), dtype=jnp.float32)  # NCHW like PyTorch
    w_conv, b_conv, dec_params = init_params()

    logits = backbone_forward(x, w_conv, b_conv, dec_params)
    logits = jax.block_until_ready(logits)
    assert logits.shape == (B, NUM_CLASSES), logits.shape
    assert bool(jnp.all(jnp.isfinite(logits)))
    print("KERNEL_OK")
</pallas_src>

<mosaic_0001>
module attributes {stable_mosaic.version = 11 : i64} {
  func.func @_backbone_fused_kernel(%arg0: memref<128x32xbf16, #tpu.memory_space<vmem>>, %arg1: memref<64x64xf32, #tpu.memory_space<vmem>>, %arg2: memref<32x64xbf16, #tpu.memory_space<vmem>>, %arg3: memref<1x64xf32, #tpu.memory_space<vmem>>, %arg4: memref<64x64xbf16, #tpu.memory_space<vmem>>, %arg5: memref<1x64xf32, #tpu.memory_space<vmem>>, %arg6: memref<40x64xf32, #tpu.memory_space<vmem>>, %arg7: memref<1x64xf32, #tpu.memory_space<vmem>>, %arg8: memref<1x64xf32, #tpu.memory_space<vmem>>, %arg9: memref<64x64xbf16, #tpu.memory_space<vmem>>, %arg10: memref<64x128xbf16, #tpu.memory_space<vmem>>, %arg11: memref<1x64xf32, #tpu.memory_space<vmem>>, %arg12: memref<1x128xf32, #tpu.memory_space<vmem>>, %arg13: memref<64x64xbf16, #tpu.memory_space<vmem>>, %arg14: memref<1x64xf32, #tpu.memory_space<vmem>>, %arg15: memref<1x64xf32, #tpu.memory_space<vmem>>, %arg16: memref<1x64xf32, #tpu.memory_space<vmem>>, %arg17: memref<64x128xbf16, #tpu.memory_space<vmem>>, %arg18: memref<1x128xf32, #tpu.memory_space<vmem>>, %arg19: memref<128x64xbf16, #tpu.memory_space<vmem>>, %arg20: memref<1x64xf32, #tpu.memory_space<vmem>>, %arg21: memref<1x64xf32, #tpu.memory_space<vmem>>, %arg22: memref<1x64xf32, #tpu.memory_space<vmem>>, %arg23: memref<40x64xf32, #tpu.memory_space<vmem>>, %arg24: memref<1x40xf32, #tpu.memory_space<vmem>>, %arg25: memref<2x40xf32, #tpu.memory_space<vmem>>) attributes {dimension_semantics = [], scalar_prefetch = 0 : i64, scratch_operands = 0 : i64, tpu.core_type = #tpu.core_type<tc>} {
    %c0 = arith.constant 0 : index
    %c0_0 = arith.constant 0 : index
    %0 = vector.load %arg0[%c0, %c0_0] : memref<128x32xbf16, #tpu.memory_space<vmem>>, vector<128x32xbf16>
    %c0_1 = arith.constant 0 : index
    %c0_2 = arith.constant 0 : index
    %1 = vector.load %arg2[%c0_1, %c0_2] : memref<32x64xbf16, #tpu.memory_space<vmem>>, vector<32x64xbf16>
    %cst = arith.constant dense<0.000000e+00> : vector<128x64xf32>
    %2 = tpu.matmul %0, %1, %cst {dimension_numbers = #tpu.dot_dimension_numbers<[1], [0], [0], [1], [0, 0, 1, 1], [], []>} : vector<128x32xbf16>, vector<32x64xbf16>, vector<128x64xf32> -> vector<128x64xf32>
    %c0_3 = arith.constant 0 : index
    %c0_4 = arith.constant 0 : index
    %3 = vector.load %arg3[%c0_3, %c0_4] : memref<1x64xf32, #tpu.memory_space<vmem>>, vector<1x64xf32>
    %4 = vector.broadcast %3 : vector<1x64xf32> to vector<128x64xf32>
    %5 = arith.addf %2, %4 : vector<128x64xf32>
    %cst_5 = arith.constant 0.000000e+00 : f32
    %6 = vector.broadcast %cst_5 : f32 to vector<128x64xf32>
    %7 = arith.maximumf %5, %6 : vector<128x64xf32>
    %c0_6 = arith.constant 0 : index
    %c0_7 = arith.constant 0 : index
    %8 = vector.load %arg1[%c0_6, %c0_7] : memref<64x64xf32, #tpu.memory_space<vmem>>, vector<64x64xf32>
    %9 = tpu.concatenate %8, %8 in 0 : vector<64x64xf32>, vector<64x64xf32> -> vector<128x64xf32>
    %10 = arith.addf %7, %9 : vector<128x64xf32>
    %11 = arith.truncf %10 : vector<128x64xf32> to vector<128x64xbf16>
    %c0_8 = arith.constant 0 : index
    %c0_9 = arith.constant 0 : index
    %12 = vector.load %arg4[%c0_8, %c0_9] : memref<64x64xbf16, #tpu.memory_space<vmem>>, vector<64x64xbf16>
    %cst_10 = arith.constant dense<0.000000e+00> : vector<128x64xf32>
    %13 = tpu.matmul %11, %12, %cst_10 {dimension_numbers = #tpu.dot_dimension_numbers<[1], [0], [0], [1], [0, 0, 1, 1], [], []>} : vector<128x64xbf16>, vector<64x64xbf16>, vector<128x64xf32> -> vector<128x64xf32>
    %c0_11 = arith.constant 0 : index
    %c0_12 = arith.constant 0 : index
    %14 = vector.load %arg5[%c0_11, %c0_12] : memref<1x64xf32, #tpu.memory_space<vmem>>, vector<1x64xf32>
    %15 = vector.broadcast %14 : vector<1x64xf32> to vector<128x64xf32>
    %16 = arith.addf %13, %15 : vector<128x64xf32>
    %cst_13 = arith.constant 0.000000e+00 : f32
    %17 = vector.broadcast %cst_13 : f32 to vector<128x64xf32>
    %18 = arith.maximumf %16, %17 : vector<128x64xf32>
    %19 = arith.truncf %18 : vector<128x64xf32> to vector<128x64xbf16>
    %c0_14 = arith.constant 0 : index
    %c0_15 = arith.constant 0 : index
    %20 = vector.load %arg6[%c0_14, %c0_15] : memref<40x64xf32, #tpu.memory_space<vmem>>, vector<40x64xf32>
    %cst_16 = arith.constant 2.000000e+00 : f32
    %21 = vector.broadcast %cst_16 : f32 to vector<40x64xf32>
    %22 = arith.mulf %20, %21 : vector<40x64xf32>
    %c0_17 = arith.constant 0 : index
    %c0_18 = arith.constant 0 : index
    %23 = vector.load %arg7[%c0_17, %c0_18] : memref<1x64xf32, #tpu.memory_space<vmem>>, vector<1x64xf32>
    %c0_19 = arith.constant 0 : index
    %c0_20 = arith.constant 0 : index
    %24 = vector.load %arg8[%c0_19, %c0_20] : memref<1x64xf32, #tpu.memory_space<vmem>>, vector<1x64xf32>
    %cst_21 = arith.constant dense<0.000000e+00> : vector<40xf32>
    %25 = vector.multi_reduction <add>, %22, %cst_21 [1] : vector<40x64xf32> to vector<40xf32>
    %26 = vector.shape_cast %25 : vector<40xf32> to vector<40x1xf32>
    %cst_22 = arith.constant 6.400000e+01 : f32
    %27 = vector.broadcast %cst_22 : f32 to vector<40x1xf32>
    %28 = arith.divf %26, %27 : vector<40x1xf32>
    %29 = vector.broadcast %28 : vector<40x1xf32> to vector<40x64xf32>
    %30 = arith.subf %22, %29 : vector<40x64xf32>
    %31 = vector.broadcast %28 : vector<40x1xf32> to vector<40x64xf32>
    %32 = arith.subf %22, %31 : vector<40x64xf32>
    %33 = arith.mulf %30, %32 : vector<40x64xf32>
    %cst_23 = arith.constant dense<0.000000e+00> : vector<40xf32>
    %34 = vector.multi_reduction <add>, %33, %cst_23 [1] : vector<40x64xf32> to vector<40xf32>
    %35 = vector.shape_cast %34 : vector<40xf32> to vector<40x1xf32>
    %cst_24 = arith.constant 6.400000e+01 : f32
    %36 = vector.broadcast %cst_24 : f32 to vector<40x1xf32>
    %37 = arith.divf %35, %36 : vector<40x1xf32>
    %38 = vector.broadcast %28 : vector<40x1xf32> to vector<40x64xf32>
    %39 = arith.subf %22, %38 : vector<40x64xf32>
    %cst_25 = arith.constant 9.99999974E-6 : f32
    %40 = vector.broadcast %cst_25 : f32 to vector<40x1xf32>
    %41 = arith.addf %37, %40 : vector<40x1xf32>
    %42 = math.rsqrt %41 : vector<40x1xf32>
    %43 = vector.broadcast %42 : vector<40x1xf32> to vector<40x64xf32>
    %44 = arith.mulf %39, %43 : vector<40x64xf32>
    %45 = vector.broadcast %23 : vector<1x64xf32> to vector<40x64xf32>
    %46 = arith.mulf %44, %45 : vector<40x64xf32>
    %47 = vector.broadcast %24 : vector<1x64xf32> to vector<40x64xf32>
    %48 = arith.addf %46, %47 : vector<40x64xf32>
    %49 = arith.truncf %48 : vector<40x64xf32> to vector<40x64xbf16>
    %c0_26 = arith.constant 0 : index
    %c0_27 = arith.constant 0 : index
    %50 = vector.load %arg9[%c0_26, %c0_27] : memref<64x64xbf16, #tpu.memory_space<vmem>>, vector<64x64xbf16>
    %cst_28 = arith.constant dense<0.000000e+00> : vector<40x64xf32>
    %51 = tpu.matmul %49, %50, %cst_28 {dimension_numbers = #tpu.dot_dimension_numbers<[1], [0], [0], [1], [0, 0, 1, 1], [], []>} : vector<40x64xbf16>, vector<64x64xbf16>, vector<40x64xf32> -> vector<40x64xf32>
    %c0_29 = arith.constant 0 : index
    %c0_30 = arith.constant 0 : index
    %52 = vector.load %arg11[%c0_29, %c0_30] : memref<1x64xf32, #tpu.memory_space<vmem>>, vector<1x64xf32>
    %53 = vector.broadcast %52 : vector<1x64xf32> to vector<40x64xf32>
    %54 = arith.addf %51, %53 : vector<40x64xf32>
    %cst_31 = arith.constant 0.353553385 : f32
    %55 = vector.broadcast %cst_31 : f32 to vector<40x64xf32>
    %56 = arith.mulf %54, %55 : vector<40x64xf32>
    %57 = arith.truncf %56 : vector<40x64xf32> to vector<40x64xbf16>
    %c0_32 = arith.constant 0 : index
    %c0_33 = arith.constant 0 : index
    %58 = vector.load %arg10[%c0_32, %c0_33] : memref<64x128xbf16, #tpu.memory_space<vmem>>, vector<64x128xbf16>
    %cst_34 = arith.constant dense<0.000000e+00> : vector<128x128xf32>
    %59 = tpu.matmul %19, %58, %cst_34 {dimension_numbers = #tpu.dot_dimension_numbers<[1], [0], [0], [1], [0, 0, 1, 1], [], []>} : vector<128x64xbf16>, vector<64x128xbf16>, vector<128x128xf32> -> vector<128x128xf32>
    %c0_35 = arith.constant 0 : index
    %c0_36 = arith.constant 0 : index
    %60 = vector.load %arg12[%c0_35, %c0_36] : memref<1x128xf32, #tpu.memory_space<vmem>>, vector<1x128xf32>
    %61 = vector.broadcast %60 : vector<1x128xf32> to vector<128x128xf32>
    %62 = arith.addf %59, %61 : vector<128x128xf32>
    %63 = arith.truncf %62 : vector<128x128xf32> to vector<128x128xbf16>
    %64 = vector.extract_strided_slice %63 {offsets = [0, 0], sizes = [128, 64], strides = [1, 1]} : vector<128x128xbf16> to vector<128x64xbf16>
    %65 = vector.extract_strided_slice %63 {offsets = [0, 64], sizes = [128, 64], strides = [1, 1]} : vector<128x128xbf16> to vector<128x64xbf16>
    %66 = vector.extract_strided_slice %64 {offsets = [0, 0], sizes = [64, 64], strides = [1, 1]} : vector<128x64xbf16> to vector<64x64xbf16>
    %67 = vector.extract_strided_slice %65 {offsets = [0, 0], sizes = [64, 64], strides = [1, 1]} : vector<128x64xbf16> to vector<64x64xbf16>
    %68 = vector.extract_strided_slice %57 {offsets = [0, 0], sizes = [40, 8], strides = [1, 1]} : vector<40x64xbf16> to vector<40x8xbf16>
    %69 = vector.extract_strided_slice %66 {offsets = [0, 0], sizes = [64, 8], strides = [1, 1]} : vector<64x64xbf16> to vector<64x8xbf16>
    %70 = vector.extract_strided_slice %67 {offsets = [0, 0], sizes = [64, 8], strides = [1, 1]} : vector<64x64xbf16> to vector<64x8xbf16>
    %cst_37 = arith.constant dense<0.000000e+00> : vector<40x64xf32>
    %71 = tpu.matmul %68, %69, %cst_37 {dimension_numbers = #tpu.dot_dimension_numbers<[1], [1], [0], [0], [0, 0, 1, 0], [], []>} : vector<40x8xbf16>, vector<64x8xbf16>, vector<40x64xf32> -> vector<40x64xf32>
    %cst_38 = arith.constant dense<0xFF800000> : vector<40xf32>
    %72 = vector.multi_reduction <maximumf>, %71, %cst_38 [1] : vector<40x64xf32> to vector<40xf32>
    %73 = vector.shape_cast %72 : vector<40xf32> to vector<40x1xf32>
    %74 = vector.broadcast %73 : vector<40x1xf32> to vector<40x64xf32>
    %75 = arith.subf %71, %74 : vector<40x64xf32>
    %76 = math.exp %75 : vector<40x64xf32>
    %cst_39 = arith.constant dense<0.000000e+00> : vector<40xf32>
    %77 = vector.multi_reduction <add>, %76, %cst_39 [1] : vector<40x64xf32> to vector<40xf32>
    %78 = vector.shape_cast %77 : vector<40xf32> to vector<40x1xf32>
    %79 = tpu.reciprocal %78 {approx = true} : vector<40x1xf32> -> vector<40x1xf32>
    %80 = vector.broadcast %79 : vector<40x1xf32> to vector<40x64xf32>
    %81 = arith.mulf %76, %80 : vector<40x64xf32>
    %82 = arith.truncf %81 : vector<40x64xf32> to vector<40x64xbf16>
    %cst_40 = arith.constant dense<0.000000e+00> : vector<40x8xf32>
    %83 = tpu.matmul %82, %70, %cst_40 {dimension_numbers = #tpu.dot_dimension_numbers<[1], [0], [0], [1], [0, 0, 1, 1], [], []>} : vector<40x64xbf16>, vector<64x8xbf16>, vector<40x8xf32> -> vector<40x8xf32>
    %84 = vector.extract_strided_slice %57 {offsets = [0, 8], sizes = [40, 8], strides = [1, 1]} : vector<40x64xbf16> to vector<40x8xbf16>
    %85 = vector.extract_strided_slice %66 {offsets = [0, 8], sizes = [64, 8], strides = [1, 1]} : vector<64x64xbf16> to vector<64x8xbf16>
    %86 = vector.extract_strided_slice %67 {offsets = [0, 8], sizes = [64, 8], strides = [1, 1]} : vector<64x64xbf16> to vector<64x8xbf16>
    %cst_41 = arith.constant dense<0.000000e+00> : vector<40x64xf32>
    %87 = tpu.matmul %84, %85, %cst_41 {dimension_numbers = #tpu.dot_dimension_numbers<[1], [1], [0], [0], [0, 0, 1, 0], [], []>} : vector<40x8xbf16>, vector<64x8xbf16>, vector<40x64xf32> -> vector<40x64xf32>
    %cst_42 = arith.constant dense<0xFF800000> : vector<40xf32>
    %88 = vector.multi_reduction <maximumf>, %87, %cst_42 [1] : vector<40x64xf32> to vector<40xf32>
    %89 = vector.shape_cast %88 : vector<40xf32> to vector<40x1xf32>
    %90 = vector.broadcast %89 : vector<40x1xf32> to vector<40x64xf32>
    %91 = arith.subf %87, %90 : vector<40x64xf32>
    %92 = math.exp %91 : vector<40x64xf32>
    %cst_43 = arith.constant dense<0.000000e+00> : vector<40xf32>
    %93 = vector.multi_reduction <add>, %92, %cst_43 [1] : vector<40x64xf32> to vector<40xf32>
    %94 = vector.shape_cast %93 : vector<40xf32> to vector<40x1xf32>
    %95 = tpu.reciprocal %94 {approx = true} : vector<40x1xf32> -> vector<40x1xf32>
    %96 = vector.broadcast %95 : vector<40x1xf32> to vector<40x64xf32>
    %97 = arith.mulf %92, %96 : vector<40x64xf32>
    %98 = arith.truncf %97 : vector<40x64xf32> to vector<40x64xbf16>
    %cst_44 = arith.constant dense<0.000000e+00> : vector<40x8xf32>
    %99 = tpu.matmul %98, %86, %cst_44 {dimension_numbers = #tpu.dot_dimension_numbers<[1], [0], [0], [1], [0, 0, 1, 1], [], []>} : vector<40x64xbf16>, vector<64x8xbf16>, vector<40x8xf32> -> vector<40x8xf32>
    %100 = vector.extract_strided_slice %57 {offsets = [0, 16], sizes = [40, 8], strides = [1, 1]} : vector<40x64xbf16> to vector<40x8xbf16>
    %101 = vector.extract_strided_slice %66 {offsets = [0, 16], sizes = [64, 8], strides = [1, 1]} : vector<64x64xbf16> to vector<64x8xbf16>
    %102 = vector.extract_strided_slice %67 {offsets = [0, 16], sizes = [64, 8], strides = [1, 1]} : vector<64x64xbf16> to vector<64x8xbf16>
    %cst_45 = arith.constant dense<0.000000e+00> : vector<40x64xf32>
    %103 = tpu.matmul %100, %101, %cst_45 {dimension_numbers = #tpu.dot_dimension_numbers<[1], [1], [0], [0], [0, 0, 1, 0], [], []>} : vector<40x8xbf16>, vector<64x8xbf16>, vector<40x64xf32> -> vector<40x64xf32>
    %cst_46 = arith.constant dense<0xFF800000> : vector<40xf32>
    %104 = vector.multi_reduction <maximumf>, %103, %cst_46 [1] : vector<40x64xf32> to vector<40xf32>
    %105 = vector.shape_cast %104 : vector<40xf32> to vector<40x1xf32>
    %106 = vector.broadcast %105 : vector<40x1xf32> to vector<40x64xf32>
    %107 = arith.subf %103, %106 : vector<40x64xf32>
    %108 = math.exp %107 : vector<40x64xf32>
    %cst_47 = arith.constant dense<0.000000e+00> : vector<40xf32>
    %109 = vector.multi_reduction <add>, %108, %cst_47 [1] : vector<40x64xf32> to vector<40xf32>
    %110 = vector.shape_cast %109 : vector<40xf32> to vector<40x1xf32>
    %111 = tpu.reciprocal %110 {approx = true} : vector<40x1xf32> -> vector<40x1xf32>
    %112 = vector.broadcast %111 : vector<40x1xf32> to vector<40x64xf32>
    %113 = arith.mulf %108, %112 : vector<40x64xf32>
    %114 = arith.truncf %113 : vector<40x64xf32> to vector<40x64xbf16>
    %cst_48 = arith.constant dense<0.000000e+00> : vector<40x8xf32>
    %115 = tpu.matmul %114, %102, %cst_48 {dimension_numbers = #tpu.dot_dimension_numbers<[1], [0], [0], [1], [0, 0, 1, 1], [], []>} : vector<40x64xbf16>, vector<64x8xbf16>, vector<40x8xf32> -> vector<40x8xf32>
    %116 = vector.extract_strided_slice %57 {offsets = [0, 24], sizes = [40, 8], strides = [1, 1]} : vector<40x64xbf16> to vector<40x8xbf16>
    %117 = vector.extract_strided_slice %66 {offsets = [0, 24], sizes = [64, 8], strides = [1, 1]} : vector<64x64xbf16> to vector<64x8xbf16>
    %118 = vector.extract_strided_slice %67 {offsets = [0, 24], sizes = [64, 8], strides = [1, 1]} : vector<64x64xbf16> to vector<64x8xbf16>
    %cst_49 = arith.constant dense<0.000000e+00> : vector<40x64xf32>
    %119 = tpu.matmul %116, %117, %cst_49 {dimension_numbers = #tpu.dot_dimension_numbers<[1], [1], [0], [0], [0, 0, 1, 0], [], []>} : vector<40x8xbf16>, vector<64x8xbf16>, vector<40x64xf32> -> vector<40x64xf32>
    %cst_50 = arith.constant dense<0xFF800000> : vector<40xf32>
    %120 = vector.multi_reduction <maximumf>, %119, %cst_50 [1] : vector<40x64xf32> to vector<40xf32>
    %121 = vector.shape_cast %120 : vector<40xf32> to vector<40x1xf32>
    %122 = vector.broadcast %121 : vector<40x1xf32> to vector<40x64xf32>
    %123 = arith.subf %119, %122 : vector<40x64xf32>
    %124 = math.exp %123 : vector<40x64xf32>
    %cst_51 = arith.constant dense<0.000000e+00> : vector<40xf32>
    %125 = vector.multi_reduction <add>, %124, %cst_51 [1] : vector<40x64xf32> to vector<40xf32>
    %126 = vector.shape_cast %125 : vector<40xf32> to vector<40x1xf32>
    %127 = tpu.reciprocal %126 {approx = true} : vector<40x1xf32> -> vector<40x1xf32>
    %128 = vector.broadcast %127 : vector<40x1xf32> to vector<40x64xf32>
    %129 = arith.mulf %124, %128 : vector<40x64xf32>
    %130 = arith.truncf %129 : vector<40x64xf32> to vector<40x64xbf16>
    %cst_52 = arith.constant dense<0.000000e+00> : vector<40x8xf32>
    %131 = tpu.matmul %130, %118, %cst_52 {dimension_numbers = #tpu.dot_dimension_numbers<[1], [0], [0], [1], [0, 0, 1, 1], [], []>} : vector<40x64xbf16>, vector<64x8xbf16>, vector<40x8xf32> -> vector<40x8xf32>
    %132 = vector.extract_strided_slice %57 {offsets = [0, 32], sizes = [40, 8], strides = [1, 1]} : vector<40x64xbf16> to vector<40x8xbf16>
    %133 = vector.extract_strided_slice %66 {offsets = [0, 32], sizes = [64, 8], strides = [1, 1]} : vector<64x64xbf16> to vector<64x8xbf16>
    %134 = vector.extract_strided_slice %67 {offsets = [0, 32], sizes = [64, 8], strides = [1, 1]} : vector<64x64xbf16> to vector<64x8xbf16>
    %cst_53 = arith.constant dense<0.000000e+00> : vector<40x64xf32>
    %135 = tpu.matmul %132, %133, %cst_53 {dimension_numbers = #tpu.dot_dimension_numbers<[1], [1], [0], [0], [0, 0, 1, 0], [], []>} : vector<40x8xbf16>, vector<64x8xbf16>, vector<40x64xf32> -> vector<40x64xf32>
    %cst_54 = arith.constant dense<0xFF800000> : vector<40xf32>
    %136 = vector.multi_reduction <maximumf>, %135, %cst_54 [1] : vector<40x64xf32> to vector<40xf32>
    %137 = vector.shape_cast %136 : vector<40xf32> to vector<40x1xf32>
    %138 = vector.broadcast %137 : vector<40x1xf32> to vector<40x64xf32>
    %139 = arith.subf %135, %138 : vector<40x64xf32>
    %140 = math.exp %139 : vector<40x64xf32>
    %cst_55 = arith.constant dense<0.000000e+00> : vector<40xf32>
    %141 = vector.multi_reduction <add>, %140, %cst_55 [1] : vector<40x64xf32> to vector<40xf32>
    %142 = vector.shape_cast %141 : vector<40xf32> to vector<40x1xf32>
    %143 = tpu.reciprocal %142 {approx = true} : vector<40x1xf32> -> vector<40x1xf32>
    %144 = vector.broadcast %143 : vector<40x1xf32> to vector<40x64xf32>
    %145 = arith.mulf %140, %144 : vector<40x64xf32>
    %146 = arith.truncf %145 : vector<40x64xf32> to vector<40x64xbf16>
    %cst_56 = arith.constant dense<0.000000e+00> : vector<40x8xf32>
    %147 = tpu.matmul %146, %134, %cst_56 {dimension_numbers = #tpu.dot_dimension_numbers<[1], [0], [0], [1], [0, 0, 1, 1], [], []>} : vector<40x64xbf16>, vector<64x8xbf16>, vector<40x8xf32> -> vector<40x8xf32>
    %148 = vector.extract_strided_slice %57 {offsets = [0, 40], sizes = [40, 8], strides = [1, 1]} : vector<40x64xbf16> to vector<40x8xbf16>
    %149 = vector.extract_strided_slice %66 {offsets = [0, 40], sizes = [64, 8], strides = [1, 1]} : vector<64x64xbf16> to vector<64x8xbf16>
    %150 = vector.extract_strided_slice %67 {offsets = [0, 40], sizes = [64, 8], strides = [1, 1]} : vector<64x64xbf16> to vector<64x8xbf16>
    %cst_57 = arith.constant dense<0.000000e+00> : vector<40x64xf32>
    %151 = tpu.matmul %148, %149, %cst_57 {dimension_numbers = #tpu.dot_dimension_numbers<[1], [1], [0], [0], [0, 0, 1, 0], [], []>} : vector<40x8xbf16>, vector<64x8xbf16>, vector<40x64xf32> -> vector<40x64xf32>
    %cst_58 = arith.constant dense<0xFF800000> : vector<40xf32>
    %152 = vector.multi_reduction <maximumf>, %151, %cst_58 [1] : vector<40x64xf32> to vector<40xf32>
    %153 = vector.shape_cast %152 : vector<40xf32> to vector<40x1xf32>
    %154 = vector.broadcast %153 : vector<40x1xf32> to vector<40x64xf32>
    %155 = arith.subf %151, %154 : vector<40x64xf32>
    %156 = math.exp %155 : vector<40x64xf32>
    %cst_59 = arith.constant dense<0.000000e+00> : vector<40xf32>
    %157 = vector.multi_reduction <add>, %156, %cst_59 [1] : vector<40x64xf32> to vector<40xf32>
    %158 = vector.shape_cast %157 : vector<40xf32> to vector<40x1xf32>
    %159 = tpu.reciprocal %158 {approx = true} : vector<40x1xf32> -> vector<40x1xf32>
    %160 = vector.broadcast %159 : vector<40x1xf32> to vector<40x64xf32>
    %161 = arith.mulf %156, %160 : vector<40x64xf32>
    %162 = arith.truncf %161 : vector<40x64xf32> to vector<40x64xbf16>
    %cst_60 = arith.constant dense<0.000000e+00> : vector<40x8xf32>
    %163 = tpu.matmul %162, %150, %cst_60 {dimension_numbers = #tpu.dot_dimension_numbers<[1], [0], [0], [1], [0, 0, 1, 1], [], []>} : vector<40x64xbf16>, vector<64x8xbf16>, vector<40x8xf32> -> vector<40x8xf32>
    %164 = vector.extract_strided_slice %57 {offsets = [0, 48], sizes = [40, 8], strides = [1, 1]} : vector<40x64xbf16> to vector<40x8xbf16>
    %165 = vector.extract_strided_slice %66 {offsets = [0, 48], sizes = [64, 8], strides = [1, 1]} : vector<64x64xbf16> to vector<64x8xbf16>
    %166 = vector.extract_strided_slice %67 {offsets = [0, 48], sizes = [64, 8], strides = [1, 1]} : vector<64x64xbf16> to vector<64x8xbf16>
    %cst_61 = arith.constant dense<0.000000e+00> : vector<40x64xf32>
    %167 = tpu.matmul %164, %165, %cst_61 {dimension_numbers = #tpu.dot_dimension_numbers<[1], [1], [0], [0], [0, 0, 1, 0], [], []>} : vector<40x8xbf16>, vector<64x8xbf16>, vector<40x64xf32> -> vector<40x64xf32>
    %cst_62 = arith.constant dense<0xFF800000> : vector<40xf32>
    %168 = vector.multi_reduction <maximumf>, %167, %cst_62 [1] : vector<40x64xf32> to vector<40xf32>
    %169 = vector.shape_cast %168 : vector<40xf32> to vector<40x1xf32>
    %170 = vector.broadcast %169 : vector<40x1xf32> to vector<40x64xf32>
    %171 = arith.subf %167, %170 : vector<40x64xf32>
    %172 = math.exp %171 : vector<40x64xf32>
    %cst_63 = arith.constant dense<0.000000e+00> : vector<40xf32>
    %173 = vector.multi_reduction <add>, %172, %cst_63 [1] : vector<40x64xf32> to vector<40xf32>
    %174 = vector.shape_cast %173 : vector<40xf32> to vector<40x1xf32>
    %175 = tpu.reciprocal %174 {approx = true} : vector<40x1xf32> -> vector<40x1xf32>
    %176 = vector.broadcast %175 : vector<40x1xf32> to vector<40x64xf32>
    %177 = arith.mulf %172, %176 : vector<40x64xf32>
    %178 = arith.truncf %177 : vector<40x64xf32> to vector<40x64xbf16>
    %cst_64 = arith.constant dense<0.000000e+00> : vector<40x8xf32>
    %179 = tpu.matmul %178, %166, %cst_64 {dimension_numbers = #tpu.dot_dimension_numbers<[1], [0], [0], [1], [0, 0, 1, 1], [], []>} : vector<40x64xbf16>, vector<64x8xbf16>, vector<40x8xf32> -> vector<40x8xf32>
    %180 = vector.extract_strided_slice %57 {offsets = [0, 56], sizes = [40, 8], strides = [1, 1]} : vector<40x64xbf16> to vector<40x8xbf16>
    %181 = vector.extract_strided_slice %66 {offsets = [0, 56], sizes = [64, 8], strides = [1, 1]} : vector<64x64xbf16> to vector<64x8xbf16>
    %182 = vector.extract_strided_slice %67 {offsets = [0, 56], sizes = [64, 8], strides = [1, 1]} : vector<64x64xbf16> to vector<64x8xbf16>
    %cst_65 = arith.constant dense<0.000000e+00> : vector<40x64xf32>
    %183 = tpu.matmul %180, %181, %cst_65 {dimension_numbers = #tpu.dot_dimension_numbers<[1], [1], [0], [0], [0, 0, 1, 0], [], []>} : vector<40x8xbf16>, vector<64x8xbf16>, vector<40x64xf32> -> vector<40x64xf32>
    %cst_66 = arith.constant dense<0xFF800000> : vector<40xf32>
    %184 = vector.multi_reduction <maximumf>, %183, %cst_66 [1] : vector<40x64xf32> to vector<40xf32>
    %185 = vector.shape_cast %184 : vector<40xf32> to vector<40x1xf32>
    %186 = vector.broadcast %185 : vector<40x1xf32> to vector<40x64xf32>
    %187 = arith.subf %183, %186 : vector<40x64xf32>
    %188 = math.exp %187 : vector<40x64xf32>
    %cst_67 = arith.constant dense<0.000000e+00> : vector<40xf32>
    %189 = vector.multi_reduction <add>, %188, %cst_67 [1] : vector<40x64xf32> to vector<40xf32>
    %190 = vector.shape_cast %189 : vector<40xf32> to vector<40x1xf32>
    %191 = tpu.reciprocal %190 {approx = true} : vector<40x1xf32> -> vector<40x1xf32>
    %192 = vector.broadcast %191 : vector<40x1xf32> to vector<40x64xf32>
    %193 = arith.mulf %188, %192 : vector<40x64xf32>
    %194 = arith.truncf %193 : vector<40x64xf32> to vector<40x64xbf16>
    %cst_68 = arith.constant dense<0.000000e+00> : vector<40x8xf32>
    %195 = tpu.matmul %194, %182, %cst_68 {dimension_numbers = #tpu.dot_dimension_numbers<[1], [0], [0], [1], [0, 0, 1, 1], [], []>} : vector<40x64xbf16>, vector<64x8xbf16>, vector<40x8xf32> -> vector<40x8xf32>
    %196 = tpu.concatenate %83, %99, %115, %131, %147, %163, %179, %195 in 1 : vector<40x8xf32>, vector<40x8xf32>, vector<40x8xf32>, vector<40x8xf32>, vector<40x8xf32>, vector<40x8xf32>, vector<40x8xf32>, vector<40x8xf32> -> vector<40x64xf32>
    %197 = vector.extract_strided_slice %64 {offsets = [64, 0], sizes = [64, 64], strides = [1, 1]} : vector<128x64xbf16> to vector<64x64xbf16>
    %198 = vector.extract_strided_slice %65 {offsets = [64, 0], sizes = [64, 64], strides = [1, 1]} : vector<128x64xbf16> to vector<64x64xbf16>
    %199 = vector.extract_strided_slice %57 {offsets = [0, 0], sizes = [40, 8], strides = [1, 1]} : vector<40x64xbf16> to vector<40x8xbf16>
    %200 = vector.extract_strided_slice %197 {offsets = [0, 0], sizes = [64, 8], strides = [1, 1]} : vector<64x64xbf16> to vector<64x8xbf16>
    %201 = vector.extract_strided_slice %198 {offsets = [0, 0], sizes = [64, 8], strides = [1, 1]} : vector<64x64xbf16> to vector<64x8xbf16>
    %cst_69 = arith.constant dense<0.000000e+00> : vector<40x64xf32>
    %202 = tpu.matmul %199, %200, %cst_69 {dimension_numbers = #tpu.dot_dimension_numbers<[1], [1], [0], [0], [0, 0, 1, 0], [], []>} : vector<40x8xbf16>, vector<64x8xbf16>, vector<40x64xf32> -> vector<40x64xf32>
    %cst_70 = arith.constant dense<0xFF800000> : vector<40xf32>
    %203 = vector.multi_reduction <maximumf>, %202, %cst_70 [1] : vector<40x64xf32> to vector<40xf32>
    %204 = vector.shape_cast %203 : vector<40xf32> to vector<40x1xf32>
    %205 = vector.broadcast %204 : vector<40x1xf32> to vector<40x64xf32>
    %206 = arith.subf %202, %205 : vector<40x64xf32>
    %207 = math.exp %206 : vector<40x64xf32>
    %cst_71 = arith.constant dense<0.000000e+00> : vector<40xf32>
    %208 = vector.multi_reduction <add>, %207, %cst_71 [1] : vector<40x64xf32> to vector<40xf32>
    %209 = vector.shape_cast %208 : vector<40xf32> to vector<40x1xf32>
    %210 = tpu.reciprocal %209 {approx = true} : vector<40x1xf32> -> vector<40x1xf32>
    %211 = vector.broadcast %210 : vector<40x1xf32> to vector<40x64xf32>
    %212 = arith.mulf %207, %211 : vector<40x64xf32>
    %213 = arith.truncf %212 : vector<40x64xf32> to vector<40x64xbf16>
    %cst_72 = arith.constant dense<0.000000e+00> : vector<40x8xf32>
    %214 = tpu.matmul %213, %201, %cst_72 {dimension_numbers = #tpu.dot_dimension_numbers<[1], [0], [0], [1], [0, 0, 1, 1], [], []>} : vector<40x64xbf16>, vector<64x8xbf16>, vector<40x8xf32> -> vector<40x8xf32>
    %215 = vector.extract_strided_slice %57 {offsets = [0, 8], sizes = [40, 8], strides = [1, 1]} : vector<40x64xbf16> to vector<40x8xbf16>
    %216 = vector.extract_strided_slice %197 {offsets = [0, 8], sizes = [64, 8], strides = [1, 1]} : vector<64x64xbf16> to vector<64x8xbf16>
    %217 = vector.extract_strided_slice %198 {offsets = [0, 8], sizes = [64, 8], strides = [1, 1]} : vector<64x64xbf16> to vector<64x8xbf16>
    %cst_73 = arith.constant dense<0.000000e+00> : vector<40x64xf32>
    %218 = tpu.matmul %215, %216, %cst_73 {dimension_numbers = #tpu.dot_dimension_numbers<[1], [1], [0], [0], [0, 0, 1, 0], [], []>} : vector<40x8xbf16>, vector<64x8xbf16>, vector<40x64xf32> -> vector<40x64xf32>
    %cst_74 = arith.constant dense<0xFF800000> : vector<40xf32>
    %219 = vector.multi_reduction <maximumf>, %218, %cst_74 [1] : vector<40x64xf32> to vector<40xf32>
    %220 = vector.shape_cast %219 : vector<40xf32> to vector<40x1xf32>
    %221 = vector.broadcast %220 : vector<40x1xf32> to vector<40x64xf32>
    %222 = arith.subf %218, %221 : vector<40x64xf32>
    %223 = math.exp %222 : vector<40x64xf32>
    %cst_75 = arith.constant dense<0.000000e+00> : vector<40xf32>
    %224 = vector.multi_reduction <add>, %223, %cst_75 [1] : vector<40x64xf32> to vector<40xf32>
    %225 = vector.shape_cast %224 : vector<40xf32> to vector<40x1xf32>
    %226 = tpu.reciprocal %225 {approx = true} : vector<40x1xf32> -> vector<40x1xf32>
    %227 = vector.broadcast %226 : vector<40x1xf32> to vector<40x64xf32>
    %228 = arith.mulf %223, %227 : vector<40x64xf32>
    %229 = arith.truncf %228 : vector<40x64xf32> to vector<40x64xbf16>
    %cst_76 = arith.constant dense<0.000000e+00> : vector<40x8xf32>
    %230 = tpu.matmul %229, %217, %cst_76 {dimension_numbers = #tpu.dot_dimension_numbers<[1], [0], [0], [1], [0, 0, 1, 1], [], []>} : vector<40x64xbf16>, vector<64x8xbf16>, vector<40x8xf32> -> vector<40x8xf32>
    %231 = vector.extract_strided_slice %57 {offsets = [0, 16], sizes = [40, 8], strides = [1, 1]} : vector<40x64xbf16> to vector<40x8xbf16>
    %232 = vector.extract_strided_slice %197 {offsets = [0, 16], sizes = [64, 8], strides = [1, 1]} : vector<64x64xbf16> to vector<64x8xbf16>
    %233 = vector.extract_strided_slice %198 {offsets = [0, 16], sizes = [64, 8], strides = [1, 1]} : vector<64x64xbf16> to vector<64x8xbf16>
    %cst_77 = arith.constant dense<0.000000e+00> : vector<40x64xf32>
    %234 = tpu.matmul %231, %232, %cst_77 {dimension_numbers = #tpu.dot_dimension_numbers<[1], [1], [0], [0], [0, 0, 1, 0], [], []>} : vector<40x8xbf16>, vector<64x8xbf16>, vector<40x64xf32> -> vector<40x64xf32>
    %cst_78 = arith.constant dense<0xFF800000> : vector<40xf32>
    %235 = vector.multi_reduction <maximumf>, %234, %cst_78 [1] : vector<40x64xf32> to vector<40xf32>
    %236 = vector.shape_cast %235 : vector<40xf32> to vector<40x1xf32>
    %237 = vector.broadcast %236 : vector<40x1xf32> to vector<40x64xf32>
    %238 = arith.subf %234, %237 : vector<40x64xf32>
    %239 = math.exp %238 : vector<40x64xf32>
    %cst_79 = arith.constant dense<0.000000e+00> : vector<40xf32>
    %240 = vector.multi_reduction <add>, %239, %cst_79 [1] : vector<40x64xf32> to vector<40xf32>
    %241 = vector.shape_cast %240 : vector<40xf32> to vector<40x1xf32>
    %242 = tpu.reciprocal %241 {approx = true} : vector<40x1xf32> -> vector<40x1xf32>
    %243 = vector.broadcast %242 : vector<40x1xf32> to vector<40x64xf32>
    %244 = arith.mulf %239, %243 : vector<40x64xf32>
    %245 = arith.truncf %244 : vector<40x64xf32> to vector<40x64xbf16>
    %cst_80 = arith.constant dense<0.000000e+00> : vector<40x8xf32>
    %246 = tpu.matmul %245, %233, %cst_80 {dimension_numbers = #tpu.dot_dimension_numbers<[1], [0], [0], [1], [0, 0, 1, 1], [], []>} : vector<40x64xbf16>, vector<64x8xbf16>, vector<40x8xf32> -> vector<40x8xf32>
    %247 = vector.extract_strided_slice %57 {offsets = [0, 24], sizes = [40, 8], strides = [1, 1]} : vector<40x64xbf16> to vector<40x8xbf16>
    %248 = vector.extract_strided_slice %197 {offsets = [0, 24], sizes = [64, 8], strides = [1, 1]} : vector<64x64xbf16> to vector<64x8xbf16>
    %249 = vector.extract_strided_slice %198 {offsets = [0, 24], sizes = [64, 8], strides = [1, 1]} : vector<64x64xbf16> to vector<64x8xbf16>
    %cst_81 = arith.constant dense<0.000000e+00> : vector<40x64xf32>
    %250 = tpu.matmul %247, %248, %cst_81 {dimension_numbers = #tpu.dot_dimension_numbers<[1], [1], [0], [0], [0, 0, 1, 0], [], []>} : vector<40x8xbf16>, vector<64x8xbf16>, vector<40x64xf32> -> vector<40x64xf32>
    %cst_82 = arith.constant dense<0xFF800000> : vector<40xf32>
    %251 = vector.multi_reduction <maximumf>, %250, %cst_82 [1] : vector<40x64xf32> to vector<40xf32>
    %252 = vector.shape_cast %251 : vector<40xf32> to vector<40x1xf32>
    %253 = vector.broadcast %252 : vector<40x1xf32> to vector<40x64xf32>
    %254 = arith.subf %250, %253 : vector<40x64xf32>
    %255 = math.exp %254 : vector<40x64xf32>
    %cst_83 = arith.constant dense<0.000000e+00> : vector<40xf32>
    %256 = vector.multi_reduction <add>, %255, %cst_83 [1] : vector<40x64xf32> to vector<40xf32>
    %257 = vector.shape_cast %256 : vector<40xf32> to vector<40x1xf32>
    %258 = tpu.reciprocal %257 {approx = true} : vector<40x1xf32> -> vector<40x1xf32>
    %259 = vector.broadcast %258 : vector<40x1xf32> to vector<40x64xf32>
    %260 = arith.mulf %255, %259 : vector<40x64xf32>
    %261 = arith.truncf %260 : vector<40x64xf32> to vector<40x64xbf16>
    %cst_84 = arith.constant dense<0.000000e+00> : vector<40x8xf32>
    %262 = tpu.matmul %261, %249, %cst_84 {dimension_numbers = #tpu.dot_dimension_numbers<[1], [0], [0], [1], [0, 0, 1, 1], [], []>} : vector<40x64xbf16>, vector<64x8xbf16>, vector<40x8xf32> -> vector<40x8xf32>
    %263 = vector.extract_strided_slice %57 {offsets = [0, 32], sizes = [40, 8], strides = [1, 1]} : vector<40x64xbf16> to vector<40x8xbf16>
    %264 = vector.extract_strided_slice %197 {offsets = [0, 32], sizes = [64, 8], strides = [1, 1]} : vector<64x64xbf16> to vector<64x8xbf16>
    %265 = vector.extract_strided_slice %198 {offsets = [0, 32], sizes = [64, 8], strides = [1, 1]} : vector<64x64xbf16> to vector<64x8xbf16>
    %cst_85 = arith.constant dense<0.000000e+00> : vector<40x64xf32>
    %266 = tpu.matmul %263, %264, %cst_85 {dimension_numbers = #tpu.dot_dimension_numbers<[1], [1], [0], [0], [0, 0, 1, 0], [], []>} : vector<40x8xbf16>, vector<64x8xbf16>, vector<40x64xf32> -> vector<40x64xf32>
    %cst_86 = arith.constant dense<0xFF800000> : vector<40xf32>
    %267 = vector.multi_reduction <maximumf>, %266, %cst_86 [1] : vector<40x64xf32> to vector<40xf32>
    %268 = vector.shape_cast %267 : vector<40xf32> to vector<40x1xf32>
    %269 = vector.broadcast %268 : vector<40x1xf32> to vector<40x64xf32>
    %270 = arith.subf %266, %269 : vector<40x64xf32>
    %271 = math.exp %270 : vector<40x64xf32>
    %cst_87 = arith.constant dense<0.000000e+00> : vector<40xf32>
    %272 = vector.multi_reduction <add>, %271, %cst_87 [1] : vector<40x64xf32> to vector<40xf32>
    %273 = vector.shape_cast %272 : vector<40xf32> to vector<40x1xf32>
    %274 = tpu.reciprocal %273 {approx = true} : vector<40x1xf32> -> vector<40x1xf32>
    %275 = vector.broadcast %274 : vector<40x1xf32> to vector<40x64xf32>
    %276 = arith.mulf %271, %275 : vector<40x64xf32>
    %277 = arith.truncf %276 : vector<40x64xf32> to vector<40x64xbf16>
    %cst_88 = arith.constant dense<0.000000e+00> : vector<40x8xf32>
    %278 = tpu.matmul %277, %265, %cst_88 {dimension_numbers = #tpu.dot_dimension_numbers<[1], [0], [0], [1], [0, 0, 1, 1], [], []>} : vector<40x64xbf16>, vector<64x8xbf16>, vector<40x8xf32> -> vector<40x8xf32>
    %279 = vector.extract_strided_slice %57 {offsets = [0, 40], sizes = [40, 8], strides = [1, 1]} : vector<40x64xbf16> to vector<40x8xbf16>
    %280 = vector.extract_strided_slice %197 {offsets = [0, 40], sizes = [64, 8], strides = [1, 1]} : vector<64x64xbf16> to vector<64x8xbf16>
    %281 = vector.extract_strided_slice %198 {offsets = [0, 40], sizes = [64, 8], strides = [1, 1]} : vector<64x64xbf16> to vector<64x8xbf16>
    %cst_89 = arith.constant dense<0.000000e+00> : vector<40x64xf32>
    %282 = tpu.matmul %279, %280, %cst_89 {dimension_numbers = #tpu.dot_dimension_numbers<[1], [1], [0], [0], [0, 0, 1, 0], [], []>} : vector<40x8xbf16>, vector<64x8xbf16>, vector<40x64xf32> -> vector<40x64xf32>
    %cst_90 = arith.constant dense<0xFF800000> : vector<40xf32>
    %283 = vector.multi_reduction <maximumf>, %282, %cst_90 [1] : vector<40x64xf32> to vector<40xf32>
    %284 = vector.shape_cast %283 : vector<40xf32> to vector<40x1xf32>
    %285 = vector.broadcast %284 : vector<40x1xf32> to vector<40x64xf32>
    %286 = arith.subf %282, %285 : vector<40x64xf32>
    %287 = math.exp %286 : vector<40x64xf32>
    %cst_91 = arith.constant dense<0.000000e+00> : vector<40xf32>
    %288 = vector.multi_reduction <add>, %287, %cst_91 [1] : vector<40x64xf32> to vector<40xf32>
    %289 = vector.shape_cast %288 : vector<40xf32> to vector<40x1xf32>
    %290 = tpu.reciprocal %289 {approx = true} : vector<40x1xf32> -> vector<40x1xf32>
    %291 = vector.broadcast %290 : vector<40x1xf32> to vector<40x64xf32>
    %292 = arith.mulf %287, %291 : vector<40x64xf32>
    %293 = arith.truncf %292 : vector<40x64xf32> to vector<40x64xbf16>
    %cst_92 = arith.constant dense<0.000000e+00> : vector<40x8xf32>
    %294 = tpu.matmul %293, %281, %cst_92 {dimension_numbers = #tpu.dot_dimension_numbers<[1], [0], [0], [1], [0, 0, 1, 1], [], []>} : vector<40x64xbf16>, vector<64x8xbf16>, vector<40x8xf32> -> vector<40x8xf32>
    %295 = vector.extract_strided_slice %57 {offsets = [0, 48], sizes = [40, 8], strides = [1, 1]} : vector<40x64xbf16> to vector<40x8xbf16>
    %296 = vector.extract_strided_slice %197 {offsets = [0, 48], sizes = [64, 8], strides = [1, 1]} : vector<64x64xbf16> to vector<64x8xbf16>
    %297 = vector.extract_strided_slice %198 {offsets = [0, 48], sizes = [64, 8], strides = [1, 1]} : vector<64x64xbf16> to vector<64x8xbf16>
    %cst_93 = arith.constant dense<0.000000e+00> : vector<40x64xf32>
    %298 = tpu.matmul %295, %296, %cst_93 {dimension_numbers = #tpu.dot_dimension_numbers<[1], [1], [0], [0], [0, 0, 1, 0], [], []>} : vector<40x8xbf16>, vector<64x8xbf16>, vector<40x64xf32> -> vector<40x64xf32>
    %cst_94 = arith.constant dense<0xFF800000> : vector<40xf32>
    %299 = vector.multi_reduction <maximumf>, %298, %cst_94 [1] : vector<40x64xf32> to vector<40xf32>
    %300 = vector.shape_cast %299 : vector<40xf32> to vector<40x1xf32>
    %301 = vector.broadcast %300 : vector<40x1xf32> to vector<40x64xf32>
    %302 = arith.subf %298, %301 : vector<40x64xf32>
    %303 = math.exp %302 : vector<40x64xf32>
    %cst_95 = arith.constant dense<0.000000e+00> : vector<40xf32>
    %304 = vector.multi_reduction <add>, %303, %cst_95 [1] : vector<40x64xf32> to vector<40xf32>
    %305 = vector.shape_cast %304 : vector<40xf32> to vector<40x1xf32>
    %306 = tpu.reciprocal %305 {approx = true} : vector<40x1xf32> -> vector<40x1xf32>
    %307 = vector.broadcast %306 : vector<40x1xf32> to vector<40x64xf32>
    %308 = arith.mulf %303, %307 : vector<40x64xf32>
    %309 = arith.truncf %308 : vector<40x64xf32> to vector<40x64xbf16>
    %cst_96 = arith.constant dense<0.000000e+00> : vector<40x8xf32>
    %310 = tpu.matmul %309, %297, %cst_96 {dimension_numbers = #tpu.dot_dimension_numbers<[1], [0], [0], [1], [0, 0, 1, 1], [], []>} : vector<40x64xbf16>, vector<64x8xbf16>, vector<40x8xf32> -> vector<40x8xf32>
    %311 = vector.extract_strided_slice %57 {offsets = [0, 56], sizes = [40, 8], strides = [1, 1]} : vector<40x64xbf16> to vector<40x8xbf16>
    %312 = vector.extract_strided_slice %197 {offsets = [0, 56], sizes = [64, 8], strides = [1, 1]} : vector<64x64xbf16> to vector<64x8xbf16>
    %313 = vector.extract_strided_slice %198 {offsets = [0, 56], sizes = [64, 8], strides = [1, 1]} : vector<64x64xbf16> to vector<64x8xbf16>
    %cst_97 = arith.constant dense<0.000000e+00> : vector<40x64xf32>
    %314 = tpu.matmul %311, %312, %cst_97 {dimension_numbers = #tpu.dot_dimension_numbers<[1], [1], [0], [0], [0, 0, 1, 0], [], []>} : vector<40x8xbf16>, vector<64x8xbf16>, vector<40x64xf32> -> vector<40x64xf32>
    %cst_98 = arith.constant dense<0xFF800000> : vector<40xf32>
    %315 = vector.multi_reduction <maximumf>, %314, %cst_98 [1] : vector<40x64xf32> to vector<40xf32>
    %316 = vector.shape_cast %315 : vector<40xf32> to vector<40x1xf32>
    %317 = vector.broadcast %316 : vector<40x1xf32> to vector<40x64xf32>
    %318 = arith.subf %314, %317 : vector<40x64xf32>
    %319 = math.exp %318 : vector<40x64xf32>
    %cst_99 = arith.constant dense<0.000000e+00> : vector<40xf32>
    %320 = vector.multi_reduction <add>, %319, %cst_99 [1] : vector<40x64xf32> to vector<40xf32>
    %321 = vector.shape_cast %320 : vector<40xf32> to vector<40x1xf32>
    %322 = tpu.reciprocal %321 {approx = true} : vector<40x1xf32> -> vector<40x1xf32>
    %323 = vector.broadcast %322 : vector<40x1xf32> to vector<40x64xf32>
    %324 = arith.mulf %319, %323 : vector<40x64xf32>
    %325 = arith.truncf %324 : vector<40x64xf32> to vector<40x64xbf16>
    %cst_100 = arith.constant dense<0.000000e+00> : vector<40x8xf32>
    %326 = tpu.matmul %325, %313, %cst_100 {dimension_numbers = #tpu.dot_dimension_numbers<[1], [0], [0], [1], [0, 0, 1, 1], [], []>} : vector<40x64xbf16>, vector<64x8xbf16>, vector<40x8xf32> -> vector<40x8xf32>
    %327 = tpu.concatenate %214, %230, %246, %262, %278, %294, %310, %326 in 1 : vector<40x8xf32>, vector<40x8xf32>, vector<40x8xf32>, vector<40x8xf32>, vector<40x8xf32>, vector<40x8xf32>, vector<40x8xf32>, vector<40x8xf32> -> vector<40x64xf32>
    %328 = tpu.concatenate %196, %327 in 0 : vector<40x64xf32>, vector<40x64xf32> -> vector<80x64xf32>
    %329 = arith.truncf %328 : vector<80x64xf32> to vector<80x64xbf16>
    %c0_101 = arith.constant 0 : index
    %c0_102 = arith.constant 0 : index
    %330 = vector.load %arg13[%c0_101, %c0_102] : memref<64x64xbf16, #tpu.memory_space<vmem>>, vector<64x64xbf16>
    %cst_103 = arith.constant dense<0.000000e+00> : vector<80x64xf32>
    %331 = tpu.matmul %329, %330, %cst_103 {dimension_numbers = #tpu.dot_dimension_numbers<[1], [0], [0], [1], [0, 0, 1, 1], [], []>} : vector<80x64xbf16>, vector<64x64xbf16>, vector<80x64xf32> -> vector<80x64xf32>
    %c0_104 = arith.constant 0 : index
    %c0_105 = arith.constant 0 : index
    %332 = vector.load %arg14[%c0_104, %c0_105] : memref<1x64xf32, #tpu.memory_space<vmem>>, vector<1x64xf32>
    %333 = vector.broadcast %332 : vector<1x64xf32> to vector<80x64xf32>
    %334 = arith.addf %331, %333 : vector<80x64xf32>
    %335 = tpu.concatenate %48, %48 in 0 : vector<40x64xf32>, vector<40x64xf32> -> vector<80x64xf32>
    %336 = arith.addf %335, %334 : vector<80x64xf32>
    %c0_106 = arith.constant 0 : index
    %c0_107 = arith.constant 0 : index
    %337 = vector.load %arg15[%c0_106, %c0_107] : memref<1x64xf32, #tpu.memory_space<vmem>>, vector<1x64xf32>
    %c0_108 = arith.constant 0 : index
    %c0_109 = arith.constant 0 : index
    %338 = vector.load %arg16[%c0_108, %c0_109] : memref<1x64xf32, #tpu.memory_space<vmem>>, vector<1x64xf32>
    %cst_110 = arith.constant dense<0.000000e+00> : vector<80xf32>
    %339 = vector.multi_reduction <add>, %336, %cst_110 [1] : vector<80x64xf32> to vector<80xf32>
    %340 = vector.shape_cast %339 : vector<80xf32> to vector<80x1xf32>
    %cst_111 = arith.constant 6.400000e+01 : f32
    %341 = vector.broadcast %cst_111 : f32 to vector<80x1xf32>
    %342 = arith.divf %340, %341 : vector<80x1xf32>
    %343 = vector.broadcast %342 : vector<80x1xf32> to vector<80x64xf32>
    %344 = arith.subf %336, %343 : vector<80x64xf32>
    %345 = vector.broadcast %342 : vector<80x1xf32> to vector<80x64xf32>
    %346 = arith.subf %336, %345 : vector<80x64xf32>
    %347 = arith.mulf %344, %346 : vector<80x64xf32>
    %cst_112 = arith.constant dense<0.000000e+00> : vector<80xf32>
    %348 = vector.multi_reduction <add>, %347, %cst_112 [1] : vector<80x64xf32> to vector<80xf32>
    %349 = vector.shape_cast %348 : vector<80xf32> to vector<80x1xf32>
    %cst_113 = arith.constant 6.400000e+01 : f32
    %350 = vector.broadcast %cst_113 : f32 to vector<80x1xf32>
    %351 = arith.divf %349, %350 : vector<80x1xf32>
    %352 = vector.broadcast %342 : vector<80x1xf32> to vector<80x64xf32>
    %353 = arith.subf %336, %352 : vector<80x64xf32>
    %cst_114 = arith.constant 9.99999974E-6 : f32
    %354 = vector.broadcast %cst_114 : f32 to vector<80x1xf32>
    %355 = arith.addf %351, %354 : vector<80x1xf32>
    %356 = math.rsqrt %355 : vector<80x1xf32>
    %357 = vector.broadcast %356 : vector<80x1xf32> to vector<80x64xf32>
    %358 = arith.mulf %353, %357 : vector<80x64xf32>
    %359 = vector.broadcast %337 : vector<1x64xf32> to vector<80x64xf32>
    %360 = arith.mulf %358, %359 : vector<80x64xf32>
    %361 = vector.broadcast %338 : vector<1x64xf32> to vector<80x64xf32>
    %362 = arith.addf %360, %361 : vector<80x64xf32>
    %363 = arith.truncf %362 : vector<80x64xf32> to vector<80x64xbf16>
    %c0_115 = arith.constant 0 : index
    %c0_116 = arith.constant 0 : index
    %364 = vector.load %arg17[%c0_115, %c0_116] : memref<64x128xbf16, #tpu.memory_space<vmem>>, vector<64x128xbf16>
    %cst_117 = arith.constant dense<0.000000e+00> : vector<80x128xf32>
    %365 = tpu.matmul %363, %364, %cst_117 {dimension_numbers = #tpu.dot_dimension_numbers<[1], [0], [0], [1], [0, 0, 1, 1], [], []>} : vector<80x64xbf16>, vector<64x128xbf16>, vector<80x128xf32> -> vector<80x128xf32>
    %c0_118 = arith.constant 0 : index
    %c0_119 = arith.constant 0 : index
    %366 = vector.load %arg18[%c0_118, %c0_119] : memref<1x128xf32, #tpu.memory_space<vmem>>, vector<1x128xf32>
    %367 = vector.broadcast %366 : vector<1x128xf32> to vector<80x128xf32>
    %368 = arith.addf %365, %367 : vector<80x128xf32>
    %cst_120 = arith.constant 0.000000e+00 : f32
    %369 = vector.broadcast %cst_120 : f32 to vector<80x128xf32>
    %370 = arith.maximumf %368, %369 : vector<80x128xf32>
    %371 = arith.truncf %370 : vector<80x128xf32> to vector<80x128xbf16>
    %c0_121 = arith.constant 0 : index
    %c0_122 = arith.constant 0 : index
    %372 = vector.load %arg19[%c0_121, %c0_122] : memref<128x64xbf16, #tpu.memory_space<vmem>>, vector<128x64xbf16>
    %cst_123 = arith.constant dense<0.000000e+00> : vector<80x64xf32>
    %373 = tpu.matmul %371, %372, %cst_123 {dimension_numbers = #tpu.dot_dimension_numbers<[1], [0], [0], [1], [0, 0, 1, 1], [], []>} : vector<80x128xbf16>, vector<128x64xbf16>, vector<80x64xf32> -> vector<80x64xf32>
    %c0_124 = arith.constant 0 : index
    %c0_125 = arith.constant 0 : index
    %374 = vector.load %arg20[%c0_124, %c0_125] : memref<1x64xf32, #tpu.memory_space<vmem>>, vector<1x64xf32>
    %375 = vector.broadcast %374 : vector<1x64xf32> to vector<80x64xf32>
    %376 = arith.addf %373, %375 : vector<80x64xf32>
    %377 = arith.addf %362, %376 : vector<80x64xf32>
    %c0_126 = arith.constant 0 : index
    %c0_127 = arith.constant 0 : index
    %378 = vector.load %arg21[%c0_126, %c0_127] : memref<1x64xf32, #tpu.memory_space<vmem>>, vector<1x64xf32>
    %c0_128 = arith.constant 0 : index
    %c0_129 = arith.constant 0 : index
    %379 = vector.load %arg22[%c0_128, %c0_129] : memref<1x64xf32, #tpu.memory_space<vmem>>, vector<1x64xf32>
    %cst_130 = arith.constant dense<0.000000e+00> : vector<80xf32>
    %380 = vector.multi_reduction <add>, %377, %cst_130 [1] : vector<80x64xf32> to vector<80xf32>
    %381 = vector.shape_cast %380 : vector<80xf32> to vector<80x1xf32>
    %cst_131 = arith.constant 6.400000e+01 : f32
    %382 = vector.broadcast %cst_131 : f32 to vector<80x1xf32>
    %383 = arith.divf %381, %382 : vector<80x1xf32>
    %384 = vector.broadcast %383 : vector<80x1xf32> to vector<80x64xf32>
    %385 = arith.subf %377, %384 : vector<80x64xf32>
    %386 = vector.broadcast %383 : vector<80x1xf32> to vector<80x64xf32>
    %387 = arith.subf %377, %386 : vector<80x64xf32>
    %388 = arith.mulf %385, %387 : vector<80x64xf32>
    %cst_132 = arith.constant dense<0.000000e+00> : vector<80xf32>
    %389 = vector.multi_reduction <add>, %388, %cst_132 [1] : vector<80x64xf32> to vector<80xf32>
    %390 = vector.shape_cast %389 : vector<80xf32> to vector<80x1xf32>
    %cst_133 = arith.constant 6.400000e+01 : f32
    %391 = vector.broadcast %cst_133 : f32 to vector<80x1xf32>
    %392 = arith.divf %390, %391 : vector<80x1xf32>
    %393 = vector.broadcast %383 : vector<80x1xf32> to vector<80x64xf32>
    %394 = arith.subf %377, %393 : vector<80x64xf32>
    %cst_134 = arith.constant 9.99999974E-6 : f32
    %395 = vector.broadcast %cst_134 : f32 to vector<80x1xf32>
    %396 = arith.addf %392, %395 : vector<80x1xf32>
    %397 = math.rsqrt %396 : vector<80x1xf32>
    %398 = vector.broadcast %397 : vector<80x1xf32> to vector<80x64xf32>
    %399 = arith.mulf %394, %398 : vector<80x64xf32>
    %400 = vector.broadcast %378 : vector<1x64xf32> to vector<80x64xf32>
    %401 = arith.mulf %399, %400 : vector<80x64xf32>
    %402 = vector.broadcast %379 : vector<1x64xf32> to vector<80x64xf32>
    %403 = arith.addf %401, %402 : vector<80x64xf32>
    %c0_135 = arith.constant 0 : index
    %c0_136 = arith.constant 0 : index
    %404 = vector.load %arg23[%c0_135, %c0_136] : memref<40x64xf32, #tpu.memory_space<vmem>>, vector<40x64xf32>
    %c0_137 = arith.constant 0 : index
    %c0_138 = arith.constant 0 : index
    %405 = vector.load %arg24[%c0_137, %c0_138] : memref<1x40xf32, #tpu.memory_space<vmem>>, vector<1x40xf32>
    %406 = vector.shape_cast %405 : vector<1x40xf32> to vector<40xf32>
    %407 = vector.extract_strided_slice %403 {offsets = [0, 0], sizes = [40, 64], strides = [1, 1]} : vector<80x64xf32> to vector<40x64xf32>
    %408 = arith.mulf %407, %404 : vector<40x64xf32>
    %cst_139 = arith.constant dense<0.000000e+00> : vector<40xf32>
    %409 = vector.multi_reduction <add>, %408, %cst_139 [1] : vector<40x64xf32> to vector<40xf32>
    %410 = arith.addf %409, %406 : vector<40xf32>
    %c0_140 = arith.constant 0 : index
    %c0_141 = arith.constant 0 : index
    %411 = vector.load %arg25[%c0_140, %c0_141] : memref<2x40xf32, #tpu.memory_space<vmem>>, vector<1x40xf32>
    %412 = vector.shape_cast %411 : vector<1x40xf32> to vector<40xf32>
    %413 = vector.shape_cast %410 : vector<40xf32> to vector<1x40xf32>
    tpu.vector_store %arg25[%c0_140, %c0_141], %413 {strides = array<i32>} : memref<2x40xf32, #tpu.memory_space<vmem>>, vector<1x40xf32>,
    %414 = vector.extract_strided_slice %403 {offsets = [40, 0], sizes = [40, 64], strides = [1, 1]} : vector<80x64xf32> to vector<40x64xf32>
    %415 = arith.mulf %414, %404 : vector<40x64xf32>
    %cst_142 = arith.constant dense<0.000000e+00> : vector<40xf32>
    %416 = vector.multi_reduction <add>, %415, %cst_142 [1] : vector<40x64xf32> to vector<40xf32>
    %417 = arith.addf %416, %406 : vector<40xf32>
    %c1 = arith.constant 1 : index
    %c0_143 = arith.constant 0 : index
    %418 = vector.load %arg25[%c1, %c0_143] : memref<2x40xf32, #tpu.memory_space<vmem>>, vector<1x40xf32>
    %419 = vector.shape_cast %418 : vector<1x40xf32> to vector<40xf32>
    %420 = vector.shape_cast %417 : vector<40xf32> to vector<1x40xf32>
    tpu.vector_store %arg25[%c1, %c0_143], %420 {strides = array<i32>} : memref<2x40xf32, #tpu.memory_space<vmem>>, vector<1x40xf32>,
    return
  }
}

</mosaic_0001>

<llo_original>
// kernel: backbone_forward.1
$region0: #{backbone_forward.1}
  #allocation0 [shape = 'u32[]', space=smem, size = 0x4, offset = 0x4, fixed_abs, tag = 'smem constant byte address 0x4 - core index']
  #allocation1 [shape = 'u32[144,128]{1,0:T(1,128)}', space=vmem, size = 0x12000, scoped, tag = 'internal scratch']
  %s0 = inlined_call_operand.vmem [shape: bf16[128,32], index: 0, kind: input, shape index: {}]
  %s1 = inlined_call_operand.vmem [shape: f32[64,64], index: 1, kind: input, shape index: {}]
  %s2 = inlined_call_operand.vmem [shape: bf16[32,64], index: 2, kind: input, shape index: {}]
  %s3 = inlined_call_operand.vmem [shape: f32[1,64], index: 3, kind: input, shape index: {}]
  %s4 = inlined_call_operand.vmem [shape: bf16[64,64], index: 4, kind: input, shape index: {}]
  %s5 = inlined_call_operand.vmem [shape: f32[1,64], index: 5, kind: input, shape index: {}]
  %s6 = inlined_call_operand.vmem [shape: f32[40,64], index: 6, kind: input, shape index: {}]
  %s7 = inlined_call_operand.vmem [shape: f32[1,64], index: 7, kind: input, shape index: {}]
  %s8 = inlined_call_operand.vmem [shape: f32[1,64], index: 8, kind: input, shape index: {}]
  %s9 = inlined_call_operand.vmem [shape: bf16[64,64], index: 9, kind: input, shape index: {}]
  %s10 = inlined_call_operand.vmem [shape: bf16[64,128], index: 10, kind: input, shape index: {}]
  %s11 = inlined_call_operand.vmem [shape: f32[1,64], index: 11, kind: input, shape index: {}]
  %s12 = inlined_call_operand.vmem [shape: f32[1,128], index: 12, kind: input, shape index: {}]
  %s13 = inlined_call_operand.vmem [shape: bf16[64,64], index: 13, kind: input, shape index: {}]
  %s14 = inlined_call_operand.vmem [shape: f32[1,64], index: 14, kind: input, shape index: {}]
  %s15 = inlined_call_operand.vmem [shape: f32[1,64], index: 15, kind: input, shape index: {}]
  %s16 = inlined_call_operand.vmem [shape: f32[1,64], index: 16, kind: input, shape index: {}]
  %s17 = inlined_call_operand.vmem [shape: bf16[64,128], index: 17, kind: input, shape index: {}]
  %s18 = inlined_call_operand.vmem [shape: f32[1,128], index: 18, kind: input, shape index: {}]
  %s19 = inlined_call_operand.vmem [shape: bf16[128,64], index: 19, kind: input, shape index: {}]
  %s20 = inlined_call_operand.vmem [shape: f32[1,64], index: 20, kind: input, shape index: {}]
  %s21 = inlined_call_operand.vmem [shape: f32[1,64], index: 21, kind: input, shape index: {}]
  %s22 = inlined_call_operand.vmem [shape: f32[1,64], index: 22, kind: input, shape index: {}]
  %s23 = inlined_call_operand.vmem [shape: f32[40,64], index: 23, kind: input, shape index: {}]
  %s24 = inlined_call_operand.vmem [shape: f32[1,40], index: 24, kind: input, shape index: {}]
  %s25 = inlined_call_operand.hbm [shape: f32[2,40], index: 25, kind: output, shape index: {}]
  %s26 = sld [smem:[#allocation0]]
  $region110: #{backbone_forward.1} parent=0
    _
  %s28 = ssub.s32 1, %s26
  %s29 = scalar_select 0, %s28, %s26
  $region1: #{backbone_forward.1} parent=0
    #allocation2 [shape = 'u8[1024]{0}', space=vmem, size = 0x400, scoped, tag = 'output window, operand 0, single buffered']
    #allocation3 [shape = 's32[1]{0}', space=sflag, size = 0x4, scoped, tag = 'scoped memory for backbone_forward.1']
    %30 = vsyncpa [#allocation3], 0
    // Predicated region
    $region2: #{backbone_forward.1} parent=1 // pred_check
      _
    $region3: #{backbone_forward.1} parent=1 // pred_check_branch
      %32 = sbr.rel (0) target = $region5
    $region4: #{backbone_forward.1} parent=1 // pred_region
      _
    $region5: #{backbone_forward.1} parent=1 // pred_fallthru
      _
    // Predicated region
    $region6: #{backbone_forward.1} parent=1 // pred_check
      _
    $region7: #{backbone_forward.1} parent=1 // pred_check_branch
      %34 = sbr.rel (0) target = $region9
    $region8: #{backbone_forward.1} parent=1 // pred_region
      _
    $region9: #{backbone_forward.1} parent=1 // pred_fallthru
      _
    // Predicated region
    $region10: #{backbone_forward.1} parent=1 // pred_check
      _
    $region11: #{backbone_forward.1} parent=1 // pred_check_branch
      %36 = sbr.rel (0) target = $region13
    $region12: #{backbone_forward.1} parent=1 // pred_region
      _
    $region13: #{backbone_forward.1} parent=1 // pred_fallthru
      _
    // Predicated region
    $region14: #{backbone_forward.1} parent=1 // pred_check
      _
    $region15: #{backbone_forward.1} parent=1 // pred_check_branch
      %38 = sbr.rel (0) target = $region17
    $region16: #{backbone_forward.1} parent=1 // pred_region
      _
    $region17: #{backbone_forward.1} parent=1 // pred_fallthru
      _
    // Predicated region
    $region18: #{backbone_forward.1} parent=1 // pred_check
      _
    $region19: #{backbone_forward.1} parent=1 // pred_check_branch
      %40 = sbr.rel (0) target = $region21
    $region20: #{backbone_forward.1} parent=1 // pred_region
      _
    $region21: #{backbone_forward.1} parent=1 // pred_fallthru
      _
    // Predicated region
    $region22: #{backbone_forward.1} parent=1 // pred_check
      _
    $region23: #{backbone_forward.1} parent=1 // pred_check_branch
      %42 = sbr.rel (0) target = $region25
    $region24: #{backbone_forward.1} parent=1 // pred_region
      _
    $region25: #{backbone_forward.1} parent=1 // pred_fallthru
      _
    // Predicated region
    $region26: #{backbone_forward.1} parent=1 // pred_check
      _
    $region27: #{backbone_forward.1} parent=1 // pred_check_branch
      %44 = sbr.rel (0) target = $region29
    $region28: #{backbone_forward.1} parent=1 // pred_region
      _
    $region29: #{backbone_forward.1} parent=1 // pred_fallthru
      _
    // Predicated region
    $region30: #{backbone_forward.1} parent=1 // pred_check
      _
    $region31: #{backbone_forward.1} parent=1 // pred_check_branch
      %46 = sbr.rel (0) target = $region33
    $region32: #{backbone_forward.1} parent=1 // pred_region
      _
    $region33: #{backbone_forward.1} parent=1 // pred_fallthru
      _
    // Predicated region
    $region34: #{backbone_forward.1} parent=1 // pred_check
      _
    $region35: #{backbone_forward.1} parent=1 // pred_check_branch
      %48 = sbr.rel (0) target = $region37
    $region36: #{backbone_forward.1} parent=1 // pred_region
      _
    $region37: #{backbone_forward.1} parent=1 // pred_fallthru
      _
    // Predicated region
    $region38: #{backbone_forward.1} parent=1 // pred_check
      _
    $region39: #{backbone_forward.1} parent=1 // pred_check_branch
      %50 = sbr.rel (0) target = $region41
    $region40: #{backbone_forward.1} parent=1 // pred_region
      _
    $region41: #{backbone_forward.1} parent=1 // pred_fallthru
      _
    // Predicated region
    $region42: #{backbone_forward.1} parent=1 // pred_check
      _
    $region43: #{backbone_forward.1} parent=1 // pred_check_branch
      %52 = sbr.rel (0) target = $region45
    $region44: #{backbone_forward.1} parent=1 // pred_region
      _
    $region45: #{backbone_forward.1} parent=1 // pred_fallthru
      _
    // Predicated region
    $region46: #{backbone_forward.1} parent=1 // pred_check
      _
    $region47: #{backbone_forward.1} parent=1 // pred_check_branch
      %54 = sbr.rel (0) target = $region49
    $region48: #{backbone_forward.1} parent=1 // pred_region
      _
    $region49: #{backbone_forward.1} parent=1 // pred_fallthru
      _
    // Predicated region
    $region50: #{backbone_forward.1} parent=1 // pred_check
      _
    $region51: #{backbone_forward.1} parent=1 // pred_check_branch
      %56 = sbr.rel (0) target = $region53
    $region52: #{backbone_forward.1} parent=1 // pred_region
      _
    $region53: #{backbone_forward.1} parent=1 // pred_fallthru
      _
    // Predicated region
    $region54: #{backbone_forward.1} parent=1 // pred_check
      _
    $region55: #{backbone_forward.1} parent=1 // pred_check_branch
      %58 = sbr.rel (0) target = $region57
    $region56: #{backbone_forward.1} parent=1 // pred_region
      _
    $region57: #{backbone_forward.1} parent=1 // pred_fallthru
      _
    // Predicated region
    $region58: #{backbone_forward.1} parent=1 // pred_check
      _
    $region59: #{backbone_forward.1} parent=1 // pred_check_branch
      %60 = sbr.rel (0) target = $region61
    $region60: #{backbone_forward.1} parent=1 // pred_region
      _
    $region61: #{backbone_forward.1} parent=1 // pred_fallthru
      _
    // Predicated region
    $region62: #{backbone_forward.1} parent=1 // pred_check
      _
    $region63: #{backbone_forward.1} parent=1 // pred_check_branch
      %62 = sbr.rel (0) target = $region65
    $region64: #{backbone_forward.1} parent=1 // pred_region
      _
    $region65: #{backbone_forward.1} parent=1 // pred_fallthru
      _
    // Predicated region
    $region66: #{backbone_forward.1} parent=1 // pred_check
      _
    $region67: #{backbone_forward.1} parent=1 // pred_check_branch
      %64 = sbr.rel (0) target = $region69
    $region68: #{backbone_forward.1} parent=1 // pred_region
      _
    $region69: #{backbone_forward.1} parent=1 // pred_fallthru
      _
    // Predicated region
    $region70: #{backbone_forward.1} parent=1 // pred_check
      _
    $region71: #{backbone_forward.1} parent=1 // pred_check_branch
      %66 = sbr.rel (0) target = $region73
    $region72: #{backbone_forward.1} parent=1 // pred_region
      _
    $region73: #{backbone_forward.1} parent=1 // pred_fallthru
      _
    // Predicated region
    $region74: #{backbone_forward.1} parent=1 // pred_check
      _
    $region75: #{backbone_forward.1} parent=1 // pred_check_branch
      %68 = sbr.rel (0) target = $region77
    $region76: #{backbone_forward.1} parent=1 // pred_region
      _
    $region77: #{backbone_forward.1} parent=1 // pred_fallthru
      _
    // Predicated region
    $region78: #{backbone_forward.1} parent=1 // pred_check
      _
    $region79: #{backbone_forward.1} parent=1 // pred_check_branch
      %70 = sbr.rel (0) target = $region81
    $region80: #{backbone_forward.1} parent=1 // pred_region
      _
    $region81: #{backbone_forward.1} parent=1 // pred_fallthru
      _
    // Predicated region
    $region82: #{backbone_forward.1} parent=1 // pred_check
      _
    $region83: #{backbone_forward.1} parent=1 // pred_check_branch
      %72 = sbr.rel (0) target = $region85
    $region84: #{backbone_forward.1} parent=1 // pred_region
      _
    $region85: #{backbone_forward.1} parent=1 // pred_fallthru
      _
    // Predicated region
    $region86: #{backbone_forward.1} parent=1 // pred_check
      _
    $region87: #{backbone_forward.1} parent=1 // pred_check_branch
      %74 = sbr.rel (0) target = $region89
    $region88: #{backbone_forward.1} parent=1 // pred_region
      _
    $region89: #{backbone_forward.1} parent=1 // pred_fallthru
      _
    // Predicated region
    $region90: #{backbone_forward.1} parent=1 // pred_check
      _
    $region91: #{backbone_forward.1} parent=1 // pred_check_branch
      %76 = sbr.rel (0) target = $region93
    $region92: #{backbone_forward.1} parent=1 // pred_region
      _
    $region93: #{backbone_forward.1} parent=1 // pred_fallthru
      _
    // Predicated region
    $region94: #{backbone_forward.1} parent=1 // pred_check
      _
    $region95: #{backbone_forward.1} parent=1 // pred_check_branch
      %78 = sbr.rel (0) target = $region97
    $region96: #{backbone_forward.1} parent=1 // pred_region
      _
    $region97: #{backbone_forward.1} parent=1 // pred_fallthru
      _
    // Predicated region
    $region98: #{backbone_forward.1} parent=1 // pred_check
      _
    $region99: #{backbone_forward.1} parent=1 // pred_check_branch
      %80 = sbr.rel (0) target = $region101
    $region100: #{backbone_forward.1} parent=1 // pred_region
      _
    $region101: #{backbone_forward.1} parent=1 // pred_fallthru
      _
    %v82 = vld [vmem:[%s0] sm:$0xf]
    %v83 = vld [vmem:[%s0 + $0x4] sm:$0xf]
    %v84 = vld [vmem:[%s0 + $0x8] sm:$0xf]
    %v85 = vld [vmem:[%s0 + $0xc] sm:$0xf]
    %v86 = vld [vmem:[%s0 + $0x10] sm:$0xf]
    %v87 = vld [vmem:[%s0 + $0x14] sm:$0xf]
    %v88 = vld [vmem:[%s0 + $0x18] sm:$0xf]
    %v89 = vld [vmem:[%s0 + $0x1c] sm:$0xf]
    %v90 = vld [vmem:[%s0 + $0x20] sm:$0xf]
    %v91 = vld [vmem:[%s0 + $0x24] sm:$0xf]
    %v92 = vld [vmem:[%s0 + $0x28] sm:$0xf]
    %v93 = vld [vmem:[%s0 + $0x2c] sm:$0xf]
    %v94 = vld [vmem:[%s0 + $0x30] sm:$0xf]
    %v95 = vld [vmem:[%s0 + $0x34] sm:$0xf]
    %v96 = vld [vmem:[%s0 + $0x38] sm:$0xf]
    %v97 = vld [vmem:[%s0 + $0x3c] sm:$0xf]
    %v98 = vld [vmem:[%s2] sm:$0xf]
    %v99 = vld [vmem:[%s2 + $0x4] sm:$0xf]
    %v100 = vld [vmem:[%s2 + $0x8] sm:$0xf]
    %v101 = vld [vmem:[%s2 + $0xc] sm:$0xf]
    %v102 = vld [vmem:[%s3] sm:$0x1]
    %v104 = vlaneseq
    %v105 = vshrl.u32 %v104, 7
    %v106 = vsub.s32 0, %v105
    %v107 = vrot.slane %v102, %v106
    %v125 = vunpack.c.l.b16 %v82
    %v126 = vunpack.c.l.b16 %v83
    %v127 = vunpack.c.l.b16 %v84
    %v128 = vunpack.c.l.b16 %v85
    %v129 = vunpack.c.l.b16 %v86
    %v130 = vunpack.c.l.b16 %v87
    %v131 = vunpack.c.l.b16 %v88
    %v132 = vunpack.c.l.b16 %v89
    %v133 = vunpack.c.l.b16 %v90
    %v134 = vunpack.c.l.b16 %v91
    %v135 = vunpack.c.l.b16 %v92
    %v136 = vunpack.c.l.b16 %v93
    %v137 = vunpack.c.l.b16 %v94
    %v138 = vunpack.c.l.b16 %v95
    %v139 = vunpack.c.l.b16 %v96
    %v140 = vunpack.c.l.b16 %v97
    %v141 = vpack.c.b16 %v126, %v125
    %v142 = vpack.c.b16 %v128, %v127
    %v143 = vpack.c.b16 %v130, %v129
    %v144 = vpack.c.b16 %v132, %v131
    %v145 = vpack.c.b16 %v134, %v133
    %v146 = vpack.c.b16 %v136, %v135
    %v147 = vpack.c.b16 %v138, %v137
    %v148 = vpack.c.b16 %v140, %v139
    %v153 = vunpack.c.l.b16 %v98
    %v154 = vunpack.c.l.b16 %v99
    %v155 = vunpack.c.l.b16 %v100
    %v156 = vunpack.c.l.b16 %v101
    %v157 = vpack.c.b16 %v154, %v153
    %v158 = vpack.c.b16 %v156, %v155
    %vm161 = vcmask 261120
    %v163 = vsel %vm161, %v141, 0
    %v166 = vsel %vm161, %v142, 0
    %v169 = vsel %vm161, %v143, 0
    %v172 = vsel %vm161, %v144, 0
    %v175 = vsel %vm161, %v145, 0
    %v178 = vsel %vm161, %v146, 0
    %v181 = vsel %vm161, %v147, 0
    %v184 = vsel %vm161, %v148, 0
    %186 = vmatprep.subr.bf16.mxu0 0
    %187 = vmatpush1.bf16.msra.mxu0 %v157
    %188 = vmatprep.subr.bf16.mxu0 0
    %189 = vmatpush1.bf16.msra.mxu0 %v158
    %190 = vmatprep.subr.bf16.mxu0 0
    %191 = vmatpush1.bf16.msra.mxu0 0
    %192 = vmatprep.subr.bf16.mxu0 0
    %193 = vmatpush1.bf16.msra.mxu0 0
    %194 = vmatprep.subr.bf16.mxu0 0
    %195 = vmatpush1.bf16.msra.mxu0 0
    %196 = vmatprep.subr.bf16.mxu0 0
    %197 = vmatpush1.bf16.msra.mxu0 0
    %198 = vmatprep.subr.bf16.mxu0 0
    %199 = vmatpush1.bf16.msra.mxu0 0
    %200 = vmatprep.subr.bf16.mxu0 0
    %201 = vmatpush1.bf16.msra.mxu0 0
    %202 = vmatprep.subr.bf16.mxu0 0
    %203 = vmatpush1.bf16.msra.mxu0 0
    %204 = vmatprep.subr.bf16.mxu0 0
    %205 = vmatpush1.bf16.msra.mxu0 0
    %206 = vmatprep.subr.bf16.mxu0 0
    %207 = vmatpush1.bf16.msra.mxu0 0
    %208 = vmatprep.subr.bf16.mxu0 0
    %209 = vmatpush1.bf16.msra.mxu0 0
    %210 = vmatprep.subr.bf16.mxu0 0
    %211 = vmatpush1.bf16.msra.mxu0 0
    %212 = vmatprep.subr.bf16.mxu0 0
    %213 = vmatpush1.bf16.msra.mxu0 0
    %214 = vmatprep.subr.bf16.mxu0 0
    %215 = vmatpush1.bf16.msra.mxu0 0
    %216 = vmatprep.subr.bf16.mxu0 0
    %217 = vmatpush1.bf16.msra.mxu0 0
    %218 = vmatprep.mubr.bf16.mxu0 0
    %219 = vmatmul.mubr.bf16.gmra.mrb[0].mxu0 %v163
    %v220 = vpop.f32.mrb[0].mxu0
    %v221 = vadd.f32 %v107, %v220
    %v222 = vpop.f32.mrb[0].mxu0
    %v223 = vpop.f32.mrb[0].mxu0
    %v224 = vadd.f32 %v107, %v223
    %v225 = vpop.f32.mrb[0].mxu0
    %226 = vmatprep.mubr.bf16.mxu0 0
    %227 = vmatmul.mubr.bf16.gmra.mrb[0].mxu0 %v166
    %v228 = vpop.f32.mrb[0].mxu0
    %v229 = vadd.f32 %v107, %v228
    %v230 = vpop.f32.mrb[0].mxu0
    %v231 = vpop.f32.mrb[0].mxu0
    %v232 = vadd.f32 %v107, %v231
    %v233 = vpop.f32.mrb[0].mxu0
    %234 = vmatprep.mubr.bf16.mxu0 0
    %235 = vmatmul.mubr.bf16.gmra.mrb[0].mxu0 %v169
    %v236 = vpop.f32.mrb[0].mxu0
    %v237 = vadd.f32 %v107, %v236
    %v238 = vpop.f32.mrb[0].mxu0
    %v239 = vpop.f32.mrb[0].mxu0
    %v240 = vadd.f32 %v107, %v239
    %v241 = vpop.f32.mrb[0].mxu0
    %242 = vmatprep.mubr.bf16.mxu0 0
    %243 = vmatmul.mubr.bf16.gmra.mrb[0].mxu0 %v172
    %v244 = vpop.f32.mrb[0].mxu0
    %v245 = vadd.f32 %v107, %v244
    %v246 = vpop.f32.mrb[0].mxu0
    %v247 = vpop.f32.mrb[0].mxu0
    %v248 = vadd.f32 %v107, %v247
    %v249 = vpop.f32.mrb[0].mxu0
    %250 = vmatprep.mubr.bf16.mxu0 0
    %251 = vmatmul.mubr.bf16.gmra.mrb[0].mxu0 %v175
    %v252 = vpop.f32.mrb[0].mxu0
    %v253 = vadd.f32 %v107, %v252
    %v254 = vpop.f32.mrb[0].mxu0
    %v255 = vpop.f32.mrb[0].mxu0
    %v256 = vadd.f32 %v107, %v255
    %v257 = vpop.f32.mrb[0].mxu0
    %258 = vmatprep.mubr.bf16.mxu0 0
    %259 = vmatmul.mubr.bf16.gmra.mrb[0].mxu0 %v178
    %v260 = vpop.f32.mrb[0].mxu0
    %v261 = vadd.f32 %v107, %v260
    %v262 = vpop.f32.mrb[0].mxu0
    %v263 = vpop.f32.mrb[0].mxu0
    %v264 = vadd.f32 %v107, %v263
    %v265 = vpop.f32.mrb[0].mxu0
    %266 = vmatprep.mubr.bf16.mxu0 0
    %267 = vmatmul.mubr.bf16.gmra.mrb[0].mxu0 %v181
    %v268 = vpop.f32.mrb[0].mxu0
    %v269 = vadd.f32 %v107, %v268
    %v270 = vpop.f32.mrb[0].mxu0
    %v271 = vpop.f32.mrb[0].mxu0
    %v272 = vadd.f32 %v107, %v271
    %v273 = vpop.f32.mrb[0].mxu0
    %274 = vmatprep.mubr.bf16.mxu0 0
    %275 = vmatmul.mubr.bf16.gmra.mrb[0].mxu0 %v184
    %v276 = vpop.f32.mrb[0].mxu0
    %v277 = vadd.f32 %v107, %v276
    %v278 = vpop.f32.mrb[0].mxu0
    %v279 = vpop.f32.mrb[0].mxu0
    %v280 = vadd.f32 %v107, %v279
    %v281 = vpop.f32.mrb[0].mxu0
    %282 = vdwg.mxu0
    %v283 = vmax.f32 %v221, 0.0
    %v284 = vmax.f32 %v224, 0.0
    %v285 = vmax.f32 %v229, 0.0
    %v286 = vmax.f32 %v232, 0.0
    %v287 = vmax.f32 %v237, 0.0
    %v288 = vmax.f32 %v240, 0.0
    %v289 = vmax.f32 %v245, 0.0
    %v290 = vmax.f32 %v248, 0.0
    %v291 = vmax.f32 %v253, 0.0
    %v292 = vmax.f32 %v256, 0.0
    %v293 = vmax.f32 %v261, 0.0
    %v294 = vmax.f32 %v264, 0.0
    %v295 = vmax.f32 %v269, 0.0
    %v296 = vmax.f32 %v272, 0.0
    %v297 = vmax.f32 %v277, 0.0
    %v298 = vmax.f32 %v280, 0.0
    %v299 = vld [vmem:[%s1] sm:$0xff]
    %v300 = vld [vmem:[%s1 + $0x8] sm:$0xff]
    %v301 = vld [vmem:[%s1 + $0x10] sm:$0xff]
    %v302 = vld [vmem:[%s1 + $0x18] sm:$0xff]
    %v303 = vld [vmem:[%s1 + $0x20] sm:$0xff]
    %v304 = vld [vmem:[%s1 + $0x28] sm:$0xff]
    %v305 = vld [vmem:[%s1 + $0x30] sm:$0xff]
    %v306 = vld [vmem:[%s1 + $0x38] sm:$0xff]
    %v307 = vadd.f32 %v283, %v299
    %v308 = vadd.f32 %v284, %v300
    %v309 = vadd.f32 %v285, %v301
    %v310 = vadd.f32 %v286, %v302
    %v311 = vadd.f32 %v287, %v303
    %v312 = vadd.f32 %v288, %v304
    %v313 = vadd.f32 %v289, %v305
    %v314 = vadd.f32 %v290, %v306
    %v315 = vadd.f32 %v291, %v299
    %v316 = vadd.f32 %v292, %v300
    %v317 = vadd.f32 %v293, %v301
    %v318 = vadd.f32 %v294, %v302
    %v319 = vadd.f32 %v295, %v303
    %v320 = vadd.f32 %v296, %v304
    %v321 = vadd.f32 %v297, %v305
    %v322 = vadd.f32 %v298, %v306
    %v323 = vpack.c.bf16 %v308, %v307
    %v324 = vpack.c.bf16 %v310, %v309
    %v325 = vpack.c.bf16 %v312, %v311
    %v326 = vpack.c.bf16 %v314, %v313
    %v327 = vpack.c.bf16 %v316, %v315
    %v328 = vpack.c.bf16 %v318, %v317
    %v329 = vpack.c.bf16 %v320, %v319
    %v330 = vpack.c.bf16 %v322, %v321
    %v331 = vld [vmem:[%s4] sm:$0xf]
    %v332 = vld [vmem:[%s4 + $0x4] sm:$0xf]
    %v333 = vld [vmem:[%s4 + $0x8] sm:$0xf]
    %v334 = vld [vmem:[%s4 + $0xc] sm:$0xf]
    %v335 = vld [vmem:[%s4 + $0x10] sm:$0xf]
    %v336 = vld [vmem:[%s4 + $0x14] sm:$0xf]
    %v337 = vld [vmem:[%s4 + $0x18] sm:$0xf]
    %v338 = vld [vmem:[%s4 + $0x1c] sm:$0xf]
    %v339 = vld [vmem:[%s5] sm:$0x1]
    %v341 = vlaneseq
    %v342 = vshrl.u32 %v341, 7
    %v343 = vsub.s32 0, %v342
    %v344 = vrot.slane %v339, %v343
    %v354 = vunpack.c.l.b16 %v331
    %v355 = vunpack.c.l.b16 %v332
    %v356 = vunpack.c.l.b16 %v333
    %v357 = vunpack.c.l.b16 %v334
    %v358 = vunpack.c.l.b16 %v335
    %v359 = vunpack.c.l.b16 %v336
    %v360 = vunpack.c.l.b16 %v337
    %v361 = vunpack.c.l.b16 %v338
    %v362 = vpack.c.b16 %v355, %v354
    %v363 = vpack.c.b16 %v357, %v356
    %v364 = vpack.c.b16 %v359, %v358
    %v365 = vpack.c.b16 %v361, %v360
    %vm370 = vcmask 523264
    %v372 = vsel %vm370, %v323, 0
    %v375 = vsel %vm370, %v324, 0
    %v378 = vsel %vm370, %v325, 0
    %v381 = vsel %vm370, %v326, 0
    %v384 = vsel %vm370, %v327, 0
    %v387 = vsel %vm370, %v328, 0
    %v390 = vsel %vm370, %v329, 0
    %v393 = vsel %vm370, %v330, 0
    %395 = vmatprep.subr.bf16.mxu0 0
    %396 = vmatpush1.bf16.msra.mxu0 %v362
    %397 = vmatprep.subr.bf16.mxu0 0
    %398 = vmatpush1.bf16.msra.mxu0 %v363
    %399 = vmatprep.subr.bf16.mxu0 0
    %400 = vmatpush1.bf16.msra.mxu0 %v364
    %401 = vmatprep.subr.bf16.mxu0 0
    %402 = vmatpush1.bf16.msra.mxu0 %v365
    %403 = vmatprep.subr.bf16.mxu0 0
    %404 = vmatpush1.bf16.msra.mxu0 0
    %405 = vmatprep.subr.bf16.mxu0 0
    %406 = vmatpush1.bf16.msra.mxu0 0
    %407 = vmatprep.subr.bf16.mxu0 0
    %408 = vmatpush1.bf16.msra.mxu0 0
    %409 = vmatprep.subr.bf16.mxu0 0
    %410 = vmatpush1.bf16.msra.mxu0 0
    %411 = vmatprep.subr.bf16.mxu0 0
    %412 = vmatpush1.bf16.msra.mxu0 0
    %413 = vmatprep.subr.bf16.mxu0 0
    %414 = vmatpush1.bf16.msra.mxu0 0
    %415 = vmatprep.subr.bf16.mxu0 0
    %416 = vmatpush1.bf16.msra.mxu0 0
    %417 = vmatprep.subr.bf16.mxu0 0
    %418 = vmatpush1.bf16.msra.mxu0 0
    %419 = vmatprep.subr.bf16.mxu0 0
    %420 = vmatpush1.bf16.msra.mxu0 0
    %421 = vmatprep.subr.bf16.mxu0 0
    %422 = vmatpush1.bf16.msra.mxu0 0
    %423 = vmatprep.subr.bf16.mxu0 0
    %424 = vmatpush1.bf16.msra.mxu0 0
    %425 = vmatprep.subr.bf16.mxu0 0
    %426 = vmatpush1.bf16.msra.mxu0 0
    %427 = vmatprep.mubr.bf16.mxu0 0
    %428 = vmatmul.mubr.bf16.gmra.mrb[0].mxu0 %v372
    %v429 = vpop.f32.mrb[0].mxu0
    %v430 = vadd.f32 %v344, %v429
    %v431 = vpop.f32.mrb[0].mxu0
    %v432 = vpop.f32.mrb[0].mxu0
    %v433 = vadd.f32 %v344, %v432
    %v434 = vpop.f32.mrb[0].mxu0
    %435 = vmatprep.mubr.bf16.mxu0 0
    %436 = vmatmul.mubr.bf16.gmra.mrb[0].mxu0 %v375
    %v437 = vpop.f32.mrb[0].mxu0
    %v438 = vadd.f32 %v344, %v437
    %v439 = vpop.f32.mrb[0].mxu0
    %v440 = vpop.f32.mrb[0].mxu0
    %v441 = vadd.f32 %v344, %v440
    %v442 = vpop.f32.mrb[0].mxu0
    %443 = vmatprep.mubr.bf16.mxu0 0
    %444 = vmatmul.mubr.bf16.gmra.mrb[0].mxu0 %v378
    %v445 = vpop.f32.mrb[0].mxu0
    %v446 = vadd.f32 %v344, %v445
    %v447 = vpop.f32.mrb[0].mxu0
    %v448 = vpop.f32.mrb[0].mxu0
    %v449 = vadd.f32 %v344, %v448
    %v450 = vpop.f32.mrb[0].mxu0
    %451 = vmatprep.mubr.bf16.mxu0 0
    %452 = vmatmul.mubr.bf16.gmra.mrb[0].mxu0 %v381
    %v453 = vpop.f32.mrb[0].mxu0
    %v454 = vadd.f32 %v344, %v453
    %v455 = vpop.f32.mrb[0].mxu0
    %v456 = vpop.f32.mrb[0].mxu0
    %v457 = vadd.f32 %v344, %v456
    %v458 = vpop.f32.mrb[0].mxu0
    %459 = vmatprep.mubr.bf16.mxu0 0
    %460 = vmatmul.mubr.bf16.gmra.mrb[0].mxu0 %v384
    %v461 = vpop.f32.mrb[0].mxu0
    %v462 = vadd.f32 %v344, %v461
    %v463 = vpop.f32.mrb[0].mxu0
    %v464 = vpop.f32.mrb[0].mxu0
    %v465 = vadd.f32 %v344, %v464
    %v466 = vpop.f32.mrb[0].mxu0
    %467 = vmatprep.mubr.bf16.mxu0 0
    %468 = vmatmul.mubr.bf16.gmra.mrb[0].mxu0 %v387
    %v469 = vpop.f32.mrb[0].mxu0
    %v470 = vadd.f32 %v344, %v469
    %v471 = vpop.f32.mrb[0].mxu0
    %v472 = vpop.f32.mrb[0].mxu0
    %v473 = vadd.f32 %v344, %v472
    %v474 = vpop.f32.mrb[0].mxu0
    %475 = vmatprep.mubr.bf16.mxu0 0
    %476 = vmatmul.mubr.bf16.gmra.mrb[0].mxu0 %v390
    %v477 = vpop.f32.mrb[0].mxu0
    %v478 = vadd.f32 %v344, %v477
    %v479 = vpop.f32.mrb[0].mxu0
    %v480 = vpop.f32.mrb[0].mxu0
    %v481 = vadd.f32 %v344, %v480
    %v482 = vpop.f32.mrb[0].mxu0
    %483 = vmatprep.mubr.bf16.mxu0 0
    %484 = vmatmul.mubr.bf16.gmra.mrb[0].mxu0 %v393
    %v485 = vpop.f32.mrb[0].mxu0
    %v486 = vadd.f32 %v344, %v485
    %v487 = vpop.f32.mrb[0].mxu0
    %v488 = vpop.f32.mrb[0].mxu0
    %v489 = vadd.f32 %v344, %v488
    %v490 = vpop.f32.mrb[0].mxu0
    %491 = vdwg.mxu0
    %v492 = vmax.f32 %v430, 0.0
    %v493 = vmax.f32 %v433, 0.0
    %v494 = vmax.f32 %v438, 0.0
    %v495 = vmax.f32 %v441, 0.0
    %v496 = vmax.f32 %v446, 0.0
    %v497 = vmax.f32 %v449, 0.0
    %v498 = vmax.f32 %v454, 0.0
    %v499 = vmax.f32 %v457, 0.0
    %v500 = vmax.f32 %v462, 0.0
    %v501 = vmax.f32 %v465, 0.0
    %v502 = vmax.f32 %v470, 0.0
    %v503 = vmax.f32 %v473, 0.0
    %v504 = vmax.f32 %v478, 0.0
    %v505 = vmax.f32 %v481, 0.0
    %v506 = vmax.f32 %v486, 0.0
    %v507 = vmax.f32 %v489, 0.0
    %v508 = vpack.c.bf16 %v493, %v492
    %v509 = vpack.c.bf16 %v495, %v494
    %v510 = vpack.c.bf16 %v497, %v496
    %v511 = vpack.c.bf16 %v499, %v498
    %v512 = vpack.c.bf16 %v501, %v500
    %v513 = vpack.c.bf16 %v503, %v502
    %v514 = vpack.c.bf16 %v505, %v504
    %v515 = vpack.c.bf16 %v507, %v506
    %v516 = vld [vmem:[%s6] sm:$0xff]
    %v517 = vld [vmem:[%s6 + $0x8] sm:$0xff]
    %v518 = vld [vmem:[%s6 + $0x10] sm:$0xff]
    %v519 = vld [vmem:[%s6 + $0x18] sm:$0xff]
    %v520 = vld [vmem:[%s6 + $0x20] sm:$0xff]
    %v521 = vmul.f32 %v516, 2.0
    %v522 = vmul.f32 %v517, 2.0
    %v523 = vmul.f32 %v518, 2.0
    %v524 = vmul.f32 %v519, 2.0
    %v525 = vmul.f32 %v520, 2.0
    %v526 = vld [vmem:[%s7] sm:$0x1]
    %v527 = vld [vmem:[%s8] sm:$0x1]
    %v528 = vsel %vm370, %v521, 0.0
    %529 = vadd.xlane.f32.xlu0 %v528
    %v530 = vpop.xlane.xlu0 %529
    %v531 = vsel %vm370, %v522, 0.0
    %532 = vadd.xlane.f32.xlu0 %v531
    %v533 = vpop.xlane.xlu0 %532
    %v534 = vsel %vm370, %v523, 0.0
    %535 = vadd.xlane.f32.xlu0 %v534
    %v536 = vpop.xlane.xlu0 %535
    %v537 = vsel %vm370, %v524, 0.0
    %538 = vadd.xlane.f32.xlu0 %v537
    %v539 = vpop.xlane.xlu0 %538
    %v540 = vsel %vm370, %v525, 0.0
    %541 = vadd.xlane.f32.xlu0 %v540
    %v542 = vpop.xlane.xlu0 %541
    %v543 = vrcp.pop 64.0
    %v544 = vmul.f32 %v530, %v543
    %v545 = vmul.f32 %v533, %v543
    %v546 = vmul.f32 %v536, %v543
    %v547 = vmul.f32 %v539, %v543
    %v548 = vmul.f32 %v542, %v543
    %v549 = vsub.f32 %v521, %v544
    %v550 = vsub.f32 %v522, %v545
    %v551 = vsub.f32 %v523, %v546
    %v552 = vsub.f32 %v524, %v547
    %v553 = vsub.f32 %v525, %v548
    %v554 = vmul.f32 %v549, %v549
    %v555 = vmul.f32 %v550, %v550
    %v556 = vmul.f32 %v551, %v551
    %v557 = vmul.f32 %v552, %v552
    %v558 = vmul.f32 %v553, %v553
    %v559 = vsel %vm370, %v554, 0.0
    %560 = vadd.xlane.f32.xlu0 %v559
    %v561 = vpop.xlane.xlu0 %560
    %v562 = vsel %vm370, %v555, 0.0
    %563 = vadd.xlane.f32.xlu0 %v562
    %v564 = vpop.xlane.xlu0 %563
    %v565 = vsel %vm370, %v556, 0.0
    %566 = vadd.xlane.f32.xlu0 %v565
    %v567 = vpop.xlane.xlu0 %566
    %v568 = vsel %vm370, %v557, 0.0
    %569 = vadd.xlane.f32.xlu0 %v568
    %v570 = vpop.xlane.xlu0 %569
    %v571 = vsel %vm370, %v558, 0.0
    %572 = vadd.xlane.f32.xlu0 %v571
    %v573 = vpop.xlane.xlu0 %572
    %v574 = vmul.f32 %v561, %v543
    %v575 = vmul.f32 %v564, %v543
    %v576 = vmul.f32 %v567, %v543
    %v577 = vmul.f32 %v570, %v543
    %v578 = vmul.f32 %v573, %v543
    %v579 = vadd.f32 %v574, 1e-05
    %v580 = vadd.f32 %v575, 1e-05
    %v581 = vadd.f32 %v576, 1e-05
    %v582 = vadd.f32 %v577, 1e-05
    %v583 = vadd.f32 %v578, 1e-05
    %v584 = vrsqrt.pop %v579
    %v585 = vrsqrt.pop %v580
    %v586 = vrsqrt.pop %v581
    %v587 = vrsqrt.pop %v582
    %v588 = vrsqrt.pop %v583
    %v589 = vmul.f32 %v549, %v584
    %v590 = vmul.f32 %v550, %v585
    %v591 = vmul.f32 %v551, %v586
    %v592 = vmul.f32 %v552, %v587
    %v593 = vmul.f32 %v553, %v588
    %v595 = vlaneseq
    %v596 = vshrl.u32 %v595, 7
    %v597 = vsub.s32 0, %v596
    %v598 = vrot.slane %v526, %v597
    %v600 = vmul.f32 %v589, %v598
    %v601 = vmul.f32 %v590, %v598
    %v602 = vmul.f32 %v591, %v598
    %v603 = vmul.f32 %v592, %v598
    %v604 = vmul.f32 %v593, %v598
    %v606 = vlaneseq
    %v607 = vshrl.u32 %v606, 7
    %v608 = vsub.s32 0, %v607
    %v609 = vrot.slane %v527, %v608
    %v611 = vadd.f32 %v600, %v609
    %v612 = vadd.f32 %v601, %v609
    %v613 = vadd.f32 %v602, %v609
    %v614 = vadd.f32 %v603, %v609
    %v615 = vadd.f32 %v604, %v609
    %v616 = vpack.c.bf16 %v612, %v611
    %v617 = vpack.c.bf16 %v614, %v613
    %v618 = vpack.c.bf16 %v615, %v615
    %v619 = vld [vmem:[%s9] sm:$0xf]
    %v620 = vld [vmem:[%s9 + $0x4] sm:$0xf]
    %v621 = vld [vmem:[%s9 + $0x8] sm:$0xf]
    %v622 = vld [vmem:[%s9 + $0xc] sm:$0xf]
    %v623 = vld [vmem:[%s9 + $0x10] sm:$0xf]
    %v624 = vld [vmem:[%s9 + $0x14] sm:$0xf]
    %v625 = vld [vmem:[%s9 + $0x18] sm:$0xf]
    %v626 = vld [vmem:[%s9 + $0x1c] sm:$0xf]
    %v627 = vld [vmem:[%s11] sm:$0x1]
    %v629 = vlaneseq
    %v630 = vshrl.u32 %v629, 7
    %v631 = vsub.s32 0, %v630
    %v632 = vrot.slane %v627, %v631
    %v642 = vunpack.c.l.b16 %v619
    %v643 = vunpack.c.l.b16 %v620
    %v644 = vunpack.c.l.b16 %v621
    %v645 = vunpack.c.l.b16 %v622
    %v646 = vunpack.c.l.b16 %v623
    %v647 = vunpack.c.l.b16 %v624
    %v648 = vunpack.c.l.b16 %v625
    %v649 = vunpack.c.l.b16 %v626
    %v650 = vpack.c.b16 %v643, %v642
    %v651 = vpack.c.b16 %v645, %v644
    %v652 = vpack.c.b16 %v647, %v646
    %v653 = vpack.c.b16 %v649, %v648
    %v659 = vsel %vm370, %v616, 0
    %v662 = vsel %vm370, %v617, 0
    %v665 = vsel %vm370, %v618, 0
    %667 = vmatprep.subr.bf16.mxu0 0
    %668 = vmatpush1.bf16.msra.mxu0 %v650
    %669 = vmatprep.subr.bf16.mxu0 0
    %670 = vmatpush1.bf16.msra.mxu0 %v651
    %671 = vmatprep.subr.bf16.mxu0 0
    %672 = vmatpush1.bf16.msra.mxu0 %v652
    %673 = vmatprep.subr.bf16.mxu0 0
    %674 = vmatpush1.bf16.msra.mxu0 %v653
    %675 = vmatprep.subr.bf16.mxu0 0
    %676 = vmatpush1.bf16.msra.mxu0 0
    %677 = vmatprep.subr.bf16.mxu0 0
    %678 = vmatpush1.bf16.msra.mxu0 0
    %679 = vmatprep.subr.bf16.mxu0 0
    %680 = vmatpush1.bf16.msra.mxu0 0
    %681 = vmatprep.subr.bf16.mxu0 0
    %682 = vmatpush1.bf16.msra.mxu0 0
    %683 = vmatprep.subr.bf16.mxu0 0
    %684 = vmatpush1.bf16.msra.mxu0 0
    %685 = vmatprep.subr.bf16.mxu0 0
    %686 = vmatpush1.bf16.msra.mxu0 0
    %687 = vmatprep.subr.bf16.mxu0 0
    %688 = vmatpush1.bf16.msra.mxu0 0
    %689 = vmatprep.subr.bf16.mxu0 0
    %690 = vmatpush1.bf16.msra.mxu0 0
    %691 = vmatprep.subr.bf16.mxu0 0
    %692 = vmatpush1.bf16.msra.mxu0 0
    %693 = vmatprep.subr.bf16.mxu0 0
    %694 = vmatpush1.bf16.msra.mxu0 0
    %695 = vmatprep.subr.bf16.mxu0 0
    %696 = vmatpush1.bf16.msra.mxu0 0
    %697 = vmatprep.subr.bf16.mxu0 0
    %698 = vmatpush1.bf16.msra.mxu0 0
    %699 = vmatprep.mubr.bf16.mxu0 0
    %700 = vmatmul.mubr.bf16.gmra.mrb[0].mxu0 %v659
    %v701 = vpop.f32.mrb[0].mxu0
    %v702 = vadd.f32 %v632, %v701
    %v703 = vpop.f32.mrb[0].mxu0
    %v704 = vpop.f32.mrb[0].mxu0
    %v705 = vadd.f32 %v632, %v704
    %v706 = vpop.f32.mrb[0].mxu0
    %707 = vmatprep.mubr.bf16.mxu0 0
    %708 = vmatmul.mubr.bf16.gmra.mrb[0].mxu0 %v662
    %v709 = vpop.f32.mrb[0].mxu0
    %v710 = vadd.f32 %v632, %v709
    %v711 = vpop.f32.mrb[0].mxu0
    %v712 = vpop.f32.mrb[0].mxu0
    %v713 = vadd.f32 %v632, %v712
    %v714 = vpop.f32.mrb[0].mxu0
    %715 = vmatprep.mubr.bf16.mxu0 0
    %716 = vmatmul.mubr.bf16.gmra.mrb[0].mxu0 %v665
    %v717 = vpop.f32.mrb[0].mxu0
    %v718 = vadd.f32 %v632, %v717
    %v719 = vpop.f32.mrb[0].mxu0
    %v720 = vpop.f32.mrb[0].mxu0
    %v721 = vpop.f32.mrb[0].mxu0
    %722 = vdwg.mxu0
    %v723 = vmul.f32 %v702, 0.35355338
    %v724 = vmul.f32 %v705, 0.35355338
    %v725 = vmul.f32 %v710, 0.35355338
    %v726 = vmul.f32 %v713, 0.35355338
    %v727 = vmul.f32 %v718, 0.35355338
    %v728 = vpack.c.bf16 %v724, %v723
    %v729 = vpack.c.bf16 %v726, %v725
    %v730 = vpack.c.bf16 %v727, %v727
    %v731 = vld [vmem:[%s10] sm:$0xf]
    %v732 = vld [vmem:[%s10 + $0x4] sm:$0xf]
    %v733 = vld [vmem:[%s10 + $0x8] sm:$0xf]
    %v734 = vld [vmem:[%s10 + $0xc] sm:$0xf]
    %v735 = vld [vmem:[%s10 + $0x10] sm:$0xf]
    %v736 = vld [vmem:[%s10 + $0x14] sm:$0xf]
    %v737 = vld [vmem:[%s10 + $0x18] sm:$0xf]
    %v738 = vld [vmem:[%s10 + $0x1c] sm:$0xf]
    %v739 = vld [vmem:[%s12] sm:$0x1]
    %v741 = vlaneseq
    %v742 = vshrl.u32 %v741, 7
    %v743 = vsub.s32 0, %v742
    %v744 = vrot.slane %v739, %v743
    %v754 = vunpack.c.l.b16 %v731
    %v755 = vunpack.c.l.b16 %v732
    %v756 = vunpack.c.l.b16 %v733
    %v757 = vunpack.c.l.b16 %v734
    %v758 = vunpack.c.l.b16 %v735
    %v759 = vunpack.c.l.b16 %v736
    %v760 = vunpack.c.l.b16 %v737
    %v761 = vunpack.c.l.b16 %v738
    %v762 = vpack.c.b16 %v755, %v754
    %v763 = vpack.c.b16 %v757, %v756
    %v764 = vpack.c.b16 %v759, %v758
    %v765 = vpack.c.b16 %v761, %v760
    %v771 = vsel %vm370, %v508, 0
    %v774 = vsel %vm370, %v509, 0
    %v777 = vsel %vm370, %v510, 0
    %v780 = vsel %vm370, %v511, 0
    %v783 = vsel %vm370, %v512, 0
    %v786 = vsel %vm370, %v513, 0
    %v789 = vsel %vm370, %v514, 0
    %v792 = vsel %vm370, %v515, 0
    %794 = vmatprep.subr.bf16.mxu0 0
    %795 = vmatpush1.bf16.msra.mxu0 %v762
    %796 = vmatprep.subr.bf16.mxu0 0
    %797 = vmatpush1.bf16.msra.mxu0 %v763
    %798 = vmatprep.subr.bf16.mxu0 0
    %799 = vmatpush1.bf16.msra.mxu0 %v764
    %800 = vmatprep.subr.bf16.mxu0 0
    %801 = vmatpush1.bf16.msra.mxu0 %v765
    %802 = vmatprep.subr.bf16.mxu0 0
    %803 = vmatpush1.bf16.msra.mxu0 0
    %804 = vmatprep.subr.bf16.mxu0 0
    %805 = vmatpush1.bf16.msra.mxu0 0
    %806 = vmatprep.subr.bf16.mxu0 0
    %807 = vmatpush1.bf16.msra.mxu0 0
    %808 = vmatprep.subr.bf16.mxu0 0
    %809 = vmatpush1.bf16.msra.mxu0 0
    %810 = vmatprep.subr.bf16.mxu0 0
    %811 = vmatpush1.bf16.msra.mxu0 0
    %812 = vmatprep.subr.bf16.mxu0 0
    %813 = vmatpush1.bf16.msra.mxu0 0
    %814 = vmatprep.subr.bf16.mxu0 0
    %815 = vmatpush1.bf16.msra.mxu0 0
    %816 = vmatprep.subr.bf16.mxu0 0
    %817 = vmatpush1.bf16.msra.mxu0 0
    %818 = vmatprep.subr.bf16.mxu0 0
    %819 = vmatpush1.bf16.msra.mxu0 0
    %820 = vmatprep.subr.bf16.mxu0 0
    %821 = vmatpush1.bf16.msra.mxu0 0
    %822 = vmatprep.subr.bf16.mxu0 0
    %823 = vmatpush1.bf16.msra.mxu0 0
    %824 = vmatprep.subr.bf16.mxu0 0
    %825 = vmatpush1.bf16.msra.mxu0 0
    %826 = vmatprep.mubr.bf16.mxu0 0
    %827 = vmatmul.mubr.bf16.gmra.mrb[0].mxu0 %v771
    %v828 = vpop.f32.mrb[0].mxu0
    %v829 = vadd.f32 %v744, %v828
    %v830 = vpop.f32.mrb[0].mxu0
    %v831 = vpop.f32.mrb[0].mxu0
    %v832 = vadd.f32 %v744, %v831
    %v833 = vpop.f32.mrb[0].mxu0
    %834 = vmatprep.mubr.bf16.mxu0 0
    %835 = vmatmul.mubr.bf16.gmra.mrb[0].mxu0 %v774
    %v836 = vpop.f32.mrb[0].mxu0
    %v837 = vadd.f32 %v744, %v836
    %v838 = vpop.f32.mrb[0].mxu0
    %v839 = vpop.f32.mrb[0].mxu0
    %v840 = vadd.f32 %v744, %v839
    %v841 = vpop.f32.mrb[0].mxu0
    %842 = vmatprep.mubr.bf16.mxu0 0
    %843 = vmatmul.mubr.bf16.gmra.mrb[0].mxu0 %v777
    %v844 = vpop.f32.mrb[0].mxu0
    %v845 = vadd.f32 %v744, %v844
    %v846 = vpop.f32.mrb[0].mxu0
    %v847 = vpop.f32.mrb[0].mxu0
    %v848 = vadd.f32 %v744, %v847
    %v849 = vpop.f32.mrb[0].mxu0
    %850 = vmatprep.mubr.bf16.mxu0 0
    %851 = vmatmul.mubr.bf16.gmra.mrb[0].mxu0 %v780
    %v852 = vpop.f32.mrb[0].mxu0
    %v853 = vadd.f32 %v744, %v852
    %v854 = vpop.f32.mrb[0].mxu0
    %v855 = vpop.f32.mrb[0].mxu0
    %v856 = vadd.f32 %v744, %v855
    %v857 = vpop.f32.mrb[0].mxu0
    %858 = vmatprep.mubr.bf16.mxu0 0
    %859 = vmatmul.mubr.bf16.gmra.mrb[0].mxu0 %v783
    %v860 = vpop.f32.mrb[0].mxu0
    %v861 = vadd.f32 %v744, %v860
    %v862 = vpop.f32.mrb[0].mxu0
    %v863 = vpop.f32.mrb[0].mxu0
    %v864 = vadd.f32 %v744, %v863
    %v865 = vpop.f32.mrb[0].mxu0
    %866 = vmatprep.mubr.bf16.mxu0 0
    %867 = vmatmul.mubr.bf16.gmra.mrb[0].mxu0 %v786
    %v868 = vpop.f32.mrb[0].mxu0
    %v869 = vadd.f32 %v744, %v868
    %v870 = vpop.f32.mrb[0].mxu0
    %v871 = vpop.f32.mrb[0].mxu0
    %v872 = vadd.f32 %v744, %v871
    %v873 = vpop.f32.mrb[0].mxu0
    %874 = vmatprep.mubr.bf16.mxu0 0
    %875 = vmatmul.mubr.bf16.gmra.mrb[0].mxu0 %v789
    %v876 = vpop.f32.mrb[0].mxu0
    %v877 = vadd.f32 %v744, %v876
    %v878 = vpop.f32.mrb[0].mxu0
    %v879 = vpop.f32.mrb[0].mxu0
    %v880 = vadd.f32 %v744, %v879
    %v881 = vpop.f32.mrb[0].mxu0
    %882 = vmatprep.mubr.bf16.mxu0 0
    %883 = vmatmul.mubr.bf16.gmra.mrb[0].mxu0 %v792
    %v884 = vpop.f32.mrb[0].mxu0
    %v885 = vadd.f32 %v744, %v884
    %v886 = vpop.f32.mrb[0].mxu0
    %v887 = vpop.f32.mrb[0].mxu0
    %v888 = vadd.f32 %v744, %v887
    %v889 = vpop.f32.mrb[0].mxu0
    %890 = vdwg.mxu0
    %v891 = vpack.c.bf16 %v832, %v829
    %v892 = vpack.c.bf16 %v840, %v837
    %v893 = vpack.c.bf16 %v848, %v845
    %v894 = vpack.c.bf16 %v856, %v853
    %v895 = vpack.c.bf16 %v864, %v861
    %v896 = vpack.c.bf16 %v872, %v869
    %v897 = vpack.c.bf16 %v880, %v877
    %v898 = vpack.c.bf16 %v888, %v885
    %vm899 = vcmask 64512
    %v901 = vsel %vm899, %v728, 0
    %v904 = vsel %vm899, %v729, 0
    %v907 = vsel %vm899, %v730, 0
    %v910 = vsel %vm899, %v891, 0
    %v913 = vsel %vm899, %v892, 0
    %v916 = vsel %vm899, %v893, 0
    %v919 = vsel %vm899, %v894, 0
    %921 = vmatprep.subr.bf16.mxu0 0
    %922 = vmatpush1.bf16.xpose.msra.mxu0 %v910
    %923 = vmatprep.subr.bf16.mxu0 0
    %924 = vmatpush1.bf16.xpose.msra.mxu0 %v913
    %925 = vmatprep.subr.bf16.mxu0 0
    %926 = vmatpush1.bf16.xpose.msra.mxu0 %v916
    %927 = vmatprep.subr.bf16.mxu0 0
    %928 = vmatpush1.bf16.xpose.msra.mxu0 %v919
    %929 = vmatprep.subr.bf16.mxu0 0
    %930 = vmatpush1.bf16.xpose.msra.mxu0 0
    %931 = vmatprep.subr.bf16.mxu0 0
    %932 = vmatpush1.bf16.xpose.msra.mxu0 0
    %933 = vmatprep.subr.bf16.mxu0 0
    %934 = vmatpush1.bf16.xpose.msra.mxu0 0
    %935 = vmatprep.subr.bf16.mxu0 0
    %936 = vmatpush1.bf16.xpose.msra.mxu0 0
    %937 = vmatprep.subr.bf16.mxu0 0
    %938 = vmatpush1.bf16.xpose.msra.mxu0 0
    %939 = vmatprep.subr.bf16.mxu0 0
    %940 = vmatpush1.bf16.xpose.msra.mxu0 0
    %941 = vmatprep.subr.bf16.mxu0 0
    %942 = vmatpush1.bf16.xpose.msra.mxu0 0
    %943 = vmatprep.subr.bf16.mxu0 0
    %944 = vmatpush1.bf16.xpose.msra.mxu0 0
    %945 = vmatprep.subr.bf16.mxu0 0
    %946 = vmatpush1.bf16.xpose.msra.mxu0 0
    %947 = vmatprep.subr.bf16.mxu0 0
    %948 = vmatpush1.bf16.xpose.msra.mxu0 0
    %949 = vmatprep.subr.bf16.mxu0 0
    %950 = vmatpush1.bf16.xpose.msra.mxu0 0
    %951 = vmatprep.subr.bf16.mxu0 0
    %952 = vmatpush1.bf16.xpose.msra.mxu0 0
    %953 = vmatprep.mubr.bf16.mxu0 0
    %954 = vmatmul.mubr.bf16.gmra.mrb[0].mxu0 %v901
    %v955 = vpop.f32.mrb[0].mxu0
    %v956 = vadd.f32 0.0, %v955
    %v957 = vpop.f32.mrb[0].mxu0
    %v958 = vpop.f32.mrb[0].mxu0
    %v959 = vadd.f32 0.0, %v958
    %v960 = vpop.f32.mrb[0].mxu0
    %961 = vmatprep.mubr.bf16.mxu0 0
    %962 = vmatmul.mubr.bf16.gmra.mrb[0].mxu0 %v904
    %v963 = vpop.f32.mrb[0].mxu0
    %v964 = vadd.f32 0.0, %v963
    %v965 = vpop.f32.mrb[0].mxu0
    %v966 = vpop.f32.mrb[0].mxu0
    %v967 = vadd.f32 0.0, %v966
    %v968 = vpop.f32.mrb[0].mxu0
    %969 = vmatprep.mubr.bf16.mxu0 0
    %970 = vmatmul.mubr.bf16.gmra.mrb[0].mxu0 %v907
    %v971 = vpop.f32.mrb[0].mxu0
    %v972 = vadd.f32 0.0, %v971
    %v973 = vpop.f32.mrb[0].mxu0
    %v974 = vpop.f32.mrb[0].mxu0
    %v975 = vpop.f32.mrb[0].mxu0
    %976 = vdwg.mxu0
    %v977 = vsel %vm370, %v956, -inf
    %978 = vmax.xlane.f32.xlu0 %v977
    %v979 = vpop.xlane.xlu0 %978
    %v980 = vsel %vm370, %v959, -inf
    %981 = vmax.xlane.f32.xlu0 %v980
    %v982 = vpop.xlane.xlu0 %981
    %v983 = vsel %vm370, %v964, -inf
    %984 = vmax.xlane.f32.xlu0 %v983
    %v985 = vpop.xlane.xlu0 %984
    %v986 = vsel %vm370, %v967, -inf
    %987 = vmax.xlane.f32.xlu0 %v986
    %v988 = vpop.xlane.xlu0 %987
    %v989 = vsel %vm370, %v972, -inf
    %990 = vmax.xlane.f32.xlu0 %v989
    %v991 = vpop.xlane.xlu0 %990
    %v992 = vsub.f32 %v956, %v979
    %v993 = vsub.f32 %v959, %v982
    %v994 = vsub.f32 %v964, %v985
    %v995 = vsub.f32 %v967, %v988
    %v996 = vsub.f32 %v972, %v991
    %v997 = vmul.f32 %v992, 1.442695
    %v998 = vpow.pop %v997
    %v999 = vmul.f32 %v993, 1.442695
    %v1000 = vpow.pop %v999
    %v1001 = vmul.f32 %v994, 1.442695
    %v1002 = vpow.pop %v1001
    %v1003 = vmul.f32 %v995, 1.442695
    %v1004 = vpow.pop %v1003
    %v1005 = vmul.f32 %v996, 1.442695
    %v1006 = vpow.pop %v1005
    %v1007 = vsel %vm370, %v998, 0.0
    %1008 = vadd.xlane.f32.xlu0 %v1007
    %v1009 = vpop.xlane.xlu0 %1008
    %v1010 = vsel %vm370, %v1000, 0.0
    %1011 = vadd.xlane.f32.xlu0 %v1010
    %v1012 = vpop.xlane.xlu0 %1011
    %v1013 = vsel %vm370, %v1002, 0.0
    %1014 = vadd.xlane.f32.xlu0 %v1013
    %v1015 = vpop.xlane.xlu0 %1014
    %v1016 = vsel %vm370, %v1004, 0.0
    %1017 = vadd.xlane.f32.xlu0 %v1016
    %v1018 = vpop.xlane.xlu0 %1017
    %v1019 = vsel %vm370, %v1006, 0.0
    %1020 = vadd.xlane.f32.xlu0 %v1019
    %v1021 = vpop.xlane.xlu0 %1020
    %v1022 = vrcp.pop %v1009
    %v1023 = vrcp.pop %v1012
    %v1024 = vrcp.pop %v1015
    %v1025 = vrcp.pop %v1018
    %v1026 = vrcp.pop %v1021
    %v1027 = vmul.f32 %v998, %v1022
    %v1028 = vmul.f32 %v1000, %v1023
    %v1029 = vmul.f32 %v1002, %v1024
    %v1030 = vmul.f32 %v1004, %v1025
    %v1031 = vmul.f32 %v1006, %v1026
    %v1032 = vpack.c.bf16 %v1028, %v1027
    %v1033 = vpack.c.bf16 %v1030, %v1029
    %v1034 = vpack.c.bf16 %v1031, %v1031
    %1039 = vrot.lane.b32.xlu0 %v891, 64
    %v1040 = vpop.permute.xlu0 %1039
    %1041 = vrot.lane.b32.xlu0 %v892, 64
    %v1042 = vpop.permute.xlu0 %1041
    %1043 = vrot.lane.b32.xlu0 %v893, 64
    %v1044 = vpop.permute.xlu0 %1043
    %1045 = vrot.lane.b32.xlu0 %v894, 64
    %v1046 = vpop.permute.xlu0 %1045
    %v1052 = vsel %vm370, %v1032, 0
    %v1055 = vsel %vm370, %v1033, 0
    %v1058 = vsel %vm370, %v1034, 0
    %1060 = vmatprep.subr.bf16.mxu0 0
    %1061 = vmatpush1.bf16.msra.mxu0 %v1040
    %1062 = vmatprep.subr.bf16.mxu0 0
    %1063 = vmatpush1.bf16.msra.mxu0 %v1042
    %1064 = vmatprep.subr.bf16.mxu0 0
    %1065 = vmatpush1.bf16.msra.mxu0 %v1044
    %1066 = vmatprep.subr.bf16.mxu0 0
    %1067 = vmatpush1.bf16.msra.mxu0 %v1046
    %1068 = vmatprep.subr.bf16.mxu0 0
    %1069 = vmatpush1.bf16.msra.mxu0 0
    %1070 = vmatprep.subr.bf16.mxu0 0
    %1071 = vmatpush1.bf16.msra.mxu0 0
    %1072 = vmatprep.subr.bf16.mxu0 0
    %1073 = vmatpush1.bf16.msra.mxu0 0
    %1074 = vmatprep.subr.bf16.mxu0 0
    %1075 = vmatpush1.bf16.msra.mxu0 0
    %1076 = vmatprep.subr.bf16.mxu0 0
    %1077 = vmatpush1.bf16.msra.mxu0 0
    %1078 = vmatprep.subr.bf16.mxu0 0
    %1079 = vmatpush1.bf16.msra.mxu0 0
    %1080 = vmatprep.subr.bf16.mxu0 0
    %1081 = vmatpush1.bf16.msra.mxu0 0
    %1082 = vmatprep.subr.bf16.mxu0 0
    %1083 = vmatpush1.bf16.msra.mxu0 0
    %1084 = vmatprep.subr.bf16.mxu0 0
    %1085 = vmatpush1.bf16.msra.mxu0 0
    %1086 = vmatprep.subr.bf16.mxu0 0
    %1087 = vmatpush1.bf16.msra.mxu0 0
    %1088 = vmatprep.subr.bf16.mxu0 0
    %1089 = vmatpush1.bf16.msra.mxu0 0
    %1090 = vmatprep.subr.bf16.mxu0 0
    %1091 = vmatpush1.bf16.msra.mxu0 0
    %1092 = vmatprep.mubr.bf16.mxu0 0
    %1093 = vmatmul.mubr.bf16.gmra.mrb[0].mxu0 %v1052
    %v1094 = vpop.f32.mrb[0].mxu0
    %v1095 = vadd.f32 0.0, %v1094
    %v1096 = vpop.f32.mrb[0].mxu0
    %v1097 = vpop.f32.mrb[0].mxu0
    %v1098 = vadd.f32 0.0, %v1097
    %v1099 = vpop.f32.mrb[0].mxu0
    %1100 = vmatprep.mubr.bf16.mxu0 0
    %1101 = vmatmul.mubr.bf16.gmra.mrb[0].mxu0 %v1055
    %v1102 = vpop.f32.mrb[0].mxu0
    %v1103 = vadd.f32 0.0, %v1102
    %v1104 = vpop.f32.mrb[0].mxu0
    %v1105 = vpop.f32.mrb[0].mxu0
    %v1106 = vadd.f32 0.0, %v1105
    %v1107 = vpop.f32.mrb[0].mxu0
    %1108 = vmatprep.mubr.bf16.mxu0 0
    %1109 = vmatmul.mubr.bf16.gmra.mrb[0].mxu0 %v1058
    %v1110 = vpop.f32.mrb[0].mxu0
    %v1111 = vadd.f32 0.0, %v1110
    %v1112 = vpop.f32.mrb[0].mxu0
    %v1113 = vpop.f32.mrb[0].mxu0
    %v1114 = vpop.f32.mrb[0].mxu0
    %1115 = vdwg.mxu0
    %1119 = vrot.lane.b32.xlu0 %v728, 120
    %v1120 = vpop.permute.xlu0 %1119
    %1121 = vrot.lane.b32.xlu0 %v729, 120
    %v1122 = vpop.permute.xlu0 %1121
    %1123 = vrot.lane.b32.xlu0 %v730, 120
    %v1124 = vpop.permute.xlu0 %1123
    %1125 = vrot.lane.b32.xlu0 %v891, 120
    %v1126 = vpop.permute.xlu0 %1125
    %1127 = vrot.lane.b32.xlu0 %v892, 120
    %v1128 = vpop.permute.xlu0 %1127
    %1129 = vrot.lane.b32.xlu0 %v893, 120
    %v1130 = vpop.permute.xlu0 %1129
    %1131 = vrot.lane.b32.xlu0 %v894, 120
    %v1132 = vpop.permute.xlu0 %1131
    %v1134 = vsel %vm899, %v1120, 0
    %v1137 = vsel %vm899, %v1122, 0
    %v1140 = vsel %vm899, %v1124, 0
    %v1143 = vsel %vm899, %v1126, 0
    %v1146 = vsel %vm899, %v1128, 0
    %v1149 = vsel %vm899, %v1130, 0
    %v1152 = vsel %vm899, %v1132, 0
    %1154 = vmatprep.subr.bf16.mxu0 0
    %1155 = vmatpush1.bf16.xpose.msra.mxu0 %v1143
    %1156 = vmatprep.subr.bf16.mxu0 0
    %1157 = vmatpush1.bf16.xpose.msra.mxu0 %v1146
    %1158 = vmatprep.subr.bf16.mxu0 0
    %1159 = vmatpush1.bf16.xpose.msra.mxu0 %v1149
    %1160 = vmatprep.subr.bf16.mxu0 0
    %1161 = vmatpush1.bf16.xpose.msra.mxu0 %v1152
    %1162 = vmatprep.subr.bf16.mxu0 0
    %1163 = vmatpush1.bf16.xpose.msra.mxu0 0
    %1164 = vmatprep.subr.bf16.mxu0 0
    %1165 = vmatpush1.bf16.xpose.msra.mxu0 0
    %1166 = vmatprep.subr.bf16.mxu0 0
    %1167 = vmatpush1.bf16.xpose.msra.mxu0 0
    %1168 = vmatprep.subr.bf16.mxu0 0
    %1169 = vmatpush1.bf16.xpose.msra.mxu0 0
    %1170 = vmatprep.subr.bf16.mxu0 0
    %1171 = vmatpush1.bf16.xpose.msra.mxu0 0
    %1172 = vmatprep.subr.bf16.mxu0 0
    %1173 = vmatpush1.bf16.xpose.msra.mxu0 0
    %1174 = vmatprep.subr.bf16.mxu0 0
    %1175 = vmatpush1.bf16.xpose.msra.mxu0 0
    %1176 = vmatprep.subr.bf16.mxu0 0
    %1177 = vmatpush1.bf16.xpose.msra.mxu0 0
    %1178 = vmatprep.subr.bf16.mxu0 0
    %1179 = vmatpush1.bf16.xpose.msra.mxu0 0
    %1180 = vmatprep.subr.bf16.mxu0 0
    %1181 = vmatpush1.bf16.xpose.msra.mxu0 0
    %1182 = vmatprep.subr.bf16.mxu0 0
    %1183 = vmatpush1.bf16.xpose.msra.mxu0 0
    %1184 = vmatprep.subr.bf16.mxu0 0
    %1185 = vmatpush1.bf16.xpose.msra.mxu0 0
    %1186 = vmatprep.mubr.bf16.mxu0 0
    %1187 = vmatmul.mubr.bf16.gmra.mrb[0].mxu0 %v1134
    %v1188 = vpop.f32.mrb[0].mxu0
    %v1189 = vadd.f32 0.0, %v1188
    %v1190 = vpop.f32.mrb[0].mxu0
    %v1191 = vpop.f32.mrb[0].mxu0
    %v1192 = vadd.f32 0.0, %v1191
    %v1193 = vpop.f32.mrb[0].mxu0
    %1194 = vmatprep.mubr.bf16.mxu0 0
    %1195 = vmatmul.mubr.bf16.gmra.mrb[0].mxu0 %v1137
    %v1196 = vpop.f32.mrb[0].mxu0
    %v1197 = vadd.f32 0.0, %v1196
    %v1198 = vpop.f32.mrb[0].mxu0
    %v1199 = vpop.f32.mrb[0].mxu0
    %v1200 = vadd.f32 0.0, %v1199
    %v1201 = vpop.f32.mrb[0].mxu0
    %1202 = vmatprep.mubr.bf16.mxu0 0
    %1203 = vmatmul.mubr.bf16.gmra.mrb[0].mxu0 %v1140
    %v1204 = vpop.f32.mrb[0].mxu0
    %v1205 = vadd.f32 0.0, %v1204
    %v1206 = vpop.f32.mrb[0].mxu0
    %v1207 = vpop.f32.mrb[0].mxu0
    %v1208 = vpop.f32.mrb[0].mxu0
    %1209 = vdwg.mxu0
    %v1210 = vsel %vm370, %v1189, -inf
    %1211 = vmax.xlane.f32.xlu0 %v1210
    %v1212 = vpop.xlane.xlu0 %1211
    %v1213 = vsel %vm370, %v1192, -inf
    %1214 = vmax.xlane.f32.xlu0 %v1213
    %v1215 = vpop.xlane.xlu0 %1214
    %v1216 = vsel %vm370, %v1197, -inf
    %1217 = vmax.xlane.f32.xlu0 %v1216
    %v1218 = vpop.xlane.xlu0 %1217
    %v1219 = vsel %vm370, %v1200, -inf
    %1220 = vmax.xlane.f32.xlu0 %v1219
    %v1221 = vpop.xlane.xlu0 %1220
    %v1222 = vsel %vm370, %v1205, -inf
    %1223 = vmax.xlane.f32.xlu0 %v1222
    %v1224 = vpop.xlane.xlu0 %1223
    %v1225 = vsub.f32 %v1189, %v1212
    %v1226 = vsub.f32 %v1192, %v1215
    %v1227 = vsub.f32 %v1197, %v1218
    %v1228 = vsub.f32 %v1200, %v1221
    %v1229 = vsub.f32 %v1205, %v1224
    %v1230 = vmul.f32 %v1225, 1.442695
    %v1231 = vpow.pop %v1230
    %v1232 = vmul.f32 %v1226, 1.442695
    %v1233 = vpow.pop %v1232
    %v1234 = vmul.f32 %v1227, 1.442695
    %v1235 = vpow.pop %v1234
    %v1236 = vmul.f32 %v1228, 1.442695
    %v1237 = vpow.pop %v1236
    %v1238 = vmul.f32 %v1229, 1.442695
    %v1239 = vpow.pop %v1238
    %v1240 = vsel %vm370, %v1231, 0.0
    %1241 = vadd.xlane.f32.xlu0 %v1240
    %v1242 = vpop.xlane.xlu0 %1241
    %v1243 = vsel %vm370, %v1233, 0.0
    %1244 = vadd.xlane.f32.xlu0 %v1243
    %v1245 = vpop.xlane.xlu0 %1244
    %v1246 = vsel %vm370, %v1235, 0.0
    %1247 = vadd.xlane.f32.xlu0 %v1246
    %v1248 = vpop.xlane.xlu0 %1247
    %v1249 = vsel %vm370, %v1237, 0.0
    %1250 = vadd.xlane.f32.xlu0 %v1249
    %v1251 = vpop.xlane.xlu0 %1250
    %v1252 = vsel %vm370, %v1239, 0.0
    %1253 = vadd.xlane.f32.xlu0 %v1252
    %v1254 = vpop.xlane.xlu0 %1253
    %v1255 = vrcp.pop %v1242
    %v1256 = vrcp.pop %v1245
    %v1257 = vrcp.pop %v1248
    %v1258 = vrcp.pop %v1251
    %v1259 = vrcp.pop %v1254
    %v1260 = vmul.f32 %v1231, %v1255
    %v1261 = vmul.f32 %v1233, %v1256
    %v1262 = vmul.f32 %v1235, %v1257
    %v1263 = vmul.f32 %v1237, %v1258
    %v1264 = vmul.f32 %v1239, %v1259
    %v1265 = vpack.c.bf16 %v1261, %v1260
    %v1266 = vpack.c.bf16 %v1263, %v1262
    %v1267 = vpack.c.bf16 %v1264, %v1264
    %1268 = vrot.lane.b32.xlu0 %v891, 56
    %v1269 = vpop.permute.xlu0 %1268
    %1270 = vrot.lane.b32.xlu0 %v892, 56
    %v1271 = vpop.permute.xlu0 %1270
    %1272 = vrot.lane.b32.xlu0 %v893, 56
    %v1273 = vpop.permute.xlu0 %1272
    %1274 = vrot.lane.b32.xlu0 %v894, 56
    %v1275 = vpop.permute.xlu0 %1274
    %v1281 = vsel %vm370, %v1265, 0
    %v1284 = vsel %vm370, %v1266, 0
    %v1287 = vsel %vm370, %v1267, 0
    %1289 = vmatprep.subr.bf16.mxu0 0
    %1290 = vmatpush1.bf16.msra.mxu0 %v1269
    %1291 = vmatprep.subr.bf16.mxu0 0
    %1292 = vmatpush1.bf16.msra.mxu0 %v1271
    %1293 = vmatprep.subr.bf16.mxu0 0
    %1294 = vmatpush1.bf16.msra.mxu0 %v1273
    %1295 = vmatprep.subr.bf16.mxu0 0
    %1296 = vmatpush1.bf16.msra.mxu0 %v1275
    %1297 = vmatprep.subr.bf16.mxu0 0
    %1298 = vmatpush1.bf16.msra.mxu0 0
    %1299 = vmatprep.subr.bf16.mxu0 0
    %1300 = vmatpush1.bf16.msra.mxu0 0
    %1301 = vmatprep.subr.bf16.mxu0 0
    %1302 = vmatpush1.bf16.msra.mxu0 0
    %1303 = vmatprep.subr.bf16.mxu0 0
    %1304 = vmatpush1.bf16.msra.mxu0 0
    %1305 = vmatprep.subr.bf16.mxu0 0
    %1306 = vmatpush1.bf16.msra.mxu0 0
    %1307 = vmatprep.subr.bf16.mxu0 0
    %1308 = vmatpush1.bf16.msra.mxu0 0
    %1309 = vmatprep.subr.bf16.mxu0 0
    %1310 = vmatpush1.bf16.msra.mxu0 0
    %1311 = vmatprep.subr.bf16.mxu0 0
    %1312 = vmatpush1.bf16.msra.mxu0 0
    %1313 = vmatprep.subr.bf16.mxu0 0
    %1314 = vmatpush1.bf16.msra.mxu0 0
    %1315 = vmatprep.subr.bf16.mxu0 0
    %1316 = vmatpush1.bf16.msra.mxu0 0
    %1317 = vmatprep.subr.bf16.mxu0 0
    %1318 = vmatpush1.bf16.msra.mxu0 0
    %1319 = vmatprep.subr.bf16.mxu0 0
    %1320 = vmatpush1.bf16.msra.mxu0 0
    %1321 = vmatprep.mubr.bf16.mxu0 0
    %1322 = vmatmul.mubr.bf16.gmra.mrb[0].mxu0 %v1281
    %v1323 = vpop.f32.mrb[0].mxu0
    %v1324 = vadd.f32 0.0, %v1323
    %v1325 = vpop.f32.mrb[0].mxu0
    %v1326 = vpop.f32.mrb[0].mxu0
    %v1327 = vadd.f32 0.0, %v1326
    %v1328 = vpop.f32.mrb[0].mxu0
    %1329 = vmatprep.mubr.bf16.mxu0 0
    %1330 = vmatmul.mubr.bf16.gmra.mrb[0].mxu0 %v1284
    %v1331 = vpop.f32.mrb[0].mxu0
    %v1332 = vadd.f32 0.0, %v1331
    %v1333 = vpop.f32.mrb[0].mxu0
    %v1334 = vpop.f32.mrb[0].mxu0
    %v1335 = vadd.f32 0.0, %v1334
    %v1336 = vpop.f32.mrb[0].mxu0
    %1337 = vmatprep.mubr.bf16.mxu0 0
    %1338 = vmatmul.mubr.bf16.gmra.mrb[0].mxu0 %v1287
    %v1339 = vpop.f32.mrb[0].mxu0
    %v1340 = vadd.f32 0.0, %v1339
    %v1341 = vpop.f32.mrb[0].mxu0
    %v1342 = vpop.f32.mrb[0].mxu0
    %v1343 = vpop.f32.mrb[0].mxu0
    %1344 = vdwg.mxu0
    %1345 = vrot.lane.b32.xlu0 %v728, 112
    %v1346 = vpop.permute.xlu0 %1345
    %1347 = vrot.lane.b32.xlu0 %v729, 112
    %v1348 = vpop.permute.xlu0 %1347
    %1349 = vrot.lane.b32.xlu0 %v730, 112
    %v1350 = vpop.permute.xlu0 %1349
    %1351 = vrot.lane.b32.xlu0 %v891, 112
    %v1352 = vpop.permute.xlu0 %1351
    %1353 = vrot.lane.b32.xlu0 %v892, 112
    %v1354 = vpop.permute.xlu0 %1353
    %1355 = vrot.lane.b32.xlu0 %v893, 112
    %v1356 = vpop.permute.xlu0 %1355
    %1357 = vrot.lane.b32.xlu0 %v894, 112
    %v1358 = vpop.permute.xlu0 %1357
    %v1360 = vsel %vm899, %v1346, 0
    %v1363 = vsel %vm899, %v1348, 0
    %v1366 = vsel %vm899, %v1350, 0
    %v1369 = vsel %vm899, %v1352, 0
    %v1372 = vsel %vm899, %v1354, 0
    %v1375 = vsel %vm899, %v1356, 0
    %v1378 = vsel %vm899, %v1358, 0
    %1380 = vmatprep.subr.bf16.mxu0 0
    %1381 = vmatpush1.bf16.xpose.msra.mxu0 %v1369
    %1382 = vmatprep.subr.bf16.mxu0 0
    %1383 = vmatpush1.bf16.xpose.msra.mxu0 %v1372
    %1384 = vmatprep.subr.bf16.mxu0 0
    %1385 = vmatpush1.bf16.xpose.msra.mxu0 %v1375
    %1386 = vmatprep.subr.bf16.mxu0 0
    %1387 = vmatpush1.bf16.xpose.msra.mxu0 %v1378
    %1388 = vmatprep.subr.bf16.mxu0 0
    %1389 = vmatpush1.bf16.xpose.msra.mxu0 0
    %1390 = vmatprep.subr.bf16.mxu0 0
    %1391 = vmatpush1.bf16.xpose.msra.mxu0 0
    %1392 = vmatprep.subr.bf16.mxu0 0
    %1393 = vmatpush1.bf16.xpose.msra.mxu0 0
    %1394 = vmatprep.subr.bf16.mxu0 0
    %1395 = vmatpush1.bf16.xpose.msra.mxu0 0
    %1396 = vmatprep.subr.bf16.mxu0 0
    %1397 = vmatpush1.bf16.xpose.msra.mxu0 0
    %1398 = vmatprep.subr.bf16.mxu0 0
    %1399 = vmatpush1.bf16.xpose.msra.mxu0 0
    %1400 = vmatprep.subr.bf16.mxu0 0
    %1401 = vmatpush1.bf16.xpose.msra.mxu0 0
    %1402 = vmatprep.subr.bf16.mxu0 0
    %1403 = vmatpush1.bf16.xpose.msra.mxu0 0
    %1404 = vmatprep.subr.bf16.mxu0 0
    %1405 = vmatpush1.bf16.xpose.msra.mxu0 0
    %1406 = vmatprep.subr.bf16.mxu0 0
    %1407 = vmatpush1.bf16.xpose.msra.mxu0 0
    %1408 = vmatprep.subr.bf16.mxu0 0
    %1409 = vmatpush1.bf16.xpose.msra.mxu0 0
    %1410 = vmatprep.subr.bf16.mxu0 0
    %1411 = vmatpush1.bf16.xpose.msra.mxu0 0
    %1412 = vmatprep.mubr.bf16.mxu0 0
    %1413 = vmatmul.mubr.bf16.gmra.mrb[0].mxu0 %v1360
    %v1414 = vpop.f32.mrb[0].mxu0
    %v1415 = vadd.f32 0.0, %v1414
    %v1416 = vpop.f32.mrb[0].mxu0
    %v1417 = vpop.f32.mrb[0].mxu0
    %v1418 = vadd.f32 0.0, %v1417
    %v1419 = vpop.f32.mrb[0].mxu0
    %1420 = vmatprep.mubr.bf16.mxu0 0
    %1421 = vmatmul.mubr.bf16.gmra.mrb[0].mxu0 %v1363
    %v1422 = vpop.f32.mrb[0].mxu0
    %v1423 = vadd.f32 0.0, %v1422
    %v1424 = vpop.f32.mrb[0].mxu0
    %v1425 = vpop.f32.mrb[0].mxu0
    %v1426 = vadd.f32 0.0, %v1425
    %v1427 = vpop.f32.mrb[0].mxu0
    %1428 = vmatprep.mubr.bf16.mxu0 0
    %1429 = vmatmul.mubr.bf16.gmra.mrb[0].mxu0 %v1366
    %v1430 = vpop.f32.mrb[0].mxu0
    %v1431 = vadd.f32 0.0, %v1430
    %v1432 = vpop.f32.mrb[0].mxu0
    %v1433 = vpop.f32.mrb[0].mxu0
    %v1434 = vpop.f32.mrb[0].mxu0
    %1435 = vdwg.mxu0
    %v1436 = vsel %vm370, %v1415, -inf
    %1437 = vmax.xlane.f32.xlu0 %v1436
    %v1438 = vpop.xlane.xlu0 %1437
    %v1439 = vsel %vm370, %v1418, -inf
    %1440 = vmax.xlane.f32.xlu0 %v1439
    %v1441 = vpop.xlane.xlu0 %1440
    %v1442 = vsel %vm370, %v1423, -inf
    %1443 = vmax.xlane.f32.xlu0 %v1442
    %v1444 = vpop.xlane.xlu0 %1443
    %v1445 = vsel %vm370, %v1426, -inf
    %1446 = vmax.xlane.f32.xlu0 %v1445
    %v1447 = vpop.xlane.xlu0 %1446
    %v1448 = vsel %vm370, %v1431, -inf
    %1449 = vmax.xlane.f32.xlu0 %v1448
    %v1450 = vpop.xlane.xlu0 %1449
    %v1451 = vsub.f32 %v1415, %v1438
    %v1452 = vsub.f32 %v1418, %v1441
    %v1453 = vsub.f32 %v1423, %v1444
    %v1454 = vsub.f32 %v1426, %v1447
    %v1455 = vsub.f32 %v1431, %v1450
    %v1456 = vmul.f32 %v1451, 1.442695
    %v1457 = vpow.pop %v1456
    %v1458 = vmul.f32 %v1452, 1.442695
    %v1459 = vpow.pop %v1458
    %v1460 = vmul.f32 %v1453, 1.442695
    %v1461 = vpow.pop %v1460
    %v1462 = vmul.f32 %v1454, 1.442695
    %v1463 = vpow.pop %v1462
    %v1464 = vmul.f32 %v1455, 1.442695
    %v1465 = vpow.pop %v1464
    %v1466 = vsel %vm370, %v1457, 0.0
    %1467 = vadd.xlane.f32.xlu0 %v1466
    %v1468 = vpop.xlane.xlu0 %1467
    %v1469 = vsel %vm370, %v1459, 0.0
    %1470 = vadd.xlane.f32.xlu0 %v1469
    %v1471 = vpop.xlane.xlu0 %1470
    %v1472 = vsel %vm370, %v1461, 0.0
    %1473 = vadd.xlane.f32.xlu0 %v1472
    %v1474 = vpop.xlane.xlu0 %1473
    %v1475 = vsel %vm370, %v1463, 0.0
    %1476 = vadd.xlane.f32.xlu0 %v1475
    %v1477 = vpop.xlane.xlu0 %1476
    %v1478 = vsel %vm370, %v1465, 0.0
    %1479 = vadd.xlane.f32.xlu0 %v1478
    %v1480 = vpop.xlane.xlu0 %1479
    %v1481 = vrcp.pop %v1468
    %v1482 = vrcp.pop %v1471
    %v1483 = vrcp.pop %v1474
    %v1484 = vrcp.pop %v1477
    %v1485 = vrcp.pop %v1480
    %v1486 = vmul.f32 %v1457, %v1481
    %v1487 = vmul.f32 %v1459, %v1482
    %v1488 = vmul.f32 %v1461, %v1483
    %v1489 = vmul.f32 %v1463, %v1484
    %v1490 = vmul.f32 %v1465, %v1485
    %v1491 = vpack.c.bf16 %v1487, %v1486
    %v1492 = vpack.c.bf16 %v1489, %v1488
    %v1493 = vpack.c.bf16 %v1490, %v1490
    %1494 = vrot.lane.b32.xlu0 %v891, 48
    %v1495 = vpop.permute.xlu0 %1494
    %1496 = vrot.lane.b32.xlu0 %v892, 48
    %v1497 = vpop.permute.xlu0 %1496
    %1498 = vrot.lane.b32.xlu0 %v893, 48
    %v1499 = vpop.permute.xlu0 %1498
    %1500 = vrot.lane.b32.xlu0 %v894, 48
    %v1501 = vpop.permute.xlu0 %1500
    %v1507 = vsel %vm370, %v1491, 0
    %v1510 = vsel %vm370, %v1492, 0
    %v1513 = vsel %vm370, %v1493, 0
    %1515 = vmatprep.subr.bf16.mxu0 0
    %1516 = vmatpush1.bf16.msra.mxu0 %v1495
    %1517 = vmatprep.subr.bf16.mxu0 0
    %1518 = vmatpush1.bf16.msra.mxu0 %v1497
    %1519 = vmatprep.subr.bf16.mxu0 0
    %1520 = vmatpush1.bf16.msra.mxu0 %v1499
    %1521 = vmatprep.subr.bf16.mxu0 0
    %1522 = vmatpush1.bf16.msra.mxu0 %v1501
    %1523 = vmatprep.subr.bf16.mxu0 0
    %1524 = vmatpush1.bf16.msra.mxu0 0
    %1525 = vmatprep.subr.bf16.mxu0 0
    %1526 = vmatpush1.bf16.msra.mxu0 0
    %1527 = vmatprep.subr.bf16.mxu0 0
    %1528 = vmatpush1.bf16.msra.mxu0 0
    %1529 = vmatprep.subr.bf16.mxu0 0
    %1530 = vmatpush1.bf16.msra.mxu0 0
    %1531 = vmatprep.subr.bf16.mxu0 0
    %1532 = vmatpush1.bf16.msra.mxu0 0
    %1533 = vmatprep.subr.bf16.mxu0 0
    %1534 = vmatpush1.bf16.msra.mxu0 0
    %1535 = vmatprep.subr.bf16.mxu0 0
    %1536 = vmatpush1.bf16.msra.mxu0 0
    %1537 = vmatprep.subr.bf16.mxu0 0
    %1538 = vmatpush1.bf16.msra.mxu0 0
    %1539 = vmatprep.subr.bf16.mxu0 0
    %1540 = vmatpush1.bf16.msra.mxu0 0
    %1541 = vmatprep.subr.bf16.mxu0 0
    %1542 = vmatpush1.bf16.msra.mxu0 0
    %1543 = vmatprep.subr.bf16.mxu0 0
    %1544 = vmatpush1.bf16.msra.mxu0 0
    %1545 = vmatprep.subr.bf16.mxu0 0
    %1546 = vmatpush1.bf16.msra.mxu0 0
    %1547 = vmatprep.mubr.bf16.mxu0 0
    %1548 = vmatmul.mubr.bf16.gmra.mrb[0].mxu0 %v1507
    %v1549 = vpop.f32.mrb[0].mxu0
    %v1550 = vadd.f32 0.0, %v1549
    %v1551 = vpop.f32.mrb[0].mxu0
    %v1552 = vpop.f32.mrb[0].mxu0
    %v1553 = vadd.f32 0.0, %v1552
    %v1554 = vpop.f32.mrb[0].mxu0
    %1555 = vmatprep.mubr.bf16.mxu0 0
    %1556 = vmatmul.mubr.bf16.gmra.mrb[0].mxu0 %v1510
    %v1557 = vpop.f32.mrb[0].mxu0
    %v1558 = vadd.f32 0.0, %v1557
    %v1559 = vpop.f32.mrb[0].mxu0
    %v1560 = vpop.f32.mrb[0].mxu0
    %v1561 = vadd.f32 0.0, %v1560
    %v1562 = vpop.f32.mrb[0].mxu0
    %1563 = vmatprep.mubr.bf16.mxu0 0
    %1564 = vmatmul.mubr.bf16.gmra.mrb[0].mxu0 %v1513
    %v1565 = vpop.f32.mrb[0].mxu0
    %v1566 = vadd.f32 0.0, %v1565
    %v1567 = vpop.f32.mrb[0].mxu0
    %v1568 = vpop.f32.mrb[0].mxu0
    %v1569 = vpop.f32.mrb[0].mxu0
    %1570 = vdwg.mxu0
    %1571 = vrot.lane.b32.xlu0 %v728, 104
    %v1572 = vpop.permute.xlu0 %1571
    %1573 = vrot.lane.b32.xlu0 %v729, 104
    %v1574 = vpop.permute.xlu0 %1573
    %1575 = vrot.lane.b32.xlu0 %v730, 104
    %v1576 = vpop.permute.xlu0 %1575
    %1577 = vrot.lane.b32.xlu0 %v891, 104
    %v1578 = vpop.permute.xlu0 %1577
    %1579 = vrot.lane.b32.xlu0 %v892, 104
    %v1580 = vpop.permute.xlu0 %1579
    %1581 = vrot.lane.b32.xlu0 %v893, 104
    %v1582 = vpop.permute.xlu0 %1581
    %1583 = vrot.lane.b32.xlu0 %v894, 104
    %v1584 = vpop.permute.xlu0 %1583
    %v1586 = vsel %vm899, %v1572, 0
    %v1589 = vsel %vm899, %v1574, 0
    %v1592 = vsel %vm899, %v1576, 0
    %v1595 = vsel %vm899, %v1578, 0
    %v1598 = vsel %vm899, %v1580, 0
    %v1601 = vsel %vm899, %v1582, 0
    %v1604 = vsel %vm899, %v1584, 0
    %1606 = vmatprep.subr.bf16.mxu0 0
    %1607 = vmatpush1.bf16.xpose.msra.mxu0 %v1595
    %1608 = vmatprep.subr.bf16.mxu0 0
    %1609 = vmatpush1.bf16.xpose.msra.mxu0 %v1598
    %1610 = vmatprep.subr.bf16.mxu0 0
    %1611 = vmatpush1.bf16.xpose.msra.mxu0 %v1601
    %1612 = vmatprep.subr.bf16.mxu0 0
    %1613 = vmatpush1.bf16.xpose.msra.mxu0 %v1604
    %1614 = vmatprep.subr.bf16.mxu0 0
    %1615 = vmatpush1.bf16.xpose.msra.mxu0 0
    %1616 = vmatprep.subr.bf16.mxu0 0
    %1617 = vmatpush1.bf16.xpose.msra.mxu0 0
    %1618 = vmatprep.subr.bf16.mxu0 0
    %1619 = vmatpush1.bf16.xpose.msra.mxu0 0
    %1620 = vmatprep.subr.bf16.mxu0 0
    %1621 = vmatpush1.bf16.xpose.msra.mxu0 0
    %1622 = vmatprep.subr.bf16.mxu0 0
    %1623 = vmatpush1.bf16.xpose.msra.mxu0 0
    %1624 = vmatprep.subr.bf16.mxu0 0
    %1625 = vmatpush1.bf16.xpose.msra.mxu0 0
    %1626 = vmatprep.subr.bf16.mxu0 0
    %1627 = vmatpush1.bf16.xpose.msra.mxu0 0
    %1628 = vmatprep.subr.bf16.mxu0 0
    %1629 = vmatpush1.bf16.xpose.msra.mxu0 0
    %1630 = vmatprep.subr.bf16.mxu0 0
    %1631 = vmatpush1.bf16.xpose.msra.mxu0 0
    %1632 = vmatprep.subr.bf16.mxu0 0
    %1633 = vmatpush1.bf16.xpose.msra.mxu0 0
    %1634 = vmatprep.subr.bf16.mxu0 0
    %1635 = vmatpush1.bf16.xpose.msra.mxu0 0
    %1636 = vmatprep.subr.bf16.mxu0 0
    %1637 = vmatpush1.bf16.xpose.msra.mxu0 0
    %1638 = vmatprep.mubr.bf16.mxu0 0
    %1639 = vmatmul.mubr.bf16.gmra.mrb[0].mxu0 %v1586
    %v1640 = vpop.f32.mrb[0].mxu0
    %v1641 = vadd.f32 0.0, %v1640
    %v1642 = vpop.f32.mrb[0].mxu0
    %v1643 = vpop.f32.mrb[0].mxu0
    %v1644 = vadd.f32 0.0, %v1643
    %v1645 = vpop.f32.mrb[0].mxu0
    %1646 = vmatprep.mubr.bf16.mxu0 0
    %1647 = vmatmul.mubr.bf16.gmra.mrb[0].mxu0 %v1589
    %v1648 = vpop.f32.mrb[0].mxu0
    %v1649 = vadd.f32 0.0, %v1648
    %v1650 = vpop.f32.mrb[0].mxu0
    %v1651 = vpop.f32.mrb[0].mxu0
    %v1652 = vadd.f32 0.0, %v1651
    %v1653 = vpop.f32.mrb[0].mxu0
    %1654 = vmatprep.mubr.bf16.mxu0 0
    %1655 = vmatmul.mubr.bf16.gmra.mrb[0].mxu0 %v1592
    %v1656 = vpop.f32.mrb[0].mxu0
    %v1657 = vadd.f32 0.0, %v1656
    %v1658 = vpop.f32.mrb[0].mxu0
    %v1659 = vpop.f32.mrb[0].mxu0
    %v1660 = vpop.f32.mrb[0].mxu0
    %1661 = vdwg.mxu0
    %v1662 = vsel %vm370, %v1641, -inf
    %1663 = vmax.xlane.f32.xlu0 %v1662
    %v1664 = vpop.xlane.xlu0 %1663
    %v1665 = vsel %vm370, %v1644, -inf
    %1666 = vmax.xlane.f32.xlu0 %v1665
    %v1667 = vpop.xlane.xlu0 %1666
    %v1668 = vsel %vm370, %v1649, -inf
    %1669 = vmax.xlane.f32.xlu0 %v1668
    %v1670 = vpop.xlane.xlu0 %1669
    %v1671 = vsel %vm370, %v1652, -inf
    %1672 = vmax.xlane.f32.xlu0 %v1671
    %v1673 = vpop.xlane.xlu0 %1672
    %v1674 = vsel %vm370, %v1657, -inf
    %1675 = vmax.xlane.f32.xlu0 %v1674
    %v1676 = vpop.xlane.xlu0 %1675
    %v1677 = vsub.f32 %v1641, %v1664
    %v1678 = vsub.f32 %v1644, %v1667
    %v1679 = vsub.f32 %v1649, %v1670
    %v1680 = vsub.f32 %v1652, %v1673
    %v1681 = vsub.f32 %v1657, %v1676
    %v1682 = vmul.f32 %v1677, 1.442695
    %v1683 = vpow.pop %v1682
    %v1684 = vmul.f32 %v1678, 1.442695
    %v1685 = vpow.pop %v1684
    %v1686 = vmul.f32 %v1679, 1.442695
    %v1687 = vpow.pop %v1686
    %v1688 = vmul.f32 %v1680, 1.442695
    %v1689 = vpow.pop %v1688
    %v1690 = vmul.f32 %v1681, 1.442695
    %v1691 = vpow.pop %v1690
    %v1692 = vsel %vm370, %v1683, 0.0
    %1693 = vadd.xlane.f32.xlu0 %v1692
    %v1694 = vpop.xlane.xlu0 %1693
    %v1695 = vsel %vm370, %v1685, 0.0
    %1696 = vadd.xlane.f32.xlu0 %v1695
    %v1697 = vpop.xlane.xlu0 %1696
    %v1698 = vsel %vm370, %v1687, 0.0
    %1699 = vadd.xlane.f32.xlu0 %v1698
    %v1700 = vpop.xlane.xlu0 %1699
    %v1701 = vsel %vm370, %v1689, 0.0
    %1702 = vadd.xlane.f32.xlu0 %v1701
    %v1703 = vpop.xlane.xlu0 %1702
    %v1704 = vsel %vm370, %v1691, 0.0
    %1705 = vadd.xlane.f32.xlu0 %v1704
    %v1706 = vpop.xlane.xlu0 %1705
    %v1707 = vrcp.pop %v1694
    %v1708 = vrcp.pop %v1697
    %v1709 = vrcp.pop %v1700
    %v1710 = vrcp.pop %v1703
    %v1711 = vrcp.pop %v1706
    %v1712 = vmul.f32 %v1683, %v1707
    %v1713 = vmul.f32 %v1685, %v1708
    %v1714 = vmul.f32 %v1687, %v1709
    %v1715 = vmul.f32 %v1689, %v1710
    %v1716 = vmul.f32 %v1691, %v1711
    %v1717 = vpack.c.bf16 %v1713, %v1712
    %v1718 = vpack.c.bf16 %v1715, %v1714
    %v1719 = vpack.c.bf16 %v1716, %v1716
    %1720 = vrot.lane.b32.xlu0 %v891, 40
    %v1721 = vpop.permute.xlu0 %1720
    %1722 = vrot.lane.b32.xlu0 %v892, 40
    %v1723 = vpop.permute.xlu0 %1722
    %1724 = vrot.lane.b32.xlu0 %v893, 40
    %v1725 = vpop.permute.xlu0 %1724
    %1726 = vrot.lane.b32.xlu0 %v894, 40
    %v1727 = vpop.permute.xlu0 %1726
    %v1733 = vsel %vm370, %v1717, 0
    %v1736 = vsel %vm370, %v1718, 0
    %v1739 = vsel %vm370, %v1719, 0
    %1741 = vmatprep.subr.bf16.mxu0 0
    %1742 = vmatpush1.bf16.msra.mxu0 %v1721
    %1743 = vmatprep.subr.bf16.mxu0 0
    %1744 = vmatpush1.bf16.msra.mxu0 %v1723
    %1745 = vmatprep.subr.bf16.mxu0 0
    %1746 = vmatpush1.bf16.msra.mxu0 %v1725
    %1747 = vmatprep.subr.bf16.mxu0 0
    %1748 = vmatpush1.bf16.msra.mxu0 %v1727
    %1749 = vmatprep.subr.bf16.mxu0 0
    %1750 = vmatpush1.bf16.msra.mxu0 0
    %1751 = vmatprep.subr.bf16.mxu0 0
    %1752 = vmatpush1.bf16.msra.mxu0 0
    %1753 = vmatprep.subr.bf16.mxu0 0
    %1754 = vmatpush1.bf16.msra.mxu0 0
    %1755 = vmatprep.subr.bf16.mxu0 0
    %1756 = vmatpush1.bf16.msra.mxu0 0
    %1757 = vmatprep.subr.bf16.mxu0 0
    %1758 = vmatpush1.bf16.msra.mxu0 0
    %1759 = vmatprep.subr.bf16.mxu0 0
    %1760 = vmatpush1.bf16.msra.mxu0 0
    %1761 = vmatprep.subr.bf16.mxu0 0
    %1762 = vmatpush1.bf16.msra.mxu0 0
    %1763 = vmatprep.subr.bf16.mxu0 0
    %1764 = vmatpush1.bf16.msra.mxu0 0
    %1765 = vmatprep.subr.bf16.mxu0 0
    %1766 = vmatpush1.bf16.msra.mxu0 0
    %1767 = vmatprep.subr.bf16.mxu0 0
    %1768 = vmatpush1.bf16.msra.mxu0 0
    %1769 = vmatprep.subr.bf16.mxu0 0
    %1770 = vmatpush1.bf16.msra.mxu0 0
    %1771 = vmatprep.subr.bf16.mxu0 0
    %1772 = vmatpush1.bf16.msra.mxu0 0
    %1773 = vmatprep.mubr.bf16.mxu0 0
    %1774 = vmatmul.mubr.bf16.gmra.mrb[0].mxu0 %v1733
    %v1775 = vpop.f32.mrb[0].mxu0
    %v1776 = vadd.f32 0.0, %v1775
    %v1777 = vpop.f32.mrb[0].mxu0
    %v1778 = vpop.f32.mrb[0].mxu0
    %v1779 = vadd.f32 0.0, %v1778
    %v1780 = vpop.f32.mrb[0].mxu0
    %1781 = vmatprep.mubr.bf16.mxu0 0
    %1782 = vmatmul.mubr.bf16.gmra.mrb[0].mxu0 %v1736
    %v1783 = vpop.f32.mrb[0].mxu0
    %v1784 = vadd.f32 0.0, %v1783
    %v1785 = vpop.f32.mrb[0].mxu0
    %v1786 = vpop.f32.mrb[0].mxu0
    %v1787 = vadd.f32 0.0, %v1786
    %v1788 = vpop.f32.mrb[0].mxu0
    %1789 = vmatprep.mubr.bf16.mxu0 0
    %1790 = vmatmul.mubr.bf16.gmra.mrb[0].mxu0 %v1739
    %v1791 = vpop.f32.mrb[0].mxu0
    %v1792 = vadd.f32 0.0, %v1791
    %v1793 = vpop.f32.mrb[0].mxu0
    %v1794 = vpop.f32.mrb[0].mxu0
    %v1795 = vpop.f32.mrb[0].mxu0
    %1796 = vdwg.mxu0
    %1797 = vrot.lane.b32.xlu0 %v728, 96
    %v1798 = vpop.permute.xlu0 %1797
    %1799 = vrot.lane.b32.xlu0 %v729, 96
    %v1800 = vpop.permute.xlu0 %1799
    %1801 = vrot.lane.b32.xlu0 %v730, 96
    %v1802 = vpop.permute.xlu0 %1801
    %1803 = vrot.lane.b32.xlu0 %v891, 96
    %v1804 = vpop.permute.xlu0 %1803
    %1805 = vrot.lane.b32.xlu0 %v892, 96
    %v1806 = vpop.permute.xlu0 %1805
    %1807 = vrot.lane.b32.xlu0 %v893, 96
    %v1808 = vpop.permute.xlu0 %1807
    %1809 = vrot.lane.b32.xlu0 %v894, 96
    %v1810 = vpop.permute.xlu0 %1809
    %v1812 = vsel %vm899, %v1798, 0
    %v1815 = vsel %vm899, %v1800, 0
    %v1818 = vsel %vm899, %v1802, 0
    %v1821 = vsel %vm899, %v1804, 0
    %v1824 = vsel %vm899, %v1806, 0
    %v1827 = vsel %vm899, %v1808, 0
    %v1830 = vsel %vm899, %v1810, 0
    %1832 = vmatprep.subr.bf16.mxu0 0
    %1833 = vmatpush1.bf16.xpose.msra.mxu0 %v1821
    %1834 = vmatprep.subr.bf16.mxu0 0
    %1835 = vmatpush1.bf16.xpose.msra.mxu0 %v1824
    %1836 = vmatprep.subr.bf16.mxu0 0
    %1837 = vmatpush1.bf16.xpose.msra.mxu0 %v1827
    %1838 = vmatprep.subr.bf16.mxu0 0
    %1839 = vmatpush1.bf16.xpose.msra.mxu0 %v1830
    %1840 = vmatprep.subr.bf16.mxu0 0
    %1841 = vmatpush1.bf16.xpose.msra.mxu0 0
    %1842 = vmatprep.subr.bf16.mxu0 0
    %1843 = vmatpush1.bf16.xpose.msra.mxu0 0
    %1844 = vmatprep.subr.bf16.mxu0 0
    %1845 = vmatpush1.bf16.xpose.msra.mxu0 0
    %1846 = vmatprep.subr.bf16.mxu0 0
    %1847 = vmatpush1.bf16.xpose.msra.mxu0 0
    %1848 = vmatprep.subr.bf16.mxu0 0
    %1849 = vmatpush1.bf16.xpose.msra.mxu0 0
    %1850 = vmatprep.subr.bf16.mxu0 0
    %1851 = vmatpush1.bf16.xpose.msra.mxu0 0
    %1852 = vmatprep.subr.bf16.mxu0 0
    %1853 = vmatpush1.bf16.xpose.msra.mxu0 0
    %1854 = vmatprep.subr.bf16.mxu0 0
    %1855 = vmatpush1.bf16.xpose.msra.mxu0 0
    %1856 = vmatprep.subr.bf16.mxu0 0
    %1857 = vmatpush1.bf16.xpose.msra.mxu0 0
    %1858 = vmatprep.subr.bf16.mxu0 0
    %1859 = vmatpush1.bf16.xpose.msra.mxu0 0
    %1860 = vmatprep.subr.bf16.mxu0 0
    %1861 = vmatpush1.bf16.xpose.msra.mxu0 0
    %1862 = vmatprep.subr.bf16.mxu0 0
    %1863 = vmatpush1.bf16.xpose.msra.mxu0 0
    %1864 = vmatprep.mubr.bf16.mxu0 0
    %1865 = vmatmul.mubr.bf16.gmra.mrb[0].mxu0 %v1812
    %v1866 = vpop.f32.mrb[0].mxu0
    %v1867 = vadd.f32 0.0, %v1866
    %v1868 = vpop.f32.mrb[0].mxu0
    %v1869 = vpop.f32.mrb[0].mxu0
    %v1870 = vadd.f32 0.0, %v1869
    %v1871 = vpop.f32.mrb[0].mxu0
    %1872 = vmatprep.mubr.bf16.mxu0 0
    %1873 = vmatmul.mubr.bf16.gmra.mrb[0].mxu0 %v1815
    %v1874 = vpop.f32.mrb[0].mxu0
    %v1875 = vadd.f32 0.0, %v1874
    %v1876 = vpop.f32.mrb[0].mxu0
    %v1877 = vpop.f32.mrb[0].mxu0
    %v1878 = vadd.f32 0.0, %v1877
    %v1879 = vpop.f32.mrb[0].mxu0
    %1880 = vmatprep.mubr.bf16.mxu0 0
    %1881 = vmatmul.mubr.bf16.gmra.mrb[0].mxu0 %v1818
    %v1882 = vpop.f32.mrb[0].mxu0
    %v1883 = vadd.f32 0.0, %v1882
    %v1884 = vpop.f32.mrb[0].mxu0
    %v1885 = vpop.f32.mrb[0].mxu0
    %v1886 = vpop.f32.mrb[0].mxu0
    %1887 = vdwg.mxu0
    %v1888 = vsel %vm370, %v1867, -inf
    %1889 = vmax.xlane.f32.xlu0 %v1888
    %v1890 = vpop.xlane.xlu0 %1889
    %v1891 = vsel %vm370, %v1870, -inf
    %1892 = vmax.xlane.f32.xlu0 %v1891
    %v1893 = vpop.xlane.xlu0 %1892
    %v1894 = vsel %vm370, %v1875, -inf
    %1895 = vmax.xlane.f32.xlu0 %v1894
    %v1896 = vpop.xlane.xlu0 %1895
    %v1897 = vsel %vm370, %v1878, -inf
    %1898 = vmax.xlane.f32.xlu0 %v1897
    %v1899 = vpop.xlane.xlu0 %1898
    %v1900 = vsel %vm370, %v1883, -inf
    %1901 = vmax.xlane.f32.xlu0 %v1900
    %v1902 = vpop.xlane.xlu0 %1901
    %v1903 = vsub.f32 %v1867, %v1890
    %v1904 = vsub.f32 %v1870, %v1893
    %v1905 = vsub.f32 %v1875, %v1896
    %v1906 = vsub.f32 %v1878, %v1899
    %v1907 = vsub.f32 %v1883, %v1902
    %v1908 = vmul.f32 %v1903, 1.442695
    %v1909 = vpow.pop %v1908
    %v1910 = vmul.f32 %v1904, 1.442695
    %v1911 = vpow.pop %v1910
    %v1912 = vmul.f32 %v1905, 1.442695
    %v1913 = vpow.pop %v1912
    %v1914 = vmul.f32 %v1906, 1.442695
    %v1915 = vpow.pop %v1914
    %v1916 = vmul.f32 %v1907, 1.442695
    %v1917 = vpow.pop %v1916
    %v1918 = vsel %vm370, %v1909, 0.0
    %1919 = vadd.xlane.f32.xlu0 %v1918
    %v1920 = vpop.xlane.xlu0 %1919
    %v1921 = vsel %vm370, %v1911, 0.0
    %1922 = vadd.xlane.f32.xlu0 %v1921
    %v1923 = vpop.xlane.xlu0 %1922
    %v1924 = vsel %vm370, %v1913, 0.0
    %1925 = vadd.xlane.f32.xlu0 %v1924
    %v1926 = vpop.xlane.xlu0 %1925
    %v1927 = vsel %vm370, %v1915, 0.0
    %1928 = vadd.xlane.f32.xlu0 %v1927
    %v1929 = vpop.xlane.xlu0 %1928
    %v1930 = vsel %vm370, %v1917, 0.0
    %1931 = vadd.xlane.f32.xlu0 %v1930
    %v1932 = vpop.xlane.xlu0 %1931
    %v1933 = vrcp.pop %v1920
    %v1934 = vrcp.pop %v1923
    %v1935 = vrcp.pop %v1926
    %v1936 = vrcp.pop %v1929
    %v1937 = vrcp.pop %v1932
    %v1938 = vmul.f32 %v1909, %v1933
    %v1939 = vmul.f32 %v1911, %v1934
    %v1940 = vmul.f32 %v1913, %v1935
    %v1941 = vmul.f32 %v1915, %v1936
    %v1942 = vmul.f32 %v1917, %v1937
    %v1943 = vpack.c.bf16 %v1939, %v1938
    %v1944 = vpack.c.bf16 %v1941, %v1940
    %v1945 = vpack.c.bf16 %v1942, %v1942
    %1946 = vrot.lane.b32.xlu0 %v891, 32
    %v1947 = vpop.permute.xlu0 %1946
    %1948 = vrot.lane.b32.xlu0 %v892, 32
    %v1949 = vpop.permute.xlu0 %1948
    %1950 = vrot.lane.b32.xlu0 %v893, 32
    %v1951 = vpop.permute.xlu0 %1950
    %1952 = vrot.lane.b32.xlu0 %v894, 32
    %v1953 = vpop.permute.xlu0 %1952
    %v1959 = vsel %vm370, %v1943, 0
    %v1962 = vsel %vm370, %v1944, 0
    %v1965 = vsel %vm370, %v1945, 0
    %1967 = vmatprep.subr.bf16.mxu0 0
    %1968 = vmatpush1.bf16.msra.mxu0 %v1947
    %1969 = vmatprep.subr.bf16.mxu0 0
    %1970 = vmatpush1.bf16.msra.mxu0 %v1949
    %1971 = vmatprep.subr.bf16.mxu0 0
    %1972 = vmatpush1.bf16.msra.mxu0 %v1951
    %1973 = vmatprep.subr.bf16.mxu0 0
    %1974 = vmatpush1.bf16.msra.mxu0 %v1953
    %1975 = vmatprep.subr.bf16.mxu0 0
    %1976 = vmatpush1.bf16.msra.mxu0 0
    %1977 = vmatprep.subr.bf16.mxu0 0
    %1978 = vmatpush1.bf16.msra.mxu0 0
    %1979 = vmatprep.subr.bf16.mxu0 0
    %1980 = vmatpush1.bf16.msra.mxu0 0
    %1981 = vmatprep.subr.bf16.mxu0 0
    %1982 = vmatpush1.bf16.msra.mxu0 0
    %1983 = vmatprep.subr.bf16.mxu0 0
    %1984 = vmatpush1.bf16.msra.mxu0 0
    %1985 = vmatprep.subr.bf16.mxu0 0
    %1986 = vmatpush1.bf16.msra.mxu0 0
    %1987 = vmatprep.subr.bf16.mxu0 0
    %1988 = vmatpush1.bf16.msra.mxu0 0
    %1989 = vmatprep.subr.bf16.mxu0 0
    %1990 = vmatpush1.bf16.msra.mxu0 0
    %1991 = vmatprep.subr.bf16.mxu0 0
    %1992 = vmatpush1.bf16.msra.mxu0 0
    %1993 = vmatprep.subr.bf16.mxu0 0
    %1994 = vmatpush1.bf16.msra.mxu0 0
    %1995 = vmatprep.subr.bf16.mxu0 0
    %1996 = vmatpush1.bf16.msra.mxu0 0
    %1997 = vmatprep.subr.bf16.mxu0 0
    %1998 = vmatpush1.bf16.msra.mxu0 0
    %1999 = vmatprep.mubr.bf16.mxu0 0
    %2000 = vmatmul.mubr.bf16.gmra.mrb[0].mxu0 %v1959
    %v2001 = vpop.f32.mrb[0].mxu0
    %v2002 = vadd.f32 0.0, %v2001
    %v2003 = vpop.f32.mrb[0].mxu0
    %v2004 = vpop.f32.mrb[0].mxu0
    %v2005 = vadd.f32 0.0, %v2004
    %v2006 = vpop.f32.mrb[0].mxu0
    %2007 = vmatprep.mubr.bf16.mxu0 0
    %2008 = vmatmul.mubr.bf16.gmra.mrb[0].mxu0 %v1962
    %v2009 = vpop.f32.mrb[0].mxu0
    %v2010 = vadd.f32 0.0, %v2009
    %v2011 = vpop.f32.mrb[0].mxu0
    %v2012 = vpop.f32.mrb[0].mxu0
    %v2013 = vadd.f32 0.0, %v2012
    %v2014 = vpop.f32.mrb[0].mxu0
    %2015 = vmatprep.mubr.bf16.mxu0 0
    %2016 = vmatmul.mubr.bf16.gmra.mrb[0].mxu0 %v1965
    %v2017 = vpop.f32.mrb[0].mxu0
    %v2018 = vadd.f32 0.0, %v2017
    %v2019 = vpop.f32.mrb[0].mxu0
    %v2020 = vpop.f32.mrb[0].mxu0
    %v2021 = vpop.f32.mrb[0].mxu0
    %2022 = vdwg.mxu0
    %2023 = vrot.lane.b32.xlu0 %v728, 88
    %v2024 = vpop.permute.xlu0 %2023
    %2025 = vrot.lane.b32.xlu0 %v729, 88
    %v2026 = vpop.permute.xlu0 %2025
    %2027 = vrot.lane.b32.xlu0 %v730, 88
    %v2028 = vpop.permute.xlu0 %2027
    %2029 = vrot.lane.b32.xlu0 %v891, 88
    %v2030 = vpop.permute.xlu0 %2029
    %2031 = vrot.lane.b32.xlu0 %v892, 88
    %v2032 = vpop.permute.xlu0 %2031
    %2033 = vrot.lane.b32.xlu0 %v893, 88
    %v2034 = vpop.permute.xlu0 %2033
    %2035 = vrot.lane.b32.xlu0 %v894, 88
    %v2036 = vpop.permute.xlu0 %2035
    %v2038 = vsel %vm899, %v2024, 0
    %v2041 = vsel %vm899, %v2026, 0
    %v2044 = vsel %vm899, %v2028, 0
    %v2047 = vsel %vm899, %v2030, 0
    %v2050 = vsel %vm899, %v2032, 0
    %v2053 = vsel %vm899, %v2034, 0
    %v2056 = vsel %vm899, %v2036, 0
    %2058 = vmatprep.subr.bf16.mxu0 0
    %2059 = vmatpush1.bf16.xpose.msra.mxu0 %v2047
    %2060 = vmatprep.subr.bf16.mxu0 0
    %2061 = vmatpush1.bf16.xpose.msra.mxu0 %v2050
    %2062 = vmatprep.subr.bf16.mxu0 0
    %2063 = vmatpush1.bf16.xpose.msra.mxu0 %v2053
    %2064 = vmatprep.subr.bf16.mxu0 0
    %2065 = vmatpush1.bf16.xpose.msra.mxu0 %v2056
    %2066 = vmatprep.subr.bf16.mxu0 0
    %2067 = vmatpush1.bf16.xpose.msra.mxu0 0
    %2068 = vmatprep.subr.bf16.mxu0 0
    %2069 = vmatpush1.bf16.xpose.msra.mxu0 0
    %2070 = vmatprep.subr.bf16.mxu0 0
    %2071 = vmatpush1.bf16.xpose.msra.mxu0 0
    %2072 = vmatprep.subr.bf16.mxu0 0
    %2073 = vmatpush1.bf16.xpose.msra.mxu0 0
    %2074 = vmatprep.subr.bf16.mxu0 0
    %2075 = vmatpush1.bf16.xpose.msra.mxu0 0
    %2076 = vmatprep.subr.bf16.mxu0 0
    %2077 = vmatpush1.bf16.xpose.msra.mxu0 0
    %2078 = vmatprep.subr.bf16.mxu0 0
    %2079 = vmatpush1.bf16.xpose.msra.mxu0 0
    %2080 = vmatprep.subr.bf16.mxu0 0
    %2081 = vmatpush1.bf16.xpose.msra.mxu0 0
    %2082 = vmatprep.subr.bf16.mxu0 0
    %2083 = vmatpush1.bf16.xpose.msra.mxu0 0
    %2084 = vmatprep.subr.bf16.mxu0 0
    %2085 = vmatpush1.bf16.xpose.msra.mxu0 0
    %2086 = vmatprep.subr.bf16.mxu0 0
    %2087 = vmatpush1.bf16.xpose.msra.mxu0 0
    %2088 = vmatprep.subr.bf16.mxu0 0
    %2089 = vmatpush1.bf16.xpose.msra.mxu0 0
    %2090 = vmatprep.mubr.bf16.mxu0 0
    %2091 = vmatmul.mubr.bf16.gmra.mrb[0].mxu0 %v2038
    %v2092 = vpop.f32.mrb[0].mxu0
    %v2093 = vadd.f32 0.0, %v2092
    %v2094 = vpop.f32.mrb[0].mxu0
    %v2095 = vpop.f32.mrb[0].mxu0
    %v2096 = vadd.f32 0.0, %v2095
    %v2097 = vpop.f32.mrb[0].mxu0
    %2098 = vmatprep.mubr.bf16.mxu0 0
    %2099 = vmatmul.mubr.bf16.gmra.mrb[0].mxu0 %v2041
    %v2100 = vpop.f32.mrb[0].mxu0
    %v2101 = vadd.f32 0.0, %v2100
    %v2102 = vpop.f32.mrb[0].mxu0
    %v2103 = vpop.f32.mrb[0].mxu0
    %v2104 = vadd.f32 0.0, %v2103
    %v2105 = vpop.f32.mrb[0].mxu0
    %2106 = vmatprep.mubr.bf16.mxu0 0
    %2107 = vmatmul.mubr.bf16.gmra.mrb[0].mxu0 %v2044
    %v2108 = vpop.f32.mrb[0].mxu0
    %v2109 = vadd.f32 0.0, %v2108
    %v2110 = vpop.f32.mrb[0].mxu0
    %v2111 = vpop.f32.mrb[0].mxu0
    %v2112 = vpop.f32.mrb[0].mxu0
    %2113 = vdwg.mxu0
    %v2114 = vsel %vm370, %v2093, -inf
    %2115 = vmax.xlane.f32.xlu0 %v2114
    %v2116 = vpop.xlane.xlu0 %2115
    %v2117 = vsel %vm370, %v2096, -inf
    %2118 = vmax.xlane.f32.xlu0 %v2117
    %v2119 = vpop.xlane.xlu0 %2118
    %v2120 = vsel %vm370, %v2101, -inf
    %2121 = vmax.xlane.f32.xlu0 %v2120
    %v2122 = vpop.xlane.xlu0 %2121
    %v2123 = vsel %vm370, %v2104, -inf
    %2124 = vmax.xlane.f32.xlu0 %v2123
    %v2125 = vpop.xlane.xlu0 %2124
    %v2126 = vsel %vm370, %v2109, -inf
    %2127 = vmax.xlane.f32.xlu0 %v2126
    %v2128 = vpop.xlane.xlu0 %2127
    %v2129 = vsub.f32 %v2093, %v2116
    %v2130 = vsub.f32 %v2096, %v2119
    %v2131 = vsub.f32 %v2101, %v2122
    %v2132 = vsub.f32 %v2104, %v2125
    %v2133 = vsub.f32 %v2109, %v2128
    %v2134 = vmul.f32 %v2129, 1.442695
    %v2135 = vpow.pop %v2134
    %v2136 = vmul.f32 %v2130, 1.442695
    %v2137 = vpow.pop %v2136
    %v2138 = vmul.f32 %v2131, 1.442695
    %v2139 = vpow.pop %v2138
    %v2140 = vmul.f32 %v2132, 1.442695
    %v2141 = vpow.pop %v2140
    %v2142 = vmul.f32 %v2133, 1.442695
    %v2143 = vpow.pop %v2142
    %v2144 = vsel %vm370, %v2135, 0.0
    %2145 = vadd.xlane.f32.xlu0 %v2144
    %v2146 = vpop.xlane.xlu0 %2145
    %v2147 = vsel %vm370, %v2137, 0.0
    %2148 = vadd.xlane.f32.xlu0 %v2147
    %v2149 = vpop.xlane.xlu0 %2148
    %v2150 = vsel %vm370, %v2139, 0.0
    %2151 = vadd.xlane.f32.xlu0 %v2150
    %v2152 = vpop.xlane.xlu0 %2151
    %v2153 = vsel %vm370, %v2141, 0.0
    %2154 = vadd.xlane.f32.xlu0 %v2153
    %v2155 = vpop.xlane.xlu0 %2154
    %v2156 = vsel %vm370, %v2143, 0.0
    %2157 = vadd.xlane.f32.xlu0 %v2156
    %v2158 = vpop.xlane.xlu0 %2157
    %v2159 = vrcp.pop %v2146
    %v2160 = vrcp.pop %v2149
    %v2161 = vrcp.pop %v2152
    %v2162 = vrcp.pop %v2155
    %v2163 = vrcp.pop %v2158
    %v2164 = vmul.f32 %v2135, %v2159
    %v2165 = vmul.f32 %v2137, %v2160
    %v2166 = vmul.f32 %v2139, %v2161
    %v2167 = vmul.f32 %v2141, %v2162
    %v2168 = vmul.f32 %v2143, %v2163
    %v2169 = vpack.c.bf16 %v2165, %v2164
    %v2170 = vpack.c.bf16 %v2167, %v2166
    %v2171 = vpack.c.bf16 %v2168, %v2168
    %2172 = vrot.lane.b32.xlu0 %v891, 24
    %v2173 = vpop.permute.xlu0 %2172
    %2174 = vrot.lane.b32.xlu0 %v892, 24
    %v2175 = vpop.permute.xlu0 %2174
    %2176 = vrot.lane.b32.xlu0 %v893, 24
    %v2177 = vpop.permute.xlu0 %2176
    %2178 = vrot.lane.b32.xlu0 %v894, 24
    %v2179 = vpop.permute.xlu0 %2178
    %v2185 = vsel %vm370, %v2169, 0
    %v2188 = vsel %vm370, %v2170, 0
    %v2191 = vsel %vm370, %v2171, 0
    %2193 = vmatprep.subr.bf16.mxu0 0
    %2194 = vmatpush1.bf16.msra.mxu0 %v2173
    %2195 = vmatprep.subr.bf16.mxu0 0
    %2196 = vmatpush1.bf16.msra.mxu0 %v2175
    %2197 = vmatprep.subr.bf16.mxu0 0
    %2198 = vmatpush1.bf16.msra.mxu0 %v2177
    %2199 = vmatprep.subr.bf16.mxu0 0
    %2200 = vmatpush1.bf16.msra.mxu0 %v2179
    %2201 = vmatprep.subr.bf16.mxu0 0
    %2202 = vmatpush1.bf16.msra.mxu0 0
    %2203 = vmatprep.subr.bf16.mxu0 0
    %2204 = vmatpush1.bf16.msra.mxu0 0
    %2205 = vmatprep.subr.bf16.mxu0 0
    %2206 = vmatpush1.bf16.msra.mxu0 0
    %2207 = vmatprep.subr.bf16.mxu0 0
    %2208 = vmatpush1.bf16.msra.mxu0 0
    %2209 = vmatprep.subr.bf16.mxu0 0
    %2210 = vmatpush1.bf16.msra.mxu0 0
    %2211 = vmatprep.subr.bf16.mxu0 0
    %2212 = vmatpush1.bf16.msra.mxu0 0
    %2213 = vmatprep.subr.bf16.mxu0 0
    %2214 = vmatpush1.bf16.msra.mxu0 0
    %2215 = vmatprep.subr.bf16.mxu0 0
    %2216 = vmatpush1.bf16.msra.mxu0 0
    %2217 = vmatprep.subr.bf16.mxu0 0
    %2218 = vmatpush1.bf16.msra.mxu0 0
    %2219 = vmatprep.subr.bf16.mxu0 0
    %2220 = vmatpush1.bf16.msra.mxu0 0
    %2221 = vmatprep.subr.bf16.mxu0 0
    %2222 = vmatpush1.bf16.msra.mxu0 0
    %2223 = vmatprep.subr.bf16.mxu0 0
    %2224 = vmatpush1.bf16.msra.mxu0 0
    %2225 = vmatprep.mubr.bf16.mxu0 0
    %2226 = vmatmul.mubr.bf16.gmra.mrb[0].mxu0 %v2185
    %v2227 = vpop.f32.mrb[0].mxu0
    %v2228 = vadd.f32 0.0, %v2227
    %v2229 = vpop.f32.mrb[0].mxu0
    %v2230 = vpop.f32.mrb[0].mxu0
    %v2231 = vadd.f32 0.0, %v2230
    %v2232 = vpop.f32.mrb[0].mxu0
    %2233 = vmatprep.mubr.bf16.mxu0 0
    %2234 = vmatmul.mubr.bf16.gmra.mrb[0].mxu0 %v2188
    %v2235 = vpop.f32.mrb[0].mxu0
    %v2236 = vadd.f32 0.0, %v2235
    %v2237 = vpop.f32.mrb[0].mxu0
    %v2238 = vpop.f32.mrb[0].mxu0
    %v2239 = vadd.f32 0.0, %v2238
    %v2240 = vpop.f32.mrb[0].mxu0
    %2241 = vmatprep.mubr.bf16.mxu0 0
    %2242 = vmatmul.mubr.bf16.gmra.mrb[0].mxu0 %v2191
    %v2243 = vpop.f32.mrb[0].mxu0
    %v2244 = vadd.f32 0.0, %v2243
    %v2245 = vpop.f32.mrb[0].mxu0
    %v2246 = vpop.f32.mrb[0].mxu0
    %v2247 = vpop.f32.mrb[0].mxu0
    %2248 = vdwg.mxu0
    %2249 = vrot.lane.b32.xlu0 %v728, 80
    %v2250 = vpop.permute.xlu0 %2249
    %2251 = vrot.lane.b32.xlu0 %v729, 80
    %v2252 = vpop.permute.xlu0 %2251
    %2253 = vrot.lane.b32.xlu0 %v730, 80
    %v2254 = vpop.permute.xlu0 %2253
    %2255 = vrot.lane.b32.xlu0 %v891, 80
    %v2256 = vpop.permute.xlu0 %2255
    %2257 = vrot.lane.b32.xlu0 %v892, 80
    %v2258 = vpop.permute.xlu0 %2257
    %2259 = vrot.lane.b32.xlu0 %v893, 80
    %v2260 = vpop.permute.xlu0 %2259
    %2261 = vrot.lane.b32.xlu0 %v894, 80
    %v2262 = vpop.permute.xlu0 %2261
    %v2264 = vsel %vm899, %v2250, 0
    %v2267 = vsel %vm899, %v2252, 0
    %v2270 = vsel %vm899, %v2254, 0
    %v2273 = vsel %vm899, %v2256, 0
    %v2276 = vsel %vm899, %v2258, 0
    %v2279 = vsel %vm899, %v2260, 0
    %v2282 = vsel %vm899, %v2262, 0
    %2284 = vmatprep.subr.bf16.mxu0 0
    %2285 = vmatpush1.bf16.xpose.msra.mxu0 %v2273
    %2286 = vmatprep.subr.bf16.mxu0 0
    %2287 = vmatpush1.bf16.xpose.msra.mxu0 %v2276
    %2288 = vmatprep.subr.bf16.mxu0 0
    %2289 = vmatpush1.bf16.xpose.msra.mxu0 %v2279
    %2290 = vmatprep.subr.bf16.mxu0 0
    %2291 = vmatpush1.bf16.xpose.msra.mxu0 %v2282
    %2292 = vmatprep.subr.bf16.mxu0 0
    %2293 = vmatpush1.bf16.xpose.msra.mxu0 0
    %2294 = vmatprep.subr.bf16.mxu0 0
    %2295 = vmatpush1.bf16.xpose.msra.mxu0 0
    %2296 = vmatprep.subr.bf16.mxu0 0
    %2297 = vmatpush1.bf16.xpose.msra.mxu0 0
    %2298 = vmatprep.subr.bf16.mxu0 0
    %2299 = vmatpush1.bf16.xpose.msra.mxu0 0
    %2300 = vmatprep.subr.bf16.mxu0 0
    %2301 = vmatpush1.bf16.xpose.msra.mxu0 0
    %2302 = vmatprep.subr.bf16.mxu0 0
    %2303 = vmatpush1.bf16.xpose.msra.mxu0 0
    %2304 = vmatprep.subr.bf16.mxu0 0
    %2305 = vmatpush1.bf16.xpose.msra.mxu0 0
    %2306 = vmatprep.subr.bf16.mxu0 0
    %2307 = vmatpush1.bf16.xpose.msra.mxu0 0
    %2308 = vmatprep.subr.bf16.mxu0 0
    %2309 = vmatpush1.bf16.xpose.msra.mxu0 0
    %2310 = vmatprep.subr.bf16.mxu0 0
    %2311 = vmatpush1.bf16.xpose.msra.mxu0 0
    %2312 = vmatprep.subr.bf16.mxu0 0
    %2313 = vmatpush1.bf16.xpose.msra.mxu0 0
    %2314 = vmatprep.subr.bf16.mxu0 0
    %2315 = vmatpush1.bf16.xpose.msra.mxu0 0
    %2316 = vmatprep.mubr.bf16.mxu0 0
    %2317 = vmatmul.mubr.bf16.gmra.mrb[0].mxu0 %v2264
    %v2318 = vpop.f32.mrb[0].mxu0
    %v2319 = vadd.f32 0.0, %v2318
    %v2320 = vpop.f32.mrb[0].mxu0
    %v2321 = vpop.f32.mrb[0].mxu0
    %v2322 = vadd.f32 0.0, %v2321
    %v2323 = vpop.f32.mrb[0].mxu0
    %2324 = vmatprep.mubr.bf16.mxu0 0
    %2325 = vmatmul.mubr.bf16.gmra.mrb[0].mxu0 %v2267
    %v2326 = vpop.f32.mrb[0].mxu0
    %v2327 = vadd.f32 0.0, %v2326
    %v2328 = vpop.f32.mrb[0].mxu0
    %v2329 = vpop.f32.mrb[0].mxu0
    %v2330 = vadd.f32 0.0, %v2329
    %v2331 = vpop.f32.mrb[0].mxu0
    %2332 = vmatprep.mubr.bf16.mxu0 0
    %2333 = vmatmul.mubr.bf16.gmra.mrb[0].mxu0 %v2270
    %v2334 = vpop.f32.mrb[0].mxu0
    %v2335 = vadd.f32 0.0, %v2334
    %v2336 = vpop.f32.mrb[0].mxu0
    %v2337 = vpop.f32.mrb[0].mxu0
    %v2338 = vpop.f32.mrb[0].mxu0
    %2339 = vdwg.mxu0
    %v2340 = vsel %vm370, %v2319, -inf
    %2341 = vmax.xlane.f32.xlu0 %v2340
    %v2342 = vpop.xlane.xlu0 %2341
    %v2343 = vsel %vm370, %v2322, -inf
    %2344 = vmax.xlane.f32.xlu0 %v2343
    %v2345 = vpop.xlane.xlu0 %2344
    %v2346 = vsel %vm370, %v2327, -inf
    %2347 = vmax.xlane.f32.xlu0 %v2346
    %v2348 = vpop.xlane.xlu0 %2347
    %v2349 = vsel %vm370, %v2330, -inf
    %2350 = vmax.xlane.f32.xlu0 %v2349
    %v2351 = vpop.xlane.xlu0 %2350
    %v2352 = vsel %vm370, %v2335, -inf
    %2353 = vmax.xlane.f32.xlu0 %v2352
    %v2354 = vpop.xlane.xlu0 %2353
    %v2355 = vsub.f32 %v2319, %v2342
    %v2356 = vsub.f32 %v2322, %v2345
    %v2357 = vsub.f32 %v2327, %v2348
    %v2358 = vsub.f32 %v2330, %v2351
    %v2359 = vsub.f32 %v2335, %v2354
    %v2360 = vmul.f32 %v2355, 1.442695
    %v2361 = vpow.pop %v2360
    %v2362 = vmul.f32 %v2356, 1.442695
    %v2363 = vpow.pop %v2362
    %v2364 = vmul.f32 %v2357, 1.442695
    %v2365 = vpow.pop %v2364
    %v2366 = vmul.f32 %v2358, 1.442695
    %v2367 = vpow.pop %v2366
    %v2368 = vmul.f32 %v2359, 1.442695
    %v2369 = vpow.pop %v2368
    %v2370 = vsel %vm370, %v2361, 0.0
    %2371 = vadd.xlane.f32.xlu0 %v2370
    %v2372 = vpop.xlane.xlu0 %2371
    %v2373 = vsel %vm370, %v2363, 0.0
    %2374 = vadd.xlane.f32.xlu0 %v2373
    %v2375 = vpop.xlane.xlu0 %2374
    %v2376 = vsel %vm370, %v2365, 0.0
    %2377 = vadd.xlane.f32.xlu0 %v2376
    %v2378 = vpop.xlane.xlu0 %2377
    %v2379 = vsel %vm370, %v2367, 0.0
    %2380 = vadd.xlane.f32.xlu0 %v2379
    %v2381 = vpop.xlane.xlu0 %2380
    %v2382 = vsel %vm370, %v2369, 0.0
    %2383 = vadd.xlane.f32.xlu0 %v2382
    %v2384 = vpop.xlane.xlu0 %2383
    %v2385 = vrcp.pop %v2372
    %v2386 = vrcp.pop %v2375
    %v2387 = vrcp.pop %v2378
    %v2388 = vrcp.pop %v2381
    %v2389 = vrcp.pop %v2384
    %v2390 = vmul.f32 %v2361, %v2385
    %v2391 = vmul.f32 %v2363, %v2386
    %v2392 = vmul.f32 %v2365, %v2387
    %v2393 = vmul.f32 %v2367, %v2388
    %v2394 = vmul.f32 %v2369, %v2389
    %v2395 = vpack.c.bf16 %v2391, %v2390
    %v2396 = vpack.c.bf16 %v2393, %v2392
    %v2397 = vpack.c.bf16 %v2394, %v2394
    %2398 = vrot.lane.b32.xlu0 %v891, 16
    %v2399 = vpop.permute.xlu0 %2398
    %2400 = vrot.lane.b32.xlu0 %v892, 16
    %v2401 = vpop.permute.xlu0 %2400
    %2402 = vrot.lane.b32.xlu0 %v893, 16
    %v2403 = vpop.permute.xlu0 %2402
    %2404 = vrot.lane.b32.xlu0 %v894, 16
    %v2405 = vpop.permute.xlu0 %2404
    %v2411 = vsel %vm370, %v2395, 0
    %v2414 = vsel %vm370, %v2396, 0
    %v2417 = vsel %vm370, %v2397, 0
    %2419 = vmatprep.subr.bf16.mxu0 0
    %2420 = vmatpush1.bf16.msra.mxu0 %v2399
    %2421 = vmatprep.subr.bf16.mxu0 0
    %2422 = vmatpush1.bf16.msra.mxu0 %v2401
    %2423 = vmatprep.subr.bf16.mxu0 0
    %2424 = vmatpush1.bf16.msra.mxu0 %v2403
    %2425 = vmatprep.subr.bf16.mxu0 0
    %2426 = vmatpush1.bf16.msra.mxu0 %v2405
    %2427 = vmatprep.subr.bf16.mxu0 0
    %2428 = vmatpush1.bf16.msra.mxu0 0
    %2429 = vmatprep.subr.bf16.mxu0 0
    %2430 = vmatpush1.bf16.msra.mxu0 0
    %2431 = vmatprep.subr.bf16.mxu0 0
    %2432 = vmatpush1.bf16.msra.mxu0 0
    %2433 = vmatprep.subr.bf16.mxu0 0
    %2434 = vmatpush1.bf16.msra.mxu0 0
    %2435 = vmatprep.subr.bf16.mxu0 0
    %2436 = vmatpush1.bf16.msra.mxu0 0
    %2437 = vmatprep.subr.bf16.mxu0 0
    %2438 = vmatpush1.bf16.msra.mxu0 0
    %2439 = vmatprep.subr.bf16.mxu0 0
    %2440 = vmatpush1.bf16.msra.mxu0 0
    %2441 = vmatprep.subr.bf16.mxu0 0
    %2442 = vmatpush1.bf16.msra.mxu0 0
    %2443 = vmatprep.subr.bf16.mxu0 0
    %2444 = vmatpush1.bf16.msra.mxu0 0
    %2445 = vmatprep.subr.bf16.mxu0 0
    %2446 = vmatpush1.bf16.msra.mxu0 0
    %2447 = vmatprep.subr.bf16.mxu0 0
    %2448 = vmatpush1.bf16.msra.mxu0 0
    %2449 = vmatprep.subr.bf16.mxu0 0
    %2450 = vmatpush1.bf16.msra.mxu0 0
    %2451 = vmatprep.mubr.bf16.mxu0 0
    %2452 = vmatmul.mubr.bf16.gmra.mrb[0].mxu0 %v2411
    %v2453 = vpop.f32.mrb[0].mxu0
    %v2454 = vadd.f32 0.0, %v2453
    %v2455 = vpop.f32.mrb[0].mxu0
    %v2456 = vpop.f32.mrb[0].mxu0
    %v2457 = vadd.f32 0.0, %v2456
    %v2458 = vpop.f32.mrb[0].mxu0
    %2459 = vmatprep.mubr.bf16.mxu0 0
    %2460 = vmatmul.mubr.bf16.gmra.mrb[0].mxu0 %v2414
    %v2461 = vpop.f32.mrb[0].mxu0
    %v2462 = vadd.f32 0.0, %v2461
    %v2463 = vpop.f32.mrb[0].mxu0
    %v2464 = vpop.f32.mrb[0].mxu0
    %v2465 = vadd.f32 0.0, %v2464
    %v2466 = vpop.f32.mrb[0].mxu0
    %2467 = vmatprep.mubr.bf16.mxu0 0
    %2468 = vmatmul.mubr.bf16.gmra.mrb[0].mxu0 %v2417
    %v2469 = vpop.f32.mrb[0].mxu0
    %v2470 = vadd.f32 0.0, %v2469
    %v2471 = vpop.f32.mrb[0].mxu0
    %v2472 = vpop.f32.mrb[0].mxu0
    %v2473 = vpop.f32.mrb[0].mxu0
    %2474 = vdwg.mxu0
    %2475 = vrot.lane.b32.xlu0 %v728, 72
    %v2476 = vpop.permute.xlu0 %2475
    %2477 = vrot.lane.b32.xlu0 %v729, 72
    %v2478 = vpop.permute.xlu0 %2477
    %2479 = vrot.lane.b32.xlu0 %v730, 72
    %v2480 = vpop.permute.xlu0 %2479
    %2481 = vrot.lane.b32.xlu0 %v891, 72
    %v2482 = vpop.permute.xlu0 %2481
    %2483 = vrot.lane.b32.xlu0 %v892, 72
    %v2484 = vpop.permute.xlu0 %2483
    %2485 = vrot.lane.b32.xlu0 %v893, 72
    %v2486 = vpop.permute.xlu0 %2485
    %2487 = vrot.lane.b32.xlu0 %v894, 72
    %v2488 = vpop.permute.xlu0 %2487
    %v2490 = vsel %vm899, %v2476, 0
    %v2493 = vsel %vm899, %v2478, 0
    %v2496 = vsel %vm899, %v2480, 0
    %v2499 = vsel %vm899, %v2482, 0
    %v2502 = vsel %vm899, %v2484, 0
    %v2505 = vsel %vm899, %v2486, 0
    %v2508 = vsel %vm899, %v2488, 0
    %2510 = vmatprep.subr.bf16.mxu0 0
    %2511 = vmatpush1.bf16.xpose.msra.mxu0 %v2499
    %2512 = vmatprep.subr.bf16.mxu0 0
    %2513 = vmatpush1.bf16.xpose.msra.mxu0 %v2502
    %2514 = vmatprep.subr.bf16.mxu0 0
    %2515 = vmatpush1.bf16.xpose.msra.mxu0 %v2505
    %2516 = vmatprep.subr.bf16.mxu0 0
    %2517 = vmatpush1.bf16.xpose.msra.mxu0 %v2508
    %2518 = vmatprep.subr.bf16.mxu0 0
    %2519 = vmatpush1.bf16.xpose.msra.mxu0 0
    %2520 = vmatprep.subr.bf16.mxu0 0
    %2521 = vmatpush1.bf16.xpose.msra.mxu0 0
    %2522 = vmatprep.subr.bf16.mxu0 0
    %2523 = vmatpush1.bf16.xpose.msra.mxu0 0
    %2524 = vmatprep.subr.bf16.mxu0 0
    %2525 = vmatpush1.bf16.xpose.msra.mxu0 0
    %2526 = vmatprep.subr.bf16.mxu0 0
    %2527 = vmatpush1.bf16.xpose.msra.mxu0 0
    %2528 = vmatprep.subr.bf16.mxu0 0
    %2529 = vmatpush1.bf16.xpose.msra.mxu0 0
    %2530 = vmatprep.subr.bf16.mxu0 0
    %2531 = vmatpush1.bf16.xpose.msra.mxu0 0
    %2532 = vmatprep.subr.bf16.mxu0 0
    %2533 = vmatpush1.bf16.xpose.msra.mxu0 0
    %2534 = vmatprep.subr.bf16.mxu0 0
    %2535 = vmatpush1.bf16.xpose.msra.mxu0 0
    %2536 = vmatprep.subr.bf16.mxu0 0
    %2537 = vmatpush1.bf16.xpose.msra.mxu0 0
    %2538 = vmatprep.subr.bf16.mxu0 0
    %2539 = vmatpush1.bf16.xpose.msra.mxu0 0
    %2540 = vmatprep.subr.bf16.mxu0 0
    %2541 = vmatpush1.bf16.xpose.msra.mxu0 0
    %2542 = vmatprep.mubr.bf16.mxu0 0
    %2543 = vmatmul.mubr.bf16.gmra.mrb[0].mxu0 %v2490
    %v2544 = vpop.f32.mrb[0].mxu0
    %v2545 = vadd.f32 0.0, %v2544
    %v2546 = vpop.f32.mrb[0].mxu0
    %v2547 = vpop.f32.mrb[0].mxu0
    %v2548 = vadd.f32 0.0, %v2547
    %v2549 = vpop.f32.mrb[0].mxu0
    %2550 = vmatprep.mubr.bf16.mxu0 0
    %2551 = vmatmul.mubr.bf16.gmra.mrb[0].mxu0 %v2493
    %v2552 = vpop.f32.mrb[0].mxu0
    %v2553 = vadd.f32 0.0, %v2552
    %v2554 = vpop.f32.mrb[0].mxu0
    %v2555 = vpop.f32.mrb[0].mxu0
    %v2556 = vadd.f32 0.0, %v2555
    %v2557 = vpop.f32.mrb[0].mxu0
    %2558 = vmatprep.mubr.bf16.mxu0 0
    %2559 = vmatmul.mubr.bf16.gmra.mrb[0].mxu0 %v2496
    %v2560 = vpop.f32.mrb[0].mxu0
    %v2561 = vadd.f32 0.0, %v2560
    %v2562 = vpop.f32.mrb[0].mxu0
    %v2563 = vpop.f32.mrb[0].mxu0
    %v2564 = vpop.f32.mrb[0].mxu0
    %2565 = vdwg.mxu0
    %v2566 = vsel %vm370, %v2545, -inf
    %2567 = vmax.xlane.f32.xlu0 %v2566
    %v2568 = vpop.xlane.xlu0 %2567
    %v2569 = vsel %vm370, %v2548, -inf
    %2570 = vmax.xlane.f32.xlu0 %v2569
    %v2571 = vpop.xlane.xlu0 %2570
    %v2572 = vsel %vm370, %v2553, -inf
    %2573 = vmax.xlane.f32.xlu0 %v2572
    %v2574 = vpop.xlane.xlu0 %2573
    %v2575 = vsel %vm370, %v2556, -inf
    %2576 = vmax.xlane.f32.xlu0 %v2575
    %v2577 = vpop.xlane.xlu0 %2576
    %v2578 = vsel %vm370, %v2561, -inf
    %2579 = vmax.xlane.f32.xlu0 %v2578
    %v2580 = vpop.xlane.xlu0 %2579
    %v2581 = vsub.f32 %v2545, %v2568
    %v2582 = vsub.f32 %v2548, %v2571
    %v2583 = vsub.f32 %v2553, %v2574
    %v2584 = vsub.f32 %v2556, %v2577
    %v2585 = vsub.f32 %v2561, %v2580
    %v2586 = vmul.f32 %v2581, 1.442695
    %v2587 = vpow.pop %v2586
    %v2588 = vmul.f32 %v2582, 1.442695
    %v2589 = vpow.pop %v2588
    %v2590 = vmul.f32 %v2583, 1.442695
    %v2591 = vpow.pop %v2590
    %v2592 = vmul.f32 %v2584, 1.442695
    %v2593 = vpow.pop %v2592
    %v2594 = vmul.f32 %v2585, 1.442695
    %v2595 = vpow.pop %v2594
    %v2596 = vsel %vm370, %v2587, 0.0
    %2597 = vadd.xlane.f32.xlu0 %v2596
    %v2598 = vpop.xlane.xlu0 %2597
    %v2599 = vsel %vm370, %v2589, 0.0
    %2600 = vadd.xlane.f32.xlu0 %v2599
    %v2601 = vpop.xlane.xlu0 %2600
    %v2602 = vsel %vm370, %v2591, 0.0
    %2603 = vadd.xlane.f32.xlu0 %v2602
    %v2604 = vpop.xlane.xlu0 %2603
    %v2605 = vsel %vm370, %v2593, 0.0
    %2606 = vadd.xlane.f32.xlu0 %v2605
    %v2607 = vpop.xlane.xlu0 %2606
    %v2608 = vsel %vm370, %v2595, 0.0
    %2609 = vadd.xlane.f32.xlu0 %v2608
    %v2610 = vpop.xlane.xlu0 %2609
    %v2611 = vrcp.pop %v2598
    %v2612 = vrcp.pop %v2601
    %v2613 = vrcp.pop %v2604
    %v2614 = vrcp.pop %v2607
    %v2615 = vrcp.pop %v2610
    %v2616 = vmul.f32 %v2587, %v2611
    %v2617 = vmul.f32 %v2589, %v2612
    %v2618 = vmul.f32 %v2591, %v2613
    %v2619 = vmul.f32 %v2593, %v2614
    %v2620 = vmul.f32 %v2595, %v2615
    %v2621 = vpack.c.bf16 %v2617, %v2616
    %v2622 = vpack.c.bf16 %v2619, %v2618
    %v2623 = vpack.c.bf16 %v2620, %v2620
    %2624 = vrot.lane.b32.xlu0 %v891, 8
    %v2625 = vpop.permute.xlu0 %2624
    %2626 = vrot.lane.b32.xlu0 %v892, 8
    %v2627 = vpop.permute.xlu0 %2626
    %2628 = vrot.lane.b32.xlu0 %v893, 8
    %v2629 = vpop.permute.xlu0 %2628
    %2630 = vrot.lane.b32.xlu0 %v894, 8
    %v2631 = vpop.permute.xlu0 %2630
    %v2637 = vsel %vm370, %v2621, 0
    %v2640 = vsel %vm370, %v2622, 0
    %v2643 = vsel %vm370, %v2623, 0
    %2645 = vmatprep.subr.bf16.mxu0 0
    %2646 = vmatpush1.bf16.msra.mxu0 %v2625
    %2647 = vmatprep.subr.bf16.mxu0 0
    %2648 = vmatpush1.bf16.msra.mxu0 %v2627
    %2649 = vmatprep.subr.bf16.mxu0 0
    %2650 = vmatpush1.bf16.msra.mxu0 %v2629
    %2651 = vmatprep.subr.bf16.mxu0 0
    %2652 = vmatpush1.bf16.msra.mxu0 %v2631
    %2653 = vmatprep.subr.bf16.mxu0 0
    %2654 = vmatpush1.bf16.msra.mxu0 0
    %2655 = vmatprep.subr.bf16.mxu0 0
    %2656 = vmatpush1.bf16.msra.mxu0 0
    %2657 = vmatprep.subr.bf16.mxu0 0
    %2658 = vmatpush1.bf16.msra.mxu0 0
    %2659 = vmatprep.subr.bf16.mxu0 0
    %2660 = vmatpush1.bf16.msra.mxu0 0
    %2661 = vmatprep.subr.bf16.mxu0 0
    %2662 = vmatpush1.bf16.msra.mxu0 0
    %2663 = vmatprep.subr.bf16.mxu0 0
    %2664 = vmatpush1.bf16.msra.mxu0 0
    %2665 = vmatprep.subr.bf16.mxu0 0
    %2666 = vmatpush1.bf16.msra.mxu0 0
    %2667 = vmatprep.subr.bf16.mxu0 0
    %2668 = vmatpush1.bf16.msra.mxu0 0
    %2669 = vmatprep.subr.bf16.mxu0 0
    %2670 = vmatpush1.bf16.msra.mxu0 0
    %2671 = vmatprep.subr.bf16.mxu0 0
    %2672 = vmatpush1.bf16.msra.mxu0 0
    %2673 = vmatprep.subr.bf16.mxu0 0
    %2674 = vmatpush1.bf16.msra.mxu0 0
    %2675 = vmatprep.subr.bf16.mxu0 0
    %2676 = vmatpush1.bf16.msra.mxu0 0
    %2677 = vmatprep.mubr.bf16.mxu0 0
    %2678 = vmatmul.mubr.bf16.gmra.mrb[0].mxu0 %v2637
    %v2679 = vpop.f32.mrb[0].mxu0
    %v2680 = vadd.f32 0.0, %v2679
    %v2681 = vpop.f32.mrb[0].mxu0
    %v2682 = vpop.f32.mrb[0].mxu0
    %v2683 = vadd.f32 0.0, %v2682
    %v2684 = vpop.f32.mrb[0].mxu0
    %2685 = vmatprep.mubr.bf16.mxu0 0
    %2686 = vmatmul.mubr.bf16.gmra.mrb[0].mxu0 %v2640
    %v2687 = vpop.f32.mrb[0].mxu0
    %v2688 = vadd.f32 0.0, %v2687
    %v2689 = vpop.f32.mrb[0].mxu0
    %v2690 = vpop.f32.mrb[0].mxu0
    %v2691 = vadd.f32 0.0, %v2690
    %v2692 = vpop.f32.mrb[0].mxu0
    %2693 = vmatprep.mubr.bf16.mxu0 0
    %2694 = vmatmul.mubr.bf16.gmra.mrb[0].mxu0 %v2643
    %v2695 = vpop.f32.mrb[0].mxu0
    %v2696 = vadd.f32 0.0, %v2695
    %v2697 = vpop.f32.mrb[0].mxu0
    %v2698 = vpop.f32.mrb[0].mxu0
    %v2699 = vpop.f32.mrb[0].mxu0
    %2700 = vdwg.mxu0
    %2706 = vrot.lane.b32.xlu0 %v1324, 8
    %v2707 = vpop.permute.xlu0 %2706
    %2708 = vrot.lane.b32.xlu0 %v1327, 8
    %v2709 = vpop.permute.xlu0 %2708
    %2710 = vrot.lane.b32.xlu0 %v1332, 8
    %v2711 = vpop.permute.xlu0 %2710
    %2712 = vrot.lane.b32.xlu0 %v1335, 8
    %v2713 = vpop.permute.xlu0 %2712
    %2714 = vrot.lane.b32.xlu0 %v1340, 8
    %v2715 = vpop.permute.xlu0 %2714
    %2726 = vrot.lane.b32.xlu0 %v1550, 16
    %v2727 = vpop.permute.xlu0 %2726
    %2728 = vrot.lane.b32.xlu0 %v1553, 16
    %v2729 = vpop.permute.xlu0 %2728
    %2730 = vrot.lane.b32.xlu0 %v1558, 16
    %v2731 = vpop.permute.xlu0 %2730
    %2732 = vrot.lane.b32.xlu0 %v1561, 16
    %v2733 = vpop.permute.xlu0 %2732
    %2734 = vrot.lane.b32.xlu0 %v1566, 16
    %v2735 = vpop.permute.xlu0 %2734
    %2746 = vrot.lane.b32.xlu0 %v1776, 24
    %v2747 = vpop.permute.xlu0 %2746
    %2748 = vrot.lane.b32.xlu0 %v1779, 24
    %v2749 = vpop.permute.xlu0 %2748
    %2750 = vrot.lane.b32.xlu0 %v1784, 24
    %v2751 = vpop.permute.xlu0 %2750
    %2752 = vrot.lane.b32.xlu0 %v1787, 24
    %v2753 = vpop.permute.xlu0 %2752
    %2754 = vrot.lane.b32.xlu0 %v1792, 24
    %v2755 = vpop.permute.xlu0 %2754
    %2766 = vrot.lane.b32.xlu0 %v2002, 32
    %v2767 = vpop.permute.xlu0 %2766
    %2768 = vrot.lane.b32.xlu0 %v2005, 32
    %v2769 = vpop.permute.xlu0 %2768
    %2770 = vrot.lane.b32.xlu0 %v2010, 32
    %v2771 = vpop.permute.xlu0 %2770
    %2772 = vrot.lane.b32.xlu0 %v2013, 32
    %v2773 = vpop.permute.xlu0 %2772
    %2774 = vrot.lane.b32.xlu0 %v2018, 32
    %v2775 = vpop.permute.xlu0 %2774
    %2786 = vrot.lane.b32.xlu0 %v2228, 40
    %v2787 = vpop.permute.xlu0 %2786
    %2788 = vrot.lane.b32.xlu0 %v2231, 40
    %v2789 = vpop.permute.xlu0 %2788
    %2790 = vrot.lane.b32.xlu0 %v2236, 40
    %v2791 = vpop.permute.xlu0 %2790
    %2792 = vrot.lane.b32.xlu0 %v2239, 40
    %v2793 = vpop.permute.xlu0 %2792
    %2794 = vrot.lane.b32.xlu0 %v2244, 40
    %v2795 = vpop.permute.xlu0 %2794
    %2806 = vrot.lane.b32.xlu0 %v2454, 48
    %v2807 = vpop.permute.xlu0 %2806
    %2808 = vrot.lane.b32.xlu0 %v2457, 48
    %v2809 = vpop.permute.xlu0 %2808
    %2810 = vrot.lane.b32.xlu0 %v2462, 48
    %v2811 = vpop.permute.xlu0 %2810
    %2812 = vrot.lane.b32.xlu0 %v2465, 48
    %v2813 = vpop.permute.xlu0 %2812
    %2814 = vrot.lane.b32.xlu0 %v2470, 48
    %v2815 = vpop.permute.xlu0 %2814
    %2826 = vrot.lane.b32.xlu0 %v2680, 56
    %v2827 = vpop.permute.xlu0 %2826
    %2828 = vrot.lane.b32.xlu0 %v2683, 56
    %v2829 = vpop.permute.xlu0 %2828
    %2830 = vrot.lane.b32.xlu0 %v2688, 56
    %v2831 = vpop.permute.xlu0 %2830
    %2832 = vrot.lane.b32.xlu0 %v2691, 56
    %v2833 = vpop.permute.xlu0 %2832
    %2834 = vrot.lane.b32.xlu0 %v2696, 56
    %v2835 = vpop.permute.xlu0 %2834
    %v2841 = vsel %vm899, %v1095, %v2707
    %v2842 = vsel %vm899, %v1098, %v2709
    %v2843 = vsel %vm899, %v1103, %v2711
    %v2844 = vsel %vm899, %v1106, %v2713
    %v2845 = vsel %vm899, %v1111, %v2715
    %vm2846 = vcmask 130048
    %v2847 = vsel %vm2846, %v2841, %v2727
    %v2848 = vsel %vm2846, %v2842, %v2729
    %v2849 = vsel %vm2846, %v2843, %v2731
    %v2850 = vsel %vm2846, %v2844, %v2733
    %v2851 = vsel %vm2846, %v2845, %v2735
    %vm2852 = vcmask 195584
    %v2853 = vsel %vm2852, %v2847, %v2747
    %v2854 = vsel %vm2852, %v2848, %v2749
    %v2855 = vsel %vm2852, %v2849, %v2751
    %v2856 = vsel %vm2852, %v2850, %v2753
    %v2857 = vsel %vm2852, %v2851, %v2755
    %v2858 = vsel %vm161, %v2853, %v2767
    %v2859 = vsel %vm161, %v2854, %v2769
    %v2860 = vsel %vm161, %v2855, %v2771
    %v2861 = vsel %vm161, %v2856, %v2773
    %v2862 = vsel %vm161, %v2857, %v2775
    %vm2863 = vcmask 326656
    %v2864 = vsel %vm2863, %v2858, %v2787
    %v2865 = vsel %vm2863, %v2859, %v2789
    %v2866 = vsel %vm2863, %v2860, %v2791
    %v2867 = vsel %vm2863, %v2861, %v2793
    %v2868 = vsel %vm2863, %v2862, %v2795
    %vm2869 = vcmask 392192
    %v2870 = vsel %vm2869, %v2864, %v2807
    %v2871 = vsel %vm2869, %v2865, %v2809
    %v2872 = vsel %vm2869, %v2866, %v2811
    %v2873 = vsel %vm2869, %v2867, %v2813
    %v2874 = vsel %vm2869, %v2868, %v2815
    %vm2875 = vcmask 457728
    %v2876 = vsel %vm2875, %v2870, %v2827
    %v2877 = vsel %vm2875, %v2871, %v2829
    %v2878 = vsel %vm2875, %v2872, %v2831
    %v2879 = vsel %vm2875, %v2873, %v2833
    %v2880 = vsel %vm2875, %v2874, %v2835
    %v2882 = vsel %vm899, %v895, 0
    %v2885 = vsel %vm899, %v896, 0
    %v2888 = vsel %vm899, %v897, 0
    %v2891 = vsel %vm899, %v898, 0
    %2893 = vmatprep.subr.bf16.mxu0 0
    %2894 = vmatpush1.bf16.xpose.msra.mxu0 %v2882
    %2895 = vmatprep.subr.bf16.mxu0 0
    %2896 = vmatpush1.bf16.xpose.msra.mxu0 %v2885
    %2897 = vmatprep.subr.bf16.mxu0 0
    %2898 = vmatpush1.bf16.xpose.msra.mxu0 %v2888
    %2899 = vmatprep.subr.bf16.mxu0 0
    %2900 = vmatpush1.bf16.xpose.msra.mxu0 %v2891
    %2901 = vmatprep.subr.bf16.mxu0 0
    %2902 = vmatpush1.bf16.xpose.msra.mxu0 0
    %2903 = vmatprep.subr.bf16.mxu0 0
    %2904 = vmatpush1.bf16.xpose.msra.mxu0 0
    %2905 = vmatprep.subr.bf16.mxu0 0
    %2906 = vmatpush1.bf16.xpose.msra.mxu0 0
    %2907 = vmatprep.subr.bf16.mxu0 0
    %2908 = vmatpush1.bf16.xpose.msra.mxu0 0
    %2909 = vmatprep.subr.bf16.mxu0 0
    %2910 = vmatpush1.bf16.xpose.msra.mxu0 0
    %2911 = vmatprep.subr.bf16.mxu0 0
    %2912 = vmatpush1.bf16.xpose.msra.mxu0 0
    %2913 = vmatprep.subr.bf16.mxu0 0
    %2914 = vmatpush1.bf16.xpose.msra.mxu0 0
    %2915 = vmatprep.subr.bf16.mxu0 0
    %2916 = vmatpush1.bf16.xpose.msra.mxu0 0
    %2917 = vmatprep.subr.bf16.mxu0 0
    %2918 = vmatpush1.bf16.xpose.msra.mxu0 0
    %2919 = vmatprep.subr.bf16.mxu0 0
    %2920 = vmatpush1.bf16.xpose.msra.mxu0 0
    %2921 = vmatprep.subr.bf16.mxu0 0
    %2922 = vmatpush1.bf16.xpose.msra.mxu0 0
    %2923 = vmatprep.subr.bf16.mxu0 0
    %2924 = vmatpush1.bf16.xpose.msra.mxu0 0
    %2925 = vmatprep.mubr.bf16.mxu0 0
    %2926 = vmatmul.mubr.bf16.gmra.mrb[0].mxu0 %v901
    %v2927 = vpop.f32.mrb[0].mxu0
    %v2928 = vadd.f32 0.0, %v2927
    %v2929 = vpop.f32.mrb[0].mxu0
    %v2930 = vpop.f32.mrb[0].mxu0
    %v2931 = vadd.f32 0.0, %v2930
    %v2932 = vpop.f32.mrb[0].mxu0
    %2933 = vmatprep.mubr.bf16.mxu0 0
    %2934 = vmatmul.mubr.bf16.gmra.mrb[0].mxu0 %v904
    %v2935 = vpop.f32.mrb[0].mxu0
    %v2936 = vadd.f32 0.0, %v2935
    %v2937 = vpop.f32.mrb[0].mxu0
    %v2938 = vpop.f32.mrb[0].mxu0
    %v2939 = vadd.f32 0.0, %v2938
    %v2940 = vpop.f32.mrb[0].mxu0
    %2941 = vmatprep.mubr.bf16.mxu0 0
    %2942 = vmatmul.mubr.bf16.gmra.mrb[0].mxu0 %v907
    %v2943 = vpop.f32.mrb[0].mxu0
    %v2944 = vadd.f32 0.0, %v2943
    %v2945 = vpop.f32.mrb[0].mxu0
    %v2946 = vpop.f32.mrb[0].mxu0
    %v2947 = vpop.f32.mrb[0].mxu0
    %2948 = vdwg.mxu0
    %v2949 = vsel %vm370, %v2928, -inf
    %2950 = vmax.xlane.f32.xlu0 %v2949
    %v2951 = vpop.xlane.xlu0 %2950
    %v2952 = vsel %vm370, %v2931, -inf
    %2953 = vmax.xlane.f32.xlu0 %v2952
    %v2954 = vpop.xlane.xlu0 %2953
    %v2955 = vsel %vm370, %v2936, -inf
    %2956 = vmax.xlane.f32.xlu0 %v2955
    %v2957 = vpop.xlane.xlu0 %2956
    %v2958 = vsel %vm370, %v2939, -inf
    %2959 = vmax.xlane.f32.xlu0 %v2958
    %v2960 = vpop.xlane.xlu0 %2959
    %v2961 = vsel %vm370, %v2944, -inf
    %2962 = vmax.xlane.f32.xlu0 %v2961
    %v2963 = vpop.xlane.xlu0 %2962
    %v2964 = vsub.f32 %v2928, %v2951
    %v2965 = vsub.f32 %v2931, %v2954
    %v2966 = vsub.f32 %v2936, %v2957
    %v2967 = vsub.f32 %v2939, %v2960
    %v2968 = vsub.f32 %v2944, %v2963
    %v2969 = vmul.f32 %v2964, 1.442695
    %v2970 = vpow.pop %v2969
    %v2971 = vmul.f32 %v2965, 1.442695
    %v2972 = vpow.pop %v2971
    %v2973 = vmul.f32 %v2966, 1.442695
    %v2974 = vpow.pop %v2973
    %v2975 = vmul.f32 %v2967, 1.442695
    %v2976 = vpow.pop %v2975
    %v2977 = vmul.f32 %v2968, 1.442695
    %v2978 = vpow.pop %v2977
    %v2979 = vsel %vm370, %v2970, 0.0
    %2980 = vadd.xlane.f32.xlu0 %v2979
    %v2981 = vpop.xlane.xlu0 %2980
    %v2982 = vsel %vm370, %v2972, 0.0
    %2983 = vadd.xlane.f32.xlu0 %v2982
    %v2984 = vpop.xlane.xlu0 %2983
    %v2985 = vsel %vm370, %v2974, 0.0
    %2986 = vadd.xlane.f32.xlu0 %v2985
    %v2987 = vpop.xlane.xlu0 %2986
    %v2988 = vsel %vm370, %v2976, 0.0
    %2989 = vadd.xlane.f32.xlu0 %v2988
    %v2990 = vpop.xlane.xlu0 %2989
    %v2991 = vsel %vm370, %v2978, 0.0
    %2992 = vadd.xlane.f32.xlu0 %v2991
    %v2993 = vpop.xlane.xlu0 %2992
    %v2994 = vrcp.pop %v2981
    %v2995 = vrcp.pop %v2984
    %v2996 = vrcp.pop %v2987
    %v2997 = vrcp.pop %v2990
    %v2998 = vrcp.pop %v2993
    %v2999 = vmul.f32 %v2970, %v2994
    %v3000 = vmul.f32 %v2972, %v2995
    %v3001 = vmul.f32 %v2974, %v2996
    %v3002 = vmul.f32 %v2976, %v2997
    %v3003 = vmul.f32 %v2978, %v2998
    %v3004 = vpack.c.bf16 %v3000, %v2999
    %v3005 = vpack.c.bf16 %v3002, %v3001
    %v3006 = vpack.c.bf16 %v3003, %v3003
    %3011 = vrot.lane.b32.xlu0 %v895, 64
    %v3012 = vpop.permute.xlu0 %3011
    %3013 = vrot.lane.b32.xlu0 %v896, 64
    %v3014 = vpop.permute.xlu0 %3013
    %3015 = vrot.lane.b32.xlu0 %v897, 64
    %v3016 = vpop.permute.xlu0 %3015
    %3017 = vrot.lane.b32.xlu0 %v898, 64
    %v3018 = vpop.permute.xlu0 %3017
    %v3024 = vsel %vm370, %v3004, 0
    %v3027 = vsel %vm370, %v3005, 0
    %v3030 = vsel %vm370, %v3006, 0
    %3032 = vmatprep.subr.bf16.mxu0 0
    %3033 = vmatpush1.bf16.msra.mxu0 %v3012
    %3034 = vmatprep.subr.bf16.mxu0 0
    %3035 = vmatpush1.bf16.msra.mxu0 %v3014
    %3036 = vmatprep.subr.bf16.mxu0 0
    %3037 = vmatpush1.bf16.msra.mxu0 %v3016
    %3038 = vmatprep.subr.bf16.mxu0 0
    %3039 = vmatpush1.bf16.msra.mxu0 %v3018
    %3040 = vmatprep.subr.bf16.mxu0 0
    %3041 = vmatpush1.bf16.msra.mxu0 0
    %3042 = vmatprep.subr.bf16.mxu0 0
    %3043 = vmatpush1.bf16.msra.mxu0 0
    %3044 = vmatprep.subr.bf16.mxu0 0
    %3045 = vmatpush1.bf16.msra.mxu0 0
    %3046 = vmatprep.subr.bf16.mxu0 0
    %3047 = vmatpush1.bf16.msra.mxu0 0
    %3048 = vmatprep.subr.bf16.mxu0 0
    %3049 = vmatpush1.bf16.msra.mxu0 0
    %3050 = vmatprep.subr.bf16.mxu0 0
    %3051 = vmatpush1.bf16.msra.mxu0 0
    %3052 = vmatprep.subr.bf16.mxu0 0
    %3053 = vmatpush1.bf16.msra.mxu0 0
    %3054 = vmatprep.subr.bf16.mxu0 0
    %3055 = vmatpush1.bf16.msra.mxu0 0
    %3056 = vmatprep.subr.bf16.mxu0 0
    %3057 = vmatpush1.bf16.msra.mxu0 0
    %3058 = vmatprep.subr.bf16.mxu0 0
    %3059 = vmatpush1.bf16.msra.mxu0 0
    %3060 = vmatprep.subr.bf16.mxu0 0
    %3061 = vmatpush1.bf16.msra.mxu0 0
    %3062 = vmatprep.subr.bf16.mxu0 0
    %3063 = vmatpush1.bf16.msra.mxu0 0
    %3064 = vmatprep.mubr.bf16.mxu0 0
    %3065 = vmatmul.mubr.bf16.gmra.mrb[0].mxu0 %v3024
    %v3066 = vpop.f32.mrb[0].mxu0
    %v3067 = vadd.f32 0.0, %v3066
    %v3068 = vpop.f32.mrb[0].mxu0
    %v3069 = vpop.f32.mrb[0].mxu0
    %v3070 = vadd.f32 0.0, %v3069
    %v3071 = vpop.f32.mrb[0].mxu0
    %3072 = vmatprep.mubr.bf16.mxu0 0
    %3073 = vmatmul.mubr.bf16.gmra.mrb[0].mxu0 %v3027
    %v3074 = vpop.f32.mrb[0].mxu0
    %v3075 = vadd.f32 0.0, %v3074
    %v3076 = vpop.f32.mrb[0].mxu0
    %v3077 = vpop.f32.mrb[0].mxu0
    %v3078 = vadd.f32 0.0, %v3077
    %v3079 = vpop.f32.mrb[0].mxu0
    %3080 = vmatprep.mubr.bf16.mxu0 0
    %3081 = vmatmul.mubr.bf16.gmra.mrb[0].mxu0 %v3030
    %v3082 = vpop.f32.mrb[0].mxu0
    %v3083 = vadd.f32 0.0, %v3082
    %v3084 = vpop.f32.mrb[0].mxu0
    %v3085 = vpop.f32.mrb[0].mxu0
    %v3086 = vpop.f32.mrb[0].mxu0
    %3087 = vdwg.mxu0
    %3088 = vrot.lane.b32.xlu0 %v895, 120
    %v3089 = vpop.permute.xlu0 %3088
    %3090 = vrot.lane.b32.xlu0 %v896, 120
    %v3091 = vpop.permute.xlu0 %3090
    %3092 = vrot.lane.b32.xlu0 %v897, 120
    %v3093 = vpop.permute.xlu0 %3092
    %3094 = vrot.lane.b32.xlu0 %v898, 120
    %v3095 = vpop.permute.xlu0 %3094
    %v3097 = vsel %vm899, %v3089, 0
    %v3100 = vsel %vm899, %v3091, 0
    %v3103 = vsel %vm899, %v3093, 0
    %v3106 = vsel %vm899, %v3095, 0
    %3108 = vmatprep.subr.bf16.mxu0 0
    %3109 = vmatpush1.bf16.xpose.msra.mxu0 %v3097
    %3110 = vmatprep.subr.bf16.mxu0 0
    %3111 = vmatpush1.bf16.xpose.msra.mxu0 %v3100
    %3112 = vmatprep.subr.bf16.mxu0 0
    %3113 = vmatpush1.bf16.xpose.msra.mxu0 %v3103
    %3114 = vmatprep.subr.bf16.mxu0 0
    %3115 = vmatpush1.bf16.xpose.msra.mxu0 %v3106
    %3116 = vmatprep.subr.bf16.mxu0 0
    %3117 = vmatpush1.bf16.xpose.msra.mxu0 0
    %3118 = vmatprep.subr.bf16.mxu0 0
    %3119 = vmatpush1.bf16.xpose.msra.mxu0 0
    %3120 = vmatprep.subr.bf16.mxu0 0
    %3121 = vmatpush1.bf16.xpose.msra.mxu0 0
    %3122 = vmatprep.subr.bf16.mxu0 0
    %3123 = vmatpush1.bf16.xpose.msra.mxu0 0
    %3124 = vmatprep.subr.bf16.mxu0 0
    %3125 = vmatpush1.bf16.xpose.msra.mxu0 0
    %3126 = vmatprep.subr.bf16.mxu0 0
    %3127 = vmatpush1.bf16.xpose.msra.mxu0 0
    %3128 = vmatprep.subr.bf16.mxu0 0
    %3129 = vmatpush1.bf16.xpose.msra.mxu0 0
    %3130 = vmatprep.subr.bf16.mxu0 0
    %3131 = vmatpush1.bf16.xpose.msra.mxu0 0
    %3132 = vmatprep.subr.bf16.mxu0 0
    %3133 = vmatpush1.bf16.xpose.msra.mxu0 0
    %3134 = vmatprep.subr.bf16.mxu0 0
    %3135 = vmatpush1.bf16.xpose.msra.mxu0 0
    %3136 = vmatprep.subr.bf16.mxu0 0
    %3137 = vmatpush1.bf16.xpose.msra.mxu0 0
    %3138 = vmatprep.subr.bf16.mxu0 0
    %3139 = vmatpush1.bf16.xpose.msra.mxu0 0
    %3140 = vmatprep.mubr.bf16.mxu0 0
    %3141 = vmatmul.mubr.bf16.gmra.mrb[0].mxu0 %v1134
    %v3142 = vpop.f32.mrb[0].mxu0
    %v3143 = vadd.f32 0.0, %v3142
    %v3144 = vpop.f32.mrb[0].mxu0
    %v3145 = vpop.f32.mrb[0].mxu0
    %v3146 = vadd.f32 0.0, %v3145
    %v3147 = vpop.f32.mrb[0].mxu0
    %3148 = vmatprep.mubr.bf16.mxu0 0
    %3149 = vmatmul.mubr.bf16.gmra.mrb[0].mxu0 %v1137
    %v3150 = vpop.f32.mrb[0].mxu0
    %v3151 = vadd.f32 0.0, %v3150
    %v3152 = vpop.f32.mrb[0].mxu0
    %v3153 = vpop.f32.mrb[0].mxu0
    %v3154 = vadd.f32 0.0, %v3153
    %v3155 = vpop.f32.mrb[0].mxu0
    %3156 = vmatprep.mubr.bf16.mxu0 0
    %3157 = vmatmul.mubr.bf16.gmra.mrb[0].mxu0 %v1140
    %v3158 = vpop.f32.mrb[0].mxu0
    %v3159 = vadd.f32 0.0, %v3158
    %v3160 = vpop.f32.mrb[0].mxu0
    %v3161 = vpop.f32.mrb[0].mxu0
    %v3162 = vpop.f32.mrb[0].mxu0
    %3163 = vdwg.mxu0
    %v3164 = vsel %vm370, %v3143, -inf
    %3165 = vmax.xlane.f32.xlu0 %v3164
    %v3166 = vpop.xlane.xlu0 %3165
    %v3167 = vsel %vm370, %v3146, -inf
    %3168 = vmax.xlane.f32.xlu0 %v3167
    %v3169 = vpop.xlane.xlu0 %3168
    %v3170 = vsel %vm370, %v3151, -inf
    %3171 = vmax.xlane.f32.xlu0 %v3170
    %v3172 = vpop.xlane.xlu0 %3171
    %v3173 = vsel %vm370, %v3154, -inf
    %3174 = vmax.xlane.f32.xlu0 %v3173
    %v3175 = vpop.xlane.xlu0 %3174
    %v3176 = vsel %vm370, %v3159, -inf
    %3177 = vmax.xlane.f32.xlu0 %v3176
    %v3178 = vpop.xlane.xlu0 %3177
    %v3179 = vsub.f32 %v3143, %v3166
    %v3180 = vsub.f32 %v3146, %v3169
    %v3181 = vsub.f32 %v3151, %v3172
    %v3182 = vsub.f32 %v3154, %v3175
    %v3183 = vsub.f32 %v3159, %v3178
    %v3184 = vmul.f32 %v3179, 1.442695
    %v3185 = vpow.pop %v3184
    %v3186 = vmul.f32 %v3180, 1.442695
    %v3187 = vpow.pop %v3186
    %v3188 = vmul.f32 %v3181, 1.442695
    %v3189 = vpow.pop %v3188
    %v3190 = vmul.f32 %v3182, 1.442695
    %v3191 = vpow.pop %v3190
    %v3192 = vmul.f32 %v3183, 1.442695
    %v3193 = vpow.pop %v3192
    %v3194 = vsel %vm370, %v3185, 0.0
    %3195 = vadd.xlane.f32.xlu0 %v3194
    %v3196 = vpop.xlane.xlu0 %3195
    %v3197 = vsel %vm370, %v3187, 0.0
    %3198 = vadd.xlane.f32.xlu0 %v3197
    %v3199 = vpop.xlane.xlu0 %3198
    %v3200 = vsel %vm370, %v3189, 0.0
    %3201 = vadd.xlane.f32.xlu0 %v3200
    %v3202 = vpop.xlane.xlu0 %3201
    %v3203 = vsel %vm370, %v3191, 0.0
    %3204 = vadd.xlane.f32.xlu0 %v3203
    %v3205 = vpop.xlane.xlu0 %3204
    %v3206 = vsel %vm370, %v3193, 0.0
    %3207 = vadd.xlane.f32.xlu0 %v3206
    %v3208 = vpop.xlane.xlu0 %3207
    %v3209 = vrcp.pop %v3196
    %v3210 = vrcp.pop %v3199
    %v3211 = vrcp.pop %v3202
    %v3212 = vrcp.pop %v3205
    %v3213 = vrcp.pop %v3208
    %v3214 = vmul.f32 %v3185, %v3209
    %v3215 = vmul.f32 %v3187, %v3210
    %v3216 = vmul.f32 %v3189, %v3211
    %v3217 = vmul.f32 %v3191, %v3212
    %v3218 = vmul.f32 %v3193, %v3213
    %v3219 = vpack.c.bf16 %v3215, %v3214
    %v3220 = vpack.c.bf16 %v3217, %v3216
    %v3221 = vpack.c.bf16 %v3218, %v3218
    %3222 = vrot.lane.b32.xlu0 %v895, 56
    %v3223 = vpop.permute.xlu0 %3222
    %3224 = vrot.lane.b32.xlu0 %v896, 56
    %v3225 = vpop.permute.xlu0 %3224
    %3226 = vrot.lane.b32.xlu0 %v897, 56
    %v3227 = vpop.permute.xlu0 %3226
    %3228 = vrot.lane.b32.xlu0 %v898, 56
    %v3229 = vpop.permute.xlu0 %3228
    %v3235 = vsel %vm370, %v3219, 0
    %v3238 = vsel %vm370, %v3220, 0
    %v3241 = vsel %vm370, %v3221, 0
    %3243 = vmatprep.subr.bf16.mxu0 0
    %3244 = vmatpush1.bf16.msra.mxu0 %v3223
    %3245 = vmatprep.subr.bf16.mxu0 0
    %3246 = vmatpush1.bf16.msra.mxu0 %v3225
    %3247 = vmatprep.subr.bf16.mxu0 0
    %3248 = vmatpush1.bf16.msra.mxu0 %v3227
    %3249 = vmatprep.subr.bf16.mxu0 0
    %3250 = vmatpush1.bf16.msra.mxu0 %v3229
    %3251 = vmatprep.subr.bf16.mxu0 0
    %3252 = vmatpush1.bf16.msra.mxu0 0
    %3253 = vmatprep.subr.bf16.mxu0 0
    %3254 = vmatpush1.bf16.msra.mxu0 0
    %3255 = vmatprep.subr.bf16.mxu0 0
    %3256 = vmatpush1.bf16.msra.mxu0 0
    %3257 = vmatprep.subr.bf16.mxu0 0
    %3258 = vmatpush1.bf16.msra.mxu0 0
    %3259 = vmatprep.subr.bf16.mxu0 0
    %3260 = vmatpush1.bf16.msra.mxu0 0
    %3261 = vmatprep.subr.bf16.mxu0 0
    %3262 = vmatpush1.bf16.msra.mxu0 0
    %3263 = vmatprep.subr.bf16.mxu0 0
    %3264 = vmatpush1.bf16.msra.mxu0 0
    %3265 = vmatprep.subr.bf16.mxu0 0
    %3266 = vmatpush1.bf16.msra.mxu0 0
    %3267 = vmatprep.subr.bf16.mxu0 0
    %3268 = vmatpush1.bf16.msra.mxu0 0
    %3269 = vmatprep.subr.bf16.mxu0 0
    %3270 = vmatpush1.bf16.msra.mxu0 0
    %3271 = vmatprep.subr.bf16.mxu0 0
    %3272 = vmatpush1.bf16.msra.mxu0 0
    %3273 = vmatprep.subr.bf16.mxu0 0
    %3274 = vmatpush1.bf16.msra.mxu0 0
    %3275 = vmatprep.mubr.bf16.mxu0 0
    %3276 = vmatmul.mubr.bf16.gmra.mrb[0].mxu0 %v3235
    %v3277 = vpop.f32.mrb[0].mxu0
    %v3278 = vadd.f32 0.0, %v3277
    %v3279 = vpop.f32.mrb[0].mxu0
    %v3280 = vpop.f32.mrb[0].mxu0
    %v3281 = vadd.f32 0.0, %v3280
    %v3282 = vpop.f32.mrb[0].mxu0
    %3283 = vmatprep.mubr.bf16.mxu0 0
    %3284 = vmatmul.mubr.bf16.gmra.mrb[0].mxu0 %v3238
    %v3285 = vpop.f32.mrb[0].mxu0
    %v3286 = vadd.f32 0.0, %v3285
    %v3287 = vpop.f32.mrb[0].mxu0
    %v3288 = vpop.f32.mrb[0].mxu0
    %v3289 = vadd.f32 0.0, %v3288
    %v3290 = vpop.f32.mrb[0].mxu0
    %3291 = vmatprep.mubr.bf16.mxu0 0
    %3292 = vmatmul.mubr.bf16.gmra.mrb[0].mxu0 %v3241
    %v3293 = vpop.f32.mrb[0].mxu0
    %v3294 = vadd.f32 0.0, %v3293
    %v3295 = vpop.f32.mrb[0].mxu0
    %v3296 = vpop.f32.mrb[0].mxu0
    %v3297 = vpop.f32.mrb[0].mxu0
    %3298 = vdwg.mxu0
    %3299 = vrot.lane.b32.xlu0 %v895, 112
    %v3300 = vpop.permute.xlu0 %3299
    %3301 = vrot.lane.b32.xlu0 %v896, 112
    %v3302 = vpop.permute.xlu0 %3301
    %3303 = vrot.lane.b32.xlu0 %v897, 112
    %v3304 = vpop.permute.xlu0 %3303
    %3305 = vrot.lane.b32.xlu0 %v898, 112
    %v3306 = vpop.permute.xlu0 %3305
    %v3308 = vsel %vm899, %v3300, 0
    %v3311 = vsel %vm899, %v3302, 0
    %v3314 = vsel %vm899, %v3304, 0
    %v3317 = vsel %vm899, %v3306, 0
    %3319 = vmatprep.subr.bf16.mxu0 0
    %3320 = vmatpush1.bf16.xpose.msra.mxu0 %v3308
    %3321 = vmatprep.subr.bf16.mxu0 0
    %3322 = vmatpush1.bf16.xpose.msra.mxu0 %v3311
    %3323 = vmatprep.subr.bf16.mxu0 0
    %3324 = vmatpush1.bf16.xpose.msra.mxu0 %v3314
    %3325 = vmatprep.subr.bf16.mxu0 0
    %3326 = vmatpush1.bf16.xpose.msra.mxu0 %v3317
    %3327 = vmatprep.subr.bf16.mxu0 0
    %3328 = vmatpush1.bf16.xpose.msra.mxu0 0
    %3329 = vmatprep.subr.bf16.mxu0 0
    %3330 = vmatpush1.bf16.xpose.msra.mxu0 0
    %3331 = vmatprep.subr.bf16.mxu0 0
    %3332 = vmatpush1.bf16.xpose.msra.mxu0 0
    %3333 = vmatprep.subr.bf16.mxu0 0
    %3334 = vmatpush1.bf16.xpose.msra.mxu0 0
    %3335 = vmatprep.subr.bf16.mxu0 0
    %3336 = vmatpush1.bf16.xpose.msra.mxu0 0
    %3337 = vmatprep.subr.bf16.mxu0 0
    %3338 = vmatpush1.bf16.xpose.msra.mxu0 0
    %3339 = vmatprep.subr.bf16.mxu0 0
    %3340 = vmatpush1.bf16.xpose.msra.mxu0 0
    %3341 = vmatprep.subr.bf16.mxu0 0
    %3342 = vmatpush1.bf16.xpose.msra.mxu0 0
    %3343 = vmatprep.subr.bf16.mxu0 0
    %3344 = vmatpush1.bf16.xpose.msra.mxu0 0
    %3345 = vmatprep.subr.bf16.mxu0 0
    %3346 = vmatpush1.bf16.xpose.msra.mxu0 0
    %3347 = vmatprep.subr.bf16.mxu0 0
    %3348 = vmatpush1.bf16.xpose.msra.mxu0 0
    %3349 = vmatprep.subr.bf16.mxu0 0
    %3350 = vmatpush1.bf16.xpose.msra.mxu0 0
    %3351 = vmatprep.mubr.bf16.mxu0 0
    %3352 = vmatmul.mubr.bf16.gmra.mrb[0].mxu0 %v1360
    %v3353 = vpop.f32.mrb[0].mxu0
    %v3354 = vadd.f32 0.0, %v3353
    %v3355 = vpop.f32.mrb[0].mxu0
    %v3356 = vpop.f32.mrb[0].mxu0
    %v3357 = vadd.f32 0.0, %v3356
    %v3358 = vpop.f32.mrb[0].mxu0
    %3359 = vmatprep.mubr.bf16.mxu0 0
    %3360 = vmatmul.mubr.bf16.gmra.mrb[0].mxu0 %v1363
    %v3361 = vpop.f32.mrb[0].mxu0
    %v3362 = vadd.f32 0.0, %v3361
    %v3363 = vpop.f32.mrb[0].mxu0
    %v3364 = vpop.f32.mrb[0].mxu0
    %v3365 = vadd.f32 0.0, %v3364
    %v3366 = vpop.f32.mrb[0].mxu0
    %3367 = vmatprep.mubr.bf16.mxu0 0
    %3368 = vmatmul.mubr.bf16.gmra.mrb[0].mxu0 %v1366
    %v3369 = vpop.f32.mrb[0].mxu0
    %v3370 = vadd.f32 0.0, %v3369
    %v3371 = vpop.f32.mrb[0].mxu0
    %v3372 = vpop.f32.mrb[0].mxu0
    %v3373 = vpop.f32.mrb[0].mxu0
    %3374 = vdwg.mxu0
    %v3375 = vsel %vm370, %v3354, -inf
    %3376 = vmax.xlane.f32.xlu0 %v3375
    %v3377 = vpop.xlane.xlu0 %3376
    %v3378 = vsel %vm370, %v3357, -inf
    %3379 = vmax.xlane.f32.xlu0 %v3378
    %v3380 = vpop.xlane.xlu0 %3379
    %v3381 = vsel %vm370, %v3362, -inf
    %3382 = vmax.xlane.f32.xlu0 %v3381
    %v3383 = vpop.xlane.xlu0 %3382
    %v3384 = vsel %vm370, %v3365, -inf
    %3385 = vmax.xlane.f32.xlu0 %v3384
    %v3386 = vpop.xlane.xlu0 %3385
    %v3387 = vsel %vm370, %v3370, -inf
    %3388 = vmax.xlane.f32.xlu0 %v3387
    %v3389 = vpop.xlane.xlu0 %3388
    %v3390 = vsub.f32 %v3354, %v3377
    %v3391 = vsub.f32 %v3357, %v3380
    %v3392 = vsub.f32 %v3362, %v3383
    %v3393 = vsub.f32 %v3365, %v3386
    %v3394 = vsub.f32 %v3370, %v3389
    %v3395 = vmul.f32 %v3390, 1.442695
    %v3396 = vpow.pop %v3395
    %v3397 = vmul.f32 %v3391, 1.442695
    %v3398 = vpow.pop %v3397
    %v3399 = vmul.f32 %v3392, 1.442695
    %v3400 = vpow.pop %v3399
    %v3401 = vmul.f32 %v3393, 1.442695
    %v3402 = vpow.pop %v3401
    %v3403 = vmul.f32 %v3394, 1.442695
    %v3404 = vpow.pop %v3403
    %v3405 = vsel %vm370, %v3396, 0.0
    %3406 = vadd.xlane.f32.xlu0 %v3405
    %v3407 = vpop.xlane.xlu0 %3406
    %v3408 = vsel %vm370, %v3398, 0.0
    %3409 = vadd.xlane.f32.xlu0 %v3408
    %v3410 = vpop.xlane.xlu0 %3409
    %v3411 = vsel %vm370, %v3400, 0.0
    %3412 = vadd.xlane.f32.xlu0 %v3411
    %v3413 = vpop.xlane.xlu0 %3412
    %v3414 = vsel %vm370, %v3402, 0.0
    %3415 = vadd.xlane.f32.xlu0 %v3414
    %v3416 = vpop.xlane.xlu0 %3415
    %v3417 = vsel %vm370, %v3404, 0.0
    %3418 = vadd.xlane.f32.xlu0 %v3417
    %v3419 = vpop.xlane.xlu0 %3418
    %v3420 = vrcp.pop %v3407
    %v3421 = vrcp.pop %v3410
    %v3422 = vrcp.pop %v3413
    %v3423 = vrcp.pop %v3416
    %v3424 = vrcp.pop %v3419
    %v3425 = vmul.f32 %v3396, %v3420
    %v3426 = vmul.f32 %v3398, %v3421
    %v3427 = vmul.f32 %v3400, %v3422
    %v3428 = vmul.f32 %v3402, %v3423
    %v3429 = vmul.f32 %v3404, %v3424
    %v3430 = vpack.c.bf16 %v3426, %v3425
    %v3431 = vpack.c.bf16 %v3428, %v3427
    %v3432 = vpack.c.bf16 %v3429, %v3429
    %3433 = vrot.lane.b32.xlu0 %v895, 48
    %v3434 = vpop.permute.xlu0 %3433
    %3435 = vrot.lane.b32.xlu0 %v896, 48
    %v3436 = vpop.permute.xlu0 %3435
    %3437 = vrot.lane.b32.xlu0 %v897, 48
    %v3438 = vpop.permute.xlu0 %3437
    %3439 = vrot.lane.b32.xlu0 %v898, 48
    %v3440 = vpop.permute.xlu0 %3439
    %v3446 = vsel %vm370, %v3430, 0
    %v3449 = vsel %vm370, %v3431, 0
    %v3452 = vsel %vm370, %v3432, 0
    %3454 = vmatprep.subr.bf16.mxu0 0
    %3455 = vmatpush1.bf16.msra.mxu0 %v3434
    %3456 = vmatprep.subr.bf16.mxu0 0
    %3457 = vmatpush1.bf16.msra.mxu0 %v3436
    %3458 = vmatprep.subr.bf16.mxu0 0
    %3459 = vmatpush1.bf16.msra.mxu0 %v3438
    %3460 = vmatprep.subr.bf16.mxu0 0
    %3461 = vmatpush1.bf16.msra.mxu0 %v3440
    %3462 = vmatprep.subr.bf16.mxu0 0
    %3463 = vmatpush1.bf16.msra.mxu0 0
    %3464 = vmatprep.subr.bf16.mxu0 0
    %3465 = vmatpush1.bf16.msra.mxu0 0
    %3466 = vmatprep.subr.bf16.mxu0 0
    %3467 = vmatpush1.bf16.msra.mxu0 0
    %3468 = vmatprep.subr.bf16.mxu0 0
    %3469 = vmatpush1.bf16.msra.mxu0 0
    %3470 = vmatprep.subr.bf16.mxu0 0
    %3471 = vmatpush1.bf16.msra.mxu0 0
    %3472 = vmatprep.subr.bf16.mxu0 0
    %3473 = vmatpush1.bf16.msra.mxu0 0
    %3474 = vmatprep.subr.bf16.mxu0 0
    %3475 = vmatpush1.bf16.msra.mxu0 0
    %3476 = vmatprep.subr.bf16.mxu0 0
    %3477 = vmatpush1.bf16.msra.mxu0 0
    %3478 = vmatprep.subr.bf16.mxu0 0
    %3479 = vmatpush1.bf16.msra.mxu0 0
    %3480 = vmatprep.subr.bf16.mxu0 0
    %3481 = vmatpush1.bf16.msra.mxu0 0
    %3482 = vmatprep.subr.bf16.mxu0 0
    %3483 = vmatpush1.bf16.msra.mxu0 0
    %3484 = vmatprep.subr.bf16.mxu0 0
    %3485 = vmatpush1.bf16.msra.mxu0 0
    %3486 = vmatprep.mubr.bf16.mxu0 0
    %3487 = vmatmul.mubr.bf16.gmra.mrb[0].mxu0 %v3446
    %v3488 = vpop.f32.mrb[0].mxu0
    %v3489 = vadd.f32 0.0, %v3488
    %v3490 = vpop.f32.mrb[0].mxu0
    %v3491 = vpop.f32.mrb[0].mxu0
    %v3492 = vadd.f32 0.0, %v3491
    %v3493 = vpop.f32.mrb[0].mxu0
    %3494 = vmatprep.mubr.bf16.mxu0 0
    %3495 = vmatmul.mubr.bf16.gmra.mrb[0].mxu0 %v3449
    %v3496 = vpop.f32.mrb[0].mxu0
    %v3497 = vadd.f32 0.0, %v3496
    %v3498 = vpop.f32.mrb[0].mxu0
    %v3499 = vpop.f32.mrb[0].mxu0
    %v3500 = vadd.f32 0.0, %v3499
    %v3501 = vpop.f32.mrb[0].mxu0
    %3502 = vmatprep.mubr.bf16.mxu0 0
    %3503 = vmatmul.mubr.bf16.gmra.mrb[0].mxu0 %v3452
    %v3504 = vpop.f32.mrb[0].mxu0
    %v3505 = vadd.f32 0.0, %v3504
    %v3506 = vpop.f32.mrb[0].mxu0
    %v3507 = vpop.f32.mrb[0].mxu0
    %v3508 = vpop.f32.mrb[0].mxu0
    %3509 = vdwg.mxu0
    %3510 = vrot.lane.b32.xlu0 %v895, 104
    %v3511 = vpop.permute.xlu0 %3510
    %3512 = vrot.lane.b32.xlu0 %v896, 104
    %v3513 = vpop.permute.xlu0 %3512
    %3514 = vrot.lane.b32.xlu0 %v897, 104
    %v3515 = vpop.permute.xlu0 %3514
    %3516 = vrot.lane.b32.xlu0 %v898, 104
    %v3517 = vpop.permute.xlu0 %3516
    %v3519 = vsel %vm899, %v3511, 0
    %v3522 = vsel %vm899, %v3513, 0
    %v3525 = vsel %vm899, %v3515, 0
    %v3528 = vsel %vm899, %v3517, 0
    %3530 = vmatprep.subr.bf16.mxu0 0
    %3531 = vmatpush1.bf16.xpose.msra.mxu0 %v3519
    %3532 = vmatprep.subr.bf16.mxu0 0
    %3533 = vmatpush1.bf16.xpose.msra.mxu0 %v3522
    %3534 = vmatprep.subr.bf16.mxu0 0
    %3535 = vmatpush1.bf16.xpose.msra.mxu0 %v3525
    %3536 = vmatprep.subr.bf16.mxu0 0
    %3537 = vmatpush1.bf16.xpose.msra.mxu0 %v3528
    %3538 = vmatprep.subr.bf16.mxu0 0
    %3539 = vmatpush1.bf16.xpose.msra.mxu0 0
    %3540 = vmatprep.subr.bf16.mxu0 0
    %3541 = vmatpush1.bf16.xpose.msra.mxu0 0
    %3542 = vmatprep.subr.bf16.mxu0 0
    %3543 = vmatpush1.bf16.xpose.msra.mxu0 0
    %3544 = vmatprep.subr.bf16.mxu0 0
    %3545 = vmatpush1.bf16.xpose.msra.mxu0 0
    %3546 = vmatprep.subr.bf16.mxu0 0
    %3547 = vmatpush1.bf16.xpose.msra.mxu0 0
    %3548 = vmatprep.subr.bf16.mxu0 0
    %3549 = vmatpush1.bf16.xpose.msra.mxu0 0
    %3550 = vmatprep.subr.bf16.mxu0 0
    %3551 = vmatpush1.bf16.xpose.msra.mxu0 0
    %3552 = vmatprep.subr.bf16.mxu0 0
    %3553 = vmatpush1.bf16.xpose.msra.mxu0 0
    %3554 = vmatprep.subr.bf16.mxu0 0
    %3555 = vmatpush1.bf16.xpose.msra.mxu0 0
    %3556 = vmatprep.subr.bf16.mxu0 0
    %3557 = vmatpush1.bf16.xpose.msra.mxu0 0
    %3558 = vmatprep.subr.bf16.mxu0 0
    %3559 = vmatpush1.bf16.xpose.msra.mxu0 0
    %3560 = vmatprep.subr.bf16.mxu0 0
    %3561 = vmatpush1.bf16.xpose.msra.mxu0 0
    %3562 = vmatprep.mubr.bf16.mxu0 0
    %3563 = vmatmul.mubr.bf16.gmra.mrb[0].mxu0 %v1586
    %v3564 = vpop.f32.mrb[0].mxu0
    %v3565 = vadd.f32 0.0, %v3564
    %v3566 = vpop.f32.mrb[0].mxu0
    %v3567 = vpop.f32.mrb[0].mxu0
    %v3568 = vadd.f32 0.0, %v3567
    %v3569 = vpop.f32.mrb[0].mxu0
    %3570 = vmatprep.mubr.bf16.mxu0 0
    %3571 = vmatmul.mubr.bf16.gmra.mrb[0].mxu0 %v1589
    %v3572 = vpop.f32.mrb[0].mxu0
    %v3573 = vadd.f32 0.0, %v3572
    %v3574 = vpop.f32.mrb[0].mxu0
    %v3575 = vpop.f32.mrb[0].mxu0
    %v3576 = vadd.f32 0.0, %v3575
    %v3577 = vpop.f32.mrb[0].mxu0
    %3578 = vmatprep.mubr.bf16.mxu0 0
    %3579 = vmatmul.mubr.bf16.gmra.mrb[0].mxu0 %v1592
    %v3580 = vpop.f32.mrb[0].mxu0
    %v3581 = vadd.f32 0.0, %v3580
    %v3582 = vpop.f32.mrb[0].mxu0
    %v3583 = vpop.f32.mrb[0].mxu0
    %v3584 = vpop.f32.mrb[0].mxu0
    %3585 = vdwg.mxu0
    %v3586 = vsel %vm370, %v3565, -inf
    %3587 = vmax.xlane.f32.xlu0 %v3586
    %v3588 = vpop.xlane.xlu0 %3587
    %v3589 = vsel %vm370, %v3568, -inf
    %3590 = vmax.xlane.f32.xlu0 %v3589
    %v3591 = vpop.xlane.xlu0 %3590
    %v3592 = vsel %vm370, %v3573, -inf
    %3593 = vmax.xlane.f32.xlu0 %v3592
    %v3594 = vpop.xlane.xlu0 %3593
    %v3595 = vsel %vm370, %v3576, -inf
    %3596 = vmax.xlane.f32.xlu0 %v3595
    %v3597 = vpop.xlane.xlu0 %3596
    %v3598 = vsel %vm370, %v3581, -inf
    %3599 = vmax.xlane.f32.xlu0 %v3598
    %v3600 = vpop.xlane.xlu0 %3599
    %v3601 = vsub.f32 %v3565, %v3588
    %v3602 = vsub.f32 %v3568, %v3591
    %v3603 = vsub.f32 %v3573, %v3594
    %v3604 = vsub.f32 %v3576, %v3597
    %v3605 = vsub.f32 %v3581, %v3600
    %v3606 = vmul.f32 %v3601, 1.442695
    %v3607 = vpow.pop %v3606
    %v3608 = vmul.f32 %v3602, 1.442695
    %v3609 = vpow.pop %v3608
    %v3610 = vmul.f32 %v3603, 1.442695
    %v3611 = vpow.pop %v3610
    %v3612 = vmul.f32 %v3604, 1.442695
    %v3613 = vpow.pop %v3612
    %v3614 = vmul.f32 %v3605, 1.442695
    %v3615 = vpow.pop %v3614
    %v3616 = vsel %vm370, %v3607, 0.0
    %3617 = vadd.xlane.f32.xlu0 %v3616
    %v3618 = vpop.xlane.xlu0 %3617
    %v3619 = vsel %vm370, %v3609, 0.0
    %3620 = vadd.xlane.f32.xlu0 %v3619
    %v3621 = vpop.xlane.xlu0 %3620
    %v3622 = vsel %vm370, %v3611, 0.0
    %3623 = vadd.xlane.f32.xlu0 %v3622
    %v3624 = vpop.xlane.xlu0 %3623
    %v3625 = vsel %vm370, %v3613, 0.0
    %3626 = vadd.xlane.f32.xlu0 %v3625
    %v3627 = vpop.xlane.xlu0 %3626
    %v3628 = vsel %vm370, %v3615, 0.0
    %3629 = vadd.xlane.f32.xlu0 %v3628
    %v3630 = vpop.xlane.xlu0 %3629
    %v3631 = vrcp.pop %v3618
    %v3632 = vrcp.pop %v3621
    %v3633 = vrcp.pop %v3624
    %v3634 = vrcp.pop %v3627
    %v3635 = vrcp.pop %v3630
    %v3636 = vmul.f32 %v3607, %v3631
    %v3637 = vmul.f32 %v3609, %v3632
    %v3638 = vmul.f32 %v3611, %v3633
    %v3639 = vmul.f32 %v3613, %v3634
    %v3640 = vmul.f32 %v3615, %v3635
    %v3641 = vpack.c.bf16 %v3637, %v3636
    %v3642 = vpack.c.bf16 %v3639, %v3638
    %v3643 = vpack.c.bf16 %v3640, %v3640
    %3644 = vrot.lane.b32.xlu0 %v895, 40
    %v3645 = vpop.permute.xlu0 %3644
    %3646 = vrot.lane.b32.xlu0 %v896, 40
    %v3647 = vpop.permute.xlu0 %3646
    %3648 = vrot.lane.b32.xlu0 %v897, 40
    %v3649 = vpop.permute.xlu0 %3648
    %3650 = vrot.lane.b32.xlu0 %v898, 40
    %v3651 = vpop.permute.xlu0 %3650
    %v3657 = vsel %vm370, %v3641, 0
    %v3660 = vsel %vm370, %v3642, 0
    %v3663 = vsel %vm370, %v3643, 0
    %3665 = vmatprep.subr.bf16.mxu0 0
    %3666 = vmatpush1.bf16.msra.mxu0 %v3645
    %3667 = vmatprep.subr.bf16.mxu0 0
    %3668 = vmatpush1.bf16.msra.mxu0 %v3647
    %3669 = vmatprep.subr.bf16.mxu0 0
    %3670 = vmatpush1.bf16.msra.mxu0 %v3649
    %3671 = vmatprep.subr.bf16.mxu0 0
    %3672 = vmatpush1.bf16.msra.mxu0 %v3651
    %3673 = vmatprep.subr.bf16.mxu0 0
    %3674 = vmatpush1.bf16.msra.mxu0 0
    %3675 = vmatprep.subr.bf16.mxu0 0
    %3676 = vmatpush1.bf16.msra.mxu0 0
    %3677 = vmatprep.subr.bf16.mxu0 0
    %3678 = vmatpush1.bf16.msra.mxu0 0
    %3679 = vmatprep.subr.bf16.mxu0 0
    %3680 = vmatpush1.bf16.msra.mxu0 0
    %3681 = vmatprep.subr.bf16.mxu0 0
    %3682 = vmatpush1.bf16.msra.mxu0 0
    %3683 = vmatprep.subr.bf16.mxu0 0
    %3684 = vmatpush1.bf16.msra.mxu0 0
    %3685 = vmatprep.subr.bf16.mxu0 0
    %3686 = vmatpush1.bf16.msra.mxu0 0
    %3687 = vmatprep.subr.bf16.mxu0 0
    %3688 = vmatpush1.bf16.msra.mxu0 0
    %3689 = vmatprep.subr.bf16.mxu0 0
    %3690 = vmatpush1.bf16.msra.mxu0 0
    %3691 = vmatprep.subr.bf16.mxu0 0
    %3692 = vmatpush1.bf16.msra.mxu0 0
    %3693 = vmatprep.subr.bf16.mxu0 0
    %3694 = vmatpush1.bf16.msra.mxu0 0
    %3695 = vmatprep.subr.bf16.mxu0 0
    %3696 = vmatpush1.bf16.msra.mxu0 0
    %3697 = vmatprep.mubr.bf16.mxu0 0
    %3698 = vmatmul.mubr.bf16.gmra.mrb[0].mxu0 %v3657
    %v3699 = vpop.f32.mrb[0].mxu0
    %v3700 = vadd.f32 0.0, %v3699
    %v3701 = vpop.f32.mrb[0].mxu0
    %v3702 = vpop.f32.mrb[0].mxu0
    %v3703 = vadd.f32 0.0, %v3702
    %v3704 = vpop.f32.mrb[0].mxu0
    %3705 = vmatprep.mubr.bf16.mxu0 0
    %3706 = vmatmul.mubr.bf16.gmra.mrb[0].mxu0 %v3660
    %v3707 = vpop.f32.mrb[0].mxu0
    %v3708 = vadd.f32 0.0, %v3707
    %v3709 = vpop.f32.mrb[0].mxu0
    %v3710 = vpop.f32.mrb[0].mxu0
    %v3711 = vadd.f32 0.0, %v3710
    %v3712 = vpop.f32.mrb[0].mxu0
    %3713 = vmatprep.mubr.bf16.mxu0 0
    %3714 = vmatmul.mubr.bf16.gmra.mrb[0].mxu0 %v3663
    %v3715 = vpop.f32.mrb[0].mxu0
    %v3716 = vadd.f32 0.0, %v3715
    %v3717 = vpop.f32.mrb[0].mxu0
    %v3718 = vpop.f32.mrb[0].mxu0
    %v3719 = vpop.f32.mrb[0].mxu0
    %3720 = vdwg.mxu0
    %3721 = vrot.lane.b32.xlu0 %v895, 96
    %v3722 = vpop.permute.xlu0 %3721
    %3723 = vrot.lane.b32.xlu0 %v896, 96
    %v3724 = vpop.permute.xlu0 %3723
    %3725 = vrot.lane.b32.xlu0 %v897, 96
    %v3726 = vpop.permute.xlu0 %3725
    %3727 = vrot.lane.b32.xlu0 %v898, 96
    %v3728 = vpop.permute.xlu0 %3727
    %v3730 = vsel %vm899, %v3722, 0
    %v3733 = vsel %vm899, %v3724, 0
    %v3736 = vsel %vm899, %v3726, 0
    %v3739 = vsel %vm899, %v3728, 0
    %3741 = vmatprep.subr.bf16.mxu0 0
    %3742 = vmatpush1.bf16.xpose.msra.mxu0 %v3730
    %3743 = vmatprep.subr.bf16.mxu0 0
    %3744 = vmatpush1.bf16.xpose.msra.mxu0 %v3733
    %3745 = vmatprep.subr.bf16.mxu0 0
    %3746 = vmatpush1.bf16.xpose.msra.mxu0 %v3736
    %3747 = vmatprep.subr.bf16.mxu0 0
    %3748 = vmatpush1.bf16.xpose.msra.mxu0 %v3739
    %3749 = vmatprep.subr.bf16.mxu0 0
    %3750 = vmatpush1.bf16.xpose.msra.mxu0 0
    %3751 = vmatprep.subr.bf16.mxu0 0
    %3752 = vmatpush1.bf16.xpose.msra.mxu0 0
    %3753 = vmatprep.subr.bf16.mxu0 0
    %3754 = vmatpush1.bf16.xpose.msra.mxu0 0
    %3755 = vmatprep.subr.bf16.mxu0 0
    %3756 = vmatpush1.bf16.xpose.msra.mxu0 0
    %3757 = vmatprep.subr.bf16.mxu0 0
    %3758 = vmatpush1.bf16.xpose.msra.mxu0 0
    %3759 = vmatprep.subr.bf16.mxu0 0
    %3760 = vmatpush1.bf16.xpose.msra.mxu0 0
    %3761 = vmatprep.subr.bf16.mxu0 0
    %3762 = vmatpush1.bf16.xpose.msra.mxu0 0
    %3763 = vmatprep.subr.bf16.mxu0 0
    %3764 = vmatpush1.bf16.xpose.msra.mxu0 0
    %3765 = vmatprep.subr.bf16.mxu0 0
    %3766 = vmatpush1.bf16.xpose.msra.mxu0 0
    %3767 = vmatprep.subr.bf16.mxu0 0
    %3768 = vmatpush1.bf16.xpose.msra.mxu0 0
    %3769 = vmatprep.subr.bf16.mxu0 0
    %3770 = vmatpush1.bf16.xpose.msra.mxu0 0
    %3771 = vmatprep.subr.bf16.mxu0 0
    %3772 = vmatpush1.bf16.xpose.msra.mxu0 0
    %3773 = vmatprep.mubr.bf16.mxu0 0
    %3774 = vmatmul.mubr.bf16.gmra.mrb[0].mxu0 %v1812
    %v3775 = vpop.f32.mrb[0].mxu0
    %v3776 = vadd.f32 0.0, %v3775
    %v3777 = vpop.f32.mrb[0].mxu0
    %v3778 = vpop.f32.mrb[0].mxu0
    %v3779 = vadd.f32 0.0, %v3778
    %v3780 = vpop.f32.mrb[0].mxu0
    %3781 = vmatprep.mubr.bf16.mxu0 0
    %3782 = vmatmul.mubr.bf16.gmra.mrb[0].mxu0 %v1815
    %v3783 = vpop.f32.mrb[0].mxu0
    %v3784 = vadd.f32 0.0, %v3783
    %v3785 = vpop.f32.mrb[0].mxu0
    %v3786 = vpop.f32.mrb[0].mxu0
    %v3787 = vadd.f32 0.0, %v3786
    %v3788 = vpop.f32.mrb[0].mxu0
    %3789 = vmatprep.mubr.bf16.mxu0 0
    %3790 = vmatmul.mubr.bf16.gmra.mrb[0].mxu0 %v1818
    %v3791 = vpop.f32.mrb[0].mxu0
    %v3792 = vadd.f32 0.0, %v3791
    %v3793 = vpop.f32.mrb[0].mxu0
    %v3794 = vpop.f32.mrb[0].mxu0
    %v3795 = vpop.f32.mrb[0].mxu0
    %3796 = vdwg.mxu0
    %v3797 = vsel %vm370, %v3776, -inf
    %3798 = vmax.xlane.f32.xlu0 %v3797
    %v3799 = vpop.xlane.xlu0 %3798
    %v3800 = vsel %vm370, %v3779, -inf
    %3801 = vmax.xlane.f32.xlu0 %v3800
    %v3802 = vpop.xlane.xlu0 %3801
    %v3803 = vsel %vm370, %v3784, -inf
    %3804 = vmax.xlane.f32.xlu0 %v3803
    %v3805 = vpop.xlane.xlu0 %3804
    %v3806 = vsel %vm370, %v3787, -inf
    %3807 = vmax.xlane.f32.xlu0 %v3806
    %v3808 = vpop.xlane.xlu0 %3807
    %v3809 = vsel %vm370, %v3792, -inf
    %3810 = vmax.xlane.f32.xlu0 %v3809
    %v3811 = vpop.xlane.xlu0 %3810
    %v3812 = vsub.f32 %v3776, %v3799
    %v3813 = vsub.f32 %v3779, %v3802
    %v3814 = vsub.f32 %v3784, %v3805
    %v3815 = vsub.f32 %v3787, %v3808
    %v3816 = vsub.f32 %v3792, %v3811
    %v3817 = vmul.f32 %v3812, 1.442695
    %v3818 = vpow.pop %v3817
    %v3819 = vmul.f32 %v3813, 1.442695
    %v3820 = vpow.pop %v3819
    %v3821 = vmul.f32 %v3814, 1.442695
    %v3822 = vpow.pop %v3821
    %v3823 = vmul.f32 %v3815, 1.442695
    %v3824 = vpow.pop %v3823
    %v3825 = vmul.f32 %v3816, 1.442695
    %v3826 = vpow.pop %v3825
    %v3827 = vsel %vm370, %v3818, 0.0
    %3828 = vadd.xlane.f32.xlu0 %v3827
    %v3829 = vpop.xlane.xlu0 %3828
    %v3830 = vsel %vm370, %v3820, 0.0
    %3831 = vadd.xlane.f32.xlu0 %v3830
    %v3832 = vpop.xlane.xlu0 %3831
    %v3833 = vsel %vm370, %v3822, 0.0
    %3834 = vadd.xlane.f32.xlu0 %v3833
    %v3835 = vpop.xlane.xlu0 %3834
    %v3836 = vsel %vm370, %v3824, 0.0
    %3837 = vadd.xlane.f32.xlu0 %v3836
    %v3838 = vpop.xlane.xlu0 %3837
    %v3839 = vsel %vm370, %v3826, 0.0
    %3840 = vadd.xlane.f32.xlu0 %v3839
    %v3841 = vpop.xlane.xlu0 %3840
    %v3842 = vrcp.pop %v3829
    %v3843 = vrcp.pop %v3832
    %v3844 = vrcp.pop %v3835
    %v3845 = vrcp.pop %v3838
    %v3846 = vrcp.pop %v3841
    %v3847 = vmul.f32 %v3818, %v3842
    %v3848 = vmul.f32 %v3820, %v3843
    %v3849 = vmul.f32 %v3822, %v3844
    %v3850 = vmul.f32 %v3824, %v3845
    %v3851 = vmul.f32 %v3826, %v3846
    %v3852 = vpack.c.bf16 %v3848, %v3847
    %v3853 = vpack.c.bf16 %v3850, %v3849
    %v3854 = vpack.c.bf16 %v3851, %v3851
    %3855 = vrot.lane.b32.xlu0 %v895, 32
    %v3856 = vpop.permute.xlu0 %3855
    %3857 = vrot.lane.b32.xlu0 %v896, 32
    %v3858 = vpop.permute.xlu0 %3857
    %3859 = vrot.lane.b32.xlu0 %v897, 32
    %v3860 = vpop.permute.xlu0 %3859
    %3861 = vrot.lane.b32.xlu0 %v898, 32
    %v3862 = vpop.permute.xlu0 %3861
    %v3868 = vsel %vm370, %v3852, 0
    %v3871 = vsel %vm370, %v3853, 0
    %v3874 = vsel %vm370, %v3854, 0
    %3876 = vmatprep.subr.bf16.mxu0 0
    %3877 = vmatpush1.bf16.msra.mxu0 %v3856
    %3878 = vmatprep.subr.bf16.mxu0 0
    %3879 = vmatpush1.bf16.msra.mxu0 %v3858
    %3880 = vmatprep.subr.bf16.mxu0 0
    %3881 = vmatpush1.bf16.msra.mxu0 %v3860
    %3882 = vmatprep.subr.bf16.mxu0 0
    %3883 = vmatpush1.bf16.msra.mxu0 %v3862
    %3884 = vmatprep.subr.bf16.mxu0 0
    %3885 = vmatpush1.bf16.msra.mxu0 0
    %3886 = vmatprep.subr.bf16.mxu0 0
    %3887 = vmatpush1.bf16.msra.mxu0 0
    %3888 = vmatprep.subr.bf16.mxu0 0
    %3889 = vmatpush1.bf16.msra.mxu0 0
    %3890 = vmatprep.subr.bf16.mxu0 0
    %3891 = vmatpush1.bf16.msra.mxu0 0
    %3892 = vmatprep.subr.bf16.mxu0 0
    %3893 = vmatpush1.bf16.msra.mxu0 0
    %3894 = vmatprep.subr.bf16.mxu0 0
    %3895 = vmatpush1.bf16.msra.mxu0 0
    %3896 = vmatprep.subr.bf16.mxu0 0
    %3897 = vmatpush1.bf16.msra.mxu0 0
    %3898 = vmatprep.subr.bf16.mxu0 0
    %3899 = vmatpush1.bf16.msra.mxu0 0
    %3900 = vmatprep.subr.bf16.mxu0 0
    %3901 = vmatpush1.bf16.msra.mxu0 0
    %3902 = vmatprep.subr.bf16.mxu0 0
    %3903 = vmatpush1.bf16.msra.mxu0 0
    %3904 = vmatprep.subr.bf16.mxu0 0
    %3905 = vmatpush1.bf16.msra.mxu0 0
    %3906 = vmatprep.subr.bf16.mxu0 0
    %3907 = vmatpush1.bf16.msra.mxu0 0
    %3908 = vmatprep.mubr.bf16.mxu0 0
    %3909 = vmatmul.mubr.bf16.gmra.mrb[0].mxu0 %v3868
    %v3910 = vpop.f32.mrb[0].mxu0
    %v3911 = vadd.f32 0.0, %v3910
    %v3912 = vpop.f32.mrb[0].mxu0
    %v3913 = vpop.f32.mrb[0].mxu0
    %v3914 = vadd.f32 0.0, %v3913
    %v3915 = vpop.f32.mrb[0].mxu0
    %3916 = vmatprep.mubr.bf16.mxu0 0
    %3917 = vmatmul.mubr.bf16.gmra.mrb[0].mxu0 %v3871
    %v3918 = vpop.f32.mrb[0].mxu0
    %v3919 = vadd.f32 0.0, %v3918
    %v3920 = vpop.f32.mrb[0].mxu0
    %v3921 = vpop.f32.mrb[0].mxu0
    %v3922 = vadd.f32 0.0, %v3921
    %v3923 = vpop.f32.mrb[0].mxu0
    %3924 = vmatprep.mubr.bf16.mxu0 0
    %3925 = vmatmul.mubr.bf16.gmra.mrb[0].mxu0 %v3874
    %v3926 = vpop.f32.mrb[0].mxu0
    %v3927 = vadd.f32 0.0, %v3926
    %v3928 = vpop.f32.mrb[0].mxu0
    %v3929 = vpop.f32.mrb[0].mxu0
    %v3930 = vpop.f32.mrb[0].mxu0
    %3931 = vdwg.mxu0
    %3932 = vrot.lane.b32.xlu0 %v895, 88
    %v3933 = vpop.permute.xlu0 %3932
    %3934 = vrot.lane.b32.xlu0 %v896, 88
    %v3935 = vpop.permute.xlu0 %3934
    %3936 = vrot.lane.b32.xlu0 %v897, 88
    %v3937 = vpop.permute.xlu0 %3936
    %3938 = vrot.lane.b32.xlu0 %v898, 88
    %v3939 = vpop.permute.xlu0 %3938
    %v3941 = vsel %vm899, %v3933, 0
    %v3944 = vsel %vm899, %v3935, 0
    %v3947 = vsel %vm899, %v3937, 0
    %v3950 = vsel %vm899, %v3939, 0
    %3952 = vmatprep.subr.bf16.mxu0 0
    %3953 = vmatpush1.bf16.xpose.msra.mxu0 %v3941
    %3954 = vmatprep.subr.bf16.mxu0 0
    %3955 = vmatpush1.bf16.xpose.msra.mxu0 %v3944
    %3956 = vmatprep.subr.bf16.mxu0 0
    %3957 = vmatpush1.bf16.xpose.msra.mxu0 %v3947
    %3958 = vmatprep.subr.bf16.mxu0 0
    %3959 = vmatpush1.bf16.xpose.msra.mxu0 %v3950
    %3960 = vmatprep.subr.bf16.mxu0 0
    %3961 = vmatpush1.bf16.xpose.msra.mxu0 0
    %3962 = vmatprep.subr.bf16.mxu0 0
    %3963 = vmatpush1.bf16.xpose.msra.mxu0 0
    %3964 = vmatprep.subr.bf16.mxu0 0
    %3965 = vmatpush1.bf16.xpose.msra.mxu0 0
    %3966 = vmatprep.subr.bf16.mxu0 0
    %3967 = vmatpush1.bf16.xpose.msra.mxu0 0
    %3968 = vmatprep.subr.bf16.mxu0 0
    %3969 = vmatpush1.bf16.xpose.msra.mxu0 0
    %3970 = vmatprep.subr.bf16.mxu0 0
    %3971 = vmatpush1.bf16.xpose.msra.mxu0 0
    %3972 = vmatprep.subr.bf16.mxu0 0
    %3973 = vmatpush1.bf16.xpose.msra.mxu0 0
    %3974 = vmatprep.subr.bf16.mxu0 0
    %3975 = vmatpush1.bf16.xpose.msra.mxu0 0
    %3976 = vmatprep.subr.bf16.mxu0 0
    %3977 = vmatpush1.bf16.xpose.msra.mxu0 0
    %3978 = vmatprep.subr.bf16.mxu0 0
    %3979 = vmatpush1.bf16.xpose.msra.mxu0 0
    %3980 = vmatprep.subr.bf16.mxu0 0
    %3981 = vmatpush1.bf16.xpose.msra.mxu0 0
    %3982 = vmatprep.subr.bf16.mxu0 0
    %3983 = vmatpush1.bf16.xpose.msra.mxu0 0
    %3984 = vmatprep.mubr.bf16.mxu0 0
    %3985 = vmatmul.mubr.bf16.gmra.mrb[0].mxu0 %v2038
    %v3986 = vpop.f32.mrb[0].mxu0
    %v3987 = vadd.f32 0.0, %v3986
    %v3988 = vpop.f32.mrb[0].mxu0
    %v3989 = vpop.f32.mrb[0].mxu0
    %v3990 = vadd.f32 0.0, %v3989
    %v3991 = vpop.f32.mrb[0].mxu0
    %3992 = vmatprep.mubr.bf16.mxu0 0
    %3993 = vmatmul.mubr.bf16.gmra.mrb[0].mxu0 %v2041
    %v3994 = vpop.f32.mrb[0].mxu0
    %v3995 = vadd.f32 0.0, %v3994
    %v3996 = vpop.f32.mrb[0].mxu0
    %v3997 = vpop.f32.mrb[0].mxu0
    %v3998 = vadd.f32 0.0, %v3997
    %v3999 = vpop.f32.mrb[0].mxu0
    %4000 = vmatprep.mubr.bf16.mxu0 0
    %4001 = vmatmul.mubr.bf16.gmra.mrb[0].mxu0 %v2044
    %v4002 = vpop.f32.mrb[0].mxu0
    %v4003 = vadd.f32 0.0, %v4002
    %v4004 = vpop.f32.mrb[0].mxu0
    %v4005 = vpop.f32.mrb[0].mxu0
    %v4006 = vpop.f32.mrb[0].mxu0
    %4007 = vdwg.mxu0
    %v4008 = vsel %vm370, %v3987, -inf
    %4009 = vmax.xlane.f32.xlu0 %v4008
    %v4010 = vpop.xlane.xlu0 %4009
    %v4011 = vsel %vm370, %v3990, -inf
    %4012 = vmax.xlane.f32.xlu0 %v4011
    %v4013 = vpop.xlane.xlu0 %4012
    %v4014 = vsel %vm370, %v3995, -inf
    %4015 = vmax.xlane.f32.xlu0 %v4014
    %v4016 = vpop.xlane.xlu0 %4015
    %v4017 = vsel %vm370, %v3998, -inf
    %4018 = vmax.xlane.f32.xlu0 %v4017
    %v4019 = vpop.xlane.xlu0 %4018
    %v4020 = vsel %vm370, %v4003, -inf
    %4021 = vmax.xlane.f32.xlu0 %v4020
    %v4022 = vpop.xlane.xlu0 %4021
    %v4023 = vsub.f32 %v3987, %v4010
    %v4024 = vsub.f32 %v3990, %v4013
    %v4025 = vsub.f32 %v3995, %v4016
    %v4026 = vsub.f32 %v3998, %v4019
    %v4027 = vsub.f32 %v4003, %v4022
    %v4028 = vmul.f32 %v4023, 1.442695
    %v4029 = vpow.pop %v4028
    %v4030 = vmul.f32 %v4024, 1.442695
    %v4031 = vpow.pop %v4030
    %v4032 = vmul.f32 %v4025, 1.442695
    %v4033 = vpow.pop %v4032
    %v4034 = vmul.f32 %v4026, 1.442695
    %v4035 = vpow.pop %v4034
    %v4036 = vmul.f32 %v4027, 1.442695
    %v4037 = vpow.pop %v4036
    %v4038 = vsel %vm370, %v4029, 0.0
    %4039 = vadd.xlane.f32.xlu0 %v4038
    %v4040 = vpop.xlane.xlu0 %4039
    %v4041 = vsel %vm370, %v4031, 0.0
    %4042 = vadd.xlane.f32.xlu0 %v4041
    %v4043 = vpop.xlane.xlu0 %4042
    %v4044 = vsel %vm370, %v4033, 0.0
    %4045 = vadd.xlane.f32.xlu0 %v4044
    %v4046 = vpop.xlane.xlu0 %4045
    %v4047 = vsel %vm370, %v4035, 0.0
    %4048 = vadd.xlane.f32.xlu0 %v4047
    %v4049 = vpop.xlane.xlu0 %4048
    %v4050 = vsel %vm370, %v4037, 0.0
    %4051 = vadd.xlane.f32.xlu0 %v4050
    %v4052 = vpop.xlane.xlu0 %4051
    %v4053 = vrcp.pop %v4040
    %v4054 = vrcp.pop %v4043
    %v4055 = vrcp.pop %v4046
    %v4056 = vrcp.pop %v4049
    %v4057 = vrcp.pop %v4052
    %v4058 = vmul.f32 %v4029, %v4053
    %v4059 = vmul.f32 %v4031, %v4054
    %v4060 = vmul.f32 %v4033, %v4055
    %v4061 = vmul.f32 %v4035, %v4056
    %v4062 = vmul.f32 %v4037, %v4057
    %v4063 = vpack.c.bf16 %v4059, %v4058
    %v4064 = vpack.c.bf16 %v4061, %v4060
    %v4065 = vpack.c.bf16 %v4062, %v4062
    %4066 = vrot.lane.b32.xlu0 %v895, 24
    %v4067 = vpop.permute.xlu0 %4066
    %4068 = vrot.lane.b32.xlu0 %v896, 24
    %v4069 = vpop.permute.xlu0 %4068
    %4070 = vrot.lane.b32.xlu0 %v897, 24
    %v4071 = vpop.permute.xlu0 %4070
    %4072 = vrot.lane.b32.xlu0 %v898, 24
    %v4073 = vpop.permute.xlu0 %4072
    %v4079 = vsel %vm370, %v4063, 0
    %v4082 = vsel %vm370, %v4064, 0
    %v4085 = vsel %vm370, %v4065, 0
    %4087 = vmatprep.subr.bf16.mxu0 0
    %4088 = vmatpush1.bf16.msra.mxu0 %v4067
    %4089 = vmatprep.subr.bf16.mxu0 0
    %4090 = vmatpush1.bf16.msra.mxu0 %v4069
    %4091 = vmatprep.subr.bf16.mxu0 0
    %4092 = vmatpush1.bf16.msra.mxu0 %v4071
    %4093 = vmatprep.subr.bf16.mxu0 0
    %4094 = vmatpush1.bf16.msra.mxu0 %v4073
    %4095 = vmatprep.subr.bf16.mxu0 0
    %4096 = vmatpush1.bf16.msra.mxu0 0
    %4097 = vmatprep.subr.bf16.mxu0 0
    %4098 = vmatpush1.bf16.msra.mxu0 0
    %4099 = vmatprep.subr.bf16.mxu0 0
    %4100 = vmatpush1.bf16.msra.mxu0 0
    %4101 = vmatprep.subr.bf16.mxu0 0
    %4102 = vmatpush1.bf16.msra.mxu0 0
    %4103 = vmatprep.subr.bf16.mxu0 0
    %4104 = vmatpush1.bf16.msra.mxu0 0
    %4105 = vmatprep.subr.bf16.mxu0 0
    %4106 = vmatpush1.bf16.msra.mxu0 0
    %4107 = vmatprep.subr.bf16.mxu0 0
    %4108 = vmatpush1.bf16.msra.mxu0 0
    %4109 = vmatprep.subr.bf16.mxu0 0
    %4110 = vmatpush1.bf16.msra.mxu0 0
    %4111 = vmatprep.subr.bf16.mxu0 0
    %4112 = vmatpush1.bf16.msra.mxu0 0
    %4113 = vmatprep.subr.bf16.mxu0 0
    %4114 = vmatpush1.bf16.msra.mxu0 0
    %4115 = vmatprep.subr.bf16.mxu0 0
    %4116 = vmatpush1.bf16.msra.mxu0 0
    %4117 = vmatprep.subr.bf16.mxu0 0
    %4118 = vmatpush1.bf16.msra.mxu0 0
    %4119 = vmatprep.mubr.bf16.mxu0 0
    %4120 = vmatmul.mubr.bf16.gmra.mrb[0].mxu0 %v4079
    %v4121 = vpop.f32.mrb[0].mxu0
    %v4122 = vadd.f32 0.0, %v4121
    %v4123 = vpop.f32.mrb[0].mxu0
    %v4124 = vpop.f32.mrb[0].mxu0
    %v4125 = vadd.f32 0.0, %v4124
    %v4126 = vpop.f32.mrb[0].mxu0
    %4127 = vmatprep.mubr.bf16.mxu0 0
    %4128 = vmatmul.mubr.bf16.gmra.mrb[0].mxu0 %v4082
    %v4129 = vpop.f32.mrb[0].mxu0
    %v4130 = vadd.f32 0.0, %v4129
    %v4131 = vpop.f32.mrb[0].mxu0
    %v4132 = vpop.f32.mrb[0].mxu0
    %v4133 = vadd.f32 0.0, %v4132
    %v4134 = vpop.f32.mrb[0].mxu0
    %4135 = vmatprep.mubr.bf16.mxu0 0
    %4136 = vmatmul.mubr.bf16.gmra.mrb[0].mxu0 %v4085
    %v4137 = vpop.f32.mrb[0].mxu0
    %v4138 = vadd.f32 0.0, %v4137
    %v4139 = vpop.f32.mrb[0].mxu0
    %v4140 = vpop.f32.mrb[0].mxu0
    %v4141 = vpop.f32.mrb[0].mxu0
    %4142 = vdwg.mxu0
    %4143 = vrot.lane.b32.xlu0 %v895, 80
    %v4144 = vpop.permute.xlu0 %4143
    %4145 = vrot.lane.b32.xlu0 %v896, 80
    %v4146 = vpop.permute.xlu0 %4145
    %4147 = vrot.lane.b32.xlu0 %v897, 80
    %v4148 = vpop.permute.xlu0 %4147
    %4149 = vrot.lane.b32.xlu0 %v898, 80
    %v4150 = vpop.permute.xlu0 %4149
    %v4152 = vsel %vm899, %v4144, 0
    %v4155 = vsel %vm899, %v4146, 0
    %v4158 = vsel %vm899, %v4148, 0
    %v4161 = vsel %vm899, %v4150, 0
    %4163 = vmatprep.subr.bf16.mxu0 0
    %4164 = vmatpush1.bf16.xpose.msra.mxu0 %v4152
    %4165 = vmatprep.subr.bf16.mxu0 0
    %4166 = vmatpush1.bf16.xpose.msra.mxu0 %v4155
    %4167 = vmatprep.subr.bf16.mxu0 0
    %4168 = vmatpush1.bf16.xpose.msra.mxu0 %v4158
    %4169 = vmatprep.subr.bf16.mxu0 0
    %4170 = vmatpush1.bf16.xpose.msra.mxu0 %v4161
    %4171 = vmatprep.subr.bf16.mxu0 0
    %4172 = vmatpush1.bf16.xpose.msra.mxu0 0
    %4173 = vmatprep.subr.bf16.mxu0 0
    %4174 = vmatpush1.bf16.xpose.msra.mxu0 0
    %4175 = vmatprep.subr.bf16.mxu0 0
    %4176 = vmatpush1.bf16.xpose.msra.mxu0 0
    %4177 = vmatprep.subr.bf16.mxu0 0
    %4178 = vmatpush1.bf16.xpose.msra.mxu0 0
    %4179 = vmatprep.subr.bf16.mxu0 0
    %4180 = vmatpush1.bf16.xpose.msra.mxu0 0
    %4181 = vmatprep.subr.bf16.mxu0 0
    %4182 = vmatpush1.bf16.xpose.msra.mxu0 0
    %4183 = vmatprep.subr.bf16.mxu0 0
    %4184 = vmatpush1.bf16.xpose.msra.mxu0 0
    %4185 = vmatprep.subr.bf16.mxu0 0
    %4186 = vmatpush1.bf16.xpose.msra.mxu0 0
    %4187 = vmatprep.subr.bf16.mxu0 0
    %4188 = vmatpush1.bf16.xpose.msra.mxu0 0
    %4189 = vmatprep.subr.bf16.mxu0 0
    %4190 = vmatpush1.bf16.xpose.msra.mxu0 0
    %4191 = vmatprep.subr.bf16.mxu0 0
    %4192 = vmatpush1.bf16.xpose.msra.mxu0 0
    %4193 = vmatprep.subr.bf16.mxu0 0
    %4194 = vmatpush1.bf16.xpose.msra.mxu0 0
    %4195 = vmatprep.mubr.bf16.mxu0 0
    %4196 = vmatmul.mubr.bf16.gmra.mrb[0].mxu0 %v2264
    %v4197 = vpop.f32.mrb[0].mxu0
    %v4198 = vadd.f32 0.0, %v4197
    %v4199 = vpop.f32.mrb[0].mxu0
    %v4200 = vpop.f32.mrb[0].mxu0
    %v4201 = vadd.f32 0.0, %v4200
    %v4202 = vpop.f32.mrb[0].mxu0
    %4203 = vmatprep.mubr.bf16.mxu0 0
    %4204 = vmatmul.mubr.bf16.gmra.mrb[0].mxu0 %v2267
    %v4205 = vpop.f32.mrb[0].mxu0
    %v4206 = vadd.f32 0.0, %v4205
    %v4207 = vpop.f32.mrb[0].mxu0
    %v4208 = vpop.f32.mrb[0].mxu0
    %v4209 = vadd.f32 0.0, %v4208
    %v4210 = vpop.f32.mrb[0].mxu0
    %4211 = vmatprep.mubr.bf16.mxu0 0
    %4212 = vmatmul.mubr.bf16.gmra.mrb[0].mxu0 %v2270
    %v4213 = vpop.f32.mrb[0].mxu0
    %v4214 = vadd.f32 0.0, %v4213
    %v4215 = vpop.f32.mrb[0].mxu0
    %v4216 = vpop.f32.mrb[0].mxu0
    %v4217 = vpop.f32.mrb[0].mxu0
    %4218 = vdwg.mxu0
    %v4219 = vsel %vm370, %v4198, -inf
    %4220 = vmax.xlane.f32.xlu0 %v4219
    %v4221 = vpop.xlane.xlu0 %4220
    %v4222 = vsel %vm370, %v4201, -inf
    %4223 = vmax.xlane.f32.xlu0 %v4222
    %v4224 = vpop.xlane.xlu0 %4223
    %v4225 = vsel %vm370, %v4206, -inf
    %4226 = vmax.xlane.f32.xlu0 %v4225
    %v4227 = vpop.xlane.xlu0 %4226
    %v4228 = vsel %vm370, %v4209, -inf
    %4229 = vmax.xlane.f32.xlu0 %v4228
    %v4230 = vpop.xlane.xlu0 %4229
    %v4231 = vsel %vm370, %v4214, -inf
    %4232 = vmax.xlane.f32.xlu0 %v4231
    %v4233 = vpop.xlane.xlu0 %4232
    %v4234 = vsub.f32 %v4198, %v4221
    %v4235 = vsub.f32 %v4201, %v4224
    %v4236 = vsub.f32 %v4206, %v4227
    %v4237 = vsub.f32 %v4209, %v4230
    %v4238 = vsub.f32 %v4214, %v4233
    %v4239 = vmul.f32 %v4234, 1.442695
    %v4240 = vpow.pop %v4239
    %v4241 = vmul.f32 %v4235, 1.442695
    %v4242 = vpow.pop %v4241
    %v4243 = vmul.f32 %v4236, 1.442695
    %v4244 = vpow.pop %v4243
    %v4245 = vmul.f32 %v4237, 1.442695
    %v4246 = vpow.pop %v4245
    %v4247 = vmul.f32 %v4238, 1.442695
    %v4248 = vpow.pop %v4247
    %v4249 = vsel %vm370, %v4240, 0.0
    %4250 = vadd.xlane.f32.xlu0 %v4249
    %v4251 = vpop.xlane.xlu0 %4250
    %v4252 = vsel %vm370, %v4242, 0.0
    %4253 = vadd.xlane.f32.xlu0 %v4252
    %v4254 = vpop.xlane.xlu0 %4253
    %v4255 = vsel %vm370, %v4244, 0.0
    %4256 = vadd.xlane.f32.xlu0 %v4255
    %v4257 = vpop.xlane.xlu0 %4256
    %v4258 = vsel %vm370, %v4246, 0.0
    %4259 = vadd.xlane.f32.xlu0 %v4258
    %v4260 = vpop.xlane.xlu0 %4259
    %v4261 = vsel %vm370, %v4248, 0.0
    %4262 = vadd.xlane.f32.xlu0 %v4261
    %v4263 = vpop.xlane.xlu0 %4262
    %v4264 = vrcp.pop %v4251
    %v4265 = vrcp.pop %v4254
    %v4266 = vrcp.pop %v4257
    %v4267 = vrcp.pop %v4260
    %v4268 = vrcp.pop %v4263
    %v4269 = vmul.f32 %v4240, %v4264
    %v4270 = vmul.f32 %v4242, %v4265
    %v4271 = vmul.f32 %v4244, %v4266
    %v4272 = vmul.f32 %v4246, %v4267
    %v4273 = vmul.f32 %v4248, %v4268
    %v4274 = vpack.c.bf16 %v4270, %v4269
    %v4275 = vpack.c.bf16 %v4272, %v4271
    %v4276 = vpack.c.bf16 %v4273, %v4273
    %4277 = vrot.lane.b32.xlu0 %v895, 16
    %v4278 = vpop.permute.xlu0 %4277
    %4279 = vrot.lane.b32.xlu0 %v896, 16
    %v4280 = vpop.permute.xlu0 %4279
    %4281 = vrot.lane.b32.xlu0 %v897, 16
    %v4282 = vpop.permute.xlu0 %4281
    %4283 = vrot.lane.b32.xlu0 %v898, 16
    %v4284 = vpop.permute.xlu0 %4283
    %v4290 = vsel %vm370, %v4274, 0
    %v4293 = vsel %vm370, %v4275, 0
    %v4296 = vsel %vm370, %v4276, 0
    %4298 = vmatprep.subr.bf16.mxu0 0
    %4299 = vmatpush1.bf16.msra.mxu0 %v4278
    %4300 = vmatprep.subr.bf16.mxu0 0
    %4301 = vmatpush1.bf16.msra.mxu0 %v4280
    %4302 = vmatprep.subr.bf16.mxu0 0
    %4303 = vmatpush1.bf16.msra.mxu0 %v4282
    %4304 = vmatprep.subr.bf16.mxu0 0
    %4305 = vmatpush1.bf16.msra.mxu0 %v4284
    %4306 = vmatprep.subr.bf16.mxu0 0
    %4307 = vmatpush1.bf16.msra.mxu0 0
    %4308 = vmatprep.subr.bf16.mxu0 0
    %4309 = vmatpush1.bf16.msra.mxu0 0
    %4310 = vmatprep.subr.bf16.mxu0 0
    %4311 = vmatpush1.bf16.msra.mxu0 0
    %4312 = vmatprep.subr.bf16.mxu0 0
    %4313 = vmatpush1.bf16.msra.mxu0 0
    %4314 = vmatprep.subr.bf16.mxu0 0
    %4315 = vmatpush1.bf16.msra.mxu0 0
    %4316 = vmatprep.subr.bf16.mxu0 0
    %4317 = vmatpush1.bf16.msra.mxu0 0
    %4318 = vmatprep.subr.bf16.mxu0 0
    %4319 = vmatpush1.bf16.msra.mxu0 0
    %4320 = vmatprep.subr.bf16.mxu0 0
    %4321 = vmatpush1.bf16.msra.mxu0 0
    %4322 = vmatprep.subr.bf16.mxu0 0
    %4323 = vmatpush1.bf16.msra.mxu0 0
    %4324 = vmatprep.subr.bf16.mxu0 0
    %4325 = vmatpush1.bf16.msra.mxu0 0
    %4326 = vmatprep.subr.bf16.mxu0 0
    %4327 = vmatpush1.bf16.msra.mxu0 0
    %4328 = vmatprep.subr.bf16.mxu0 0
    %4329 = vmatpush1.bf16.msra.mxu0 0
    %4330 = vmatprep.mubr.bf16.mxu0 0
    %4331 = vmatmul.mubr.bf16.gmra.mrb[0].mxu0 %v4290
    %v4332 = vpop.f32.mrb[0].mxu0
    %v4333 = vadd.f32 0.0, %v4332
    %v4334 = vpop.f32.mrb[0].mxu0
    %v4335 = vpop.f32.mrb[0].mxu0
    %v4336 = vadd.f32 0.0, %v4335
    %v4337 = vpop.f32.mrb[0].mxu0
    %4338 = vmatprep.mubr.bf16.mxu0 0
    %4339 = vmatmul.mubr.bf16.gmra.mrb[0].mxu0 %v4293
    %v4340 = vpop.f32.mrb[0].mxu0
    %v4341 = vadd.f32 0.0, %v4340
    %v4342 = vpop.f32.mrb[0].mxu0
    %v4343 = vpop.f32.mrb[0].mxu0
    %v4344 = vadd.f32 0.0, %v4343
    %v4345 = vpop.f32.mrb[0].mxu0
    %4346 = vmatprep.mubr.bf16.mxu0 0
    %4347 = vmatmul.mubr.bf16.gmra.mrb[0].mxu0 %v4296
    %v4348 = vpop.f32.mrb[0].mxu0
    %v4349 = vadd.f32 0.0, %v4348
    %v4350 = vpop.f32.mrb[0].mxu0
    %v4351 = vpop.f32.mrb[0].mxu0
    %v4352 = vpop.f32.mrb[0].mxu0
    %4353 = vdwg.mxu0
    %4354 = vrot.lane.b32.xlu0 %v895, 72
    %v4355 = vpop.permute.xlu0 %4354
    %4356 = vrot.lane.b32.xlu0 %v896, 72
    %v4357 = vpop.permute.xlu0 %4356
    %4358 = vrot.lane.b32.xlu0 %v897, 72
    %v4359 = vpop.permute.xlu0 %4358
    %4360 = vrot.lane.b32.xlu0 %v898, 72
    %v4361 = vpop.permute.xlu0 %4360
    %v4363 = vsel %vm899, %v4355, 0
    %v4366 = vsel %vm899, %v4357, 0
    %v4369 = vsel %vm899, %v4359, 0
    %v4372 = vsel %vm899, %v4361, 0
    %4374 = vmatprep.subr.bf16.mxu0 0
    %4375 = vmatpush1.bf16.xpose.msra.mxu0 %v4363
    %4376 = vmatprep.subr.bf16.mxu0 0
    %4377 = vmatpush1.bf16.xpose.msra.mxu0 %v4366
    %4378 = vmatprep.subr.bf16.mxu0 0
    %4379 = vmatpush1.bf16.xpose.msra.mxu0 %v4369
    %4380 = vmatprep.subr.bf16.mxu0 0
    %4381 = vmatpush1.bf16.xpose.msra.mxu0 %v4372
    %4382 = vmatprep.subr.bf16.mxu0 0
    %4383 = vmatpush1.bf16.xpose.msra.mxu0 0
    %4384 = vmatprep.subr.bf16.mxu0 0
    %4385 = vmatpush1.bf16.xpose.msra.mxu0 0
    %4386 = vmatprep.subr.bf16.mxu0 0
    %4387 = vmatpush1.bf16.xpose.msra.mxu0 0
    %4388 = vmatprep.subr.bf16.mxu0 0
    %4389 = vmatpush1.bf16.xpose.msra.mxu0 0
    %4390 = vmatprep.subr.bf16.mxu0 0
    %4391 = vmatpush1.bf16.xpose.msra.mxu0 0
    %4392 = vmatprep.subr.bf16.mxu0 0
    %4393 = vmatpush1.bf16.xpose.msra.mxu0 0
    %4394 = vmatprep.subr.bf16.mxu0 0
    %4395 = vmatpush1.bf16.xpose.msra.mxu0 0
    %4396 = vmatprep.subr.bf16.mxu0 0
    %4397 = vmatpush1.bf16.xpose.msra.mxu0 0
    %4398 = vmatprep.subr.bf16.mxu0 0
    %4399 = vmatpush1.bf16.xpose.msra.mxu0 0
    %4400 = vmatprep.subr.bf16.mxu0 0
    %4401 = vmatpush1.bf16.xpose.msra.mxu0 0
    %4402 = vmatprep.subr.bf16.mxu0 0
    %4403 = vmatpush1.bf16.xpose.msra.mxu0 0
    %4404 = vmatprep.subr.bf16.mxu0 0
    %4405 = vmatpush1.bf16.xpose.msra.mxu0 0
    %4406 = vmatprep.mubr.bf16.mxu0 0
    %4407 = vmatmul.mubr.bf16.gmra.mrb[0].mxu0 %v2490
    %v4408 = vpop.f32.mrb[0].mxu0
    %v4409 = vadd.f32 0.0, %v4408
    %v4410 = vpop.f32.mrb[0].mxu0
    %v4411 = vpop.f32.mrb[0].mxu0
    %v4412 = vadd.f32 0.0, %v4411
    %v4413 = vpop.f32.mrb[0].mxu0
    %4414 = vmatprep.mubr.bf16.mxu0 0
    %4415 = vmatmul.mubr.bf16.gmra.mrb[0].mxu0 %v2493
    %v4416 = vpop.f32.mrb[0].mxu0
    %v4417 = vadd.f32 0.0, %v4416
    %v4418 = vpop.f32.mrb[0].mxu0
    %v4419 = vpop.f32.mrb[0].mxu0
    %v4420 = vadd.f32 0.0, %v4419
    %v4421 = vpop.f32.mrb[0].mxu0
    %4422 = vmatprep.mubr.bf16.mxu0 0
    %4423 = vmatmul.mubr.bf16.gmra.mrb[0].mxu0 %v2496
    %v4424 = vpop.f32.mrb[0].mxu0
    %v4425 = vadd.f32 0.0, %v4424
    %v4426 = vpop.f32.mrb[0].mxu0
    %v4427 = vpop.f32.mrb[0].mxu0
    %v4428 = vpop.f32.mrb[0].mxu0
    %4429 = vdwg.mxu0
    %v4430 = vsel %vm370, %v4409, -inf
    %4431 = vmax.xlane.f32.xlu0 %v4430
    %v4432 = vpop.xlane.xlu0 %4431
    %v4433 = vsel %vm370, %v4412, -inf
    %4434 = vmax.xlane.f32.xlu0 %v4433
    %v4435 = vpop.xlane.xlu0 %4434
    %v4436 = vsel %vm370, %v4417, -inf
    %4437 = vmax.xlane.f32.xlu0 %v4436
    %v4438 = vpop.xlane.xlu0 %4437
    %v4439 = vsel %vm370, %v4420, -inf
    %4440 = vmax.xlane.f32.xlu0 %v4439
    %v4441 = vpop.xlane.xlu0 %4440
    %v4442 = vsel %vm370, %v4425, -inf
    %4443 = vmax.xlane.f32.xlu0 %v4442
    %v4444 = vpop.xlane.xlu0 %4443
    %v4445 = vsub.f32 %v4409, %v4432
    %v4446 = vsub.f32 %v4412, %v4435
    %v4447 = vsub.f32 %v4417, %v4438
    %v4448 = vsub.f32 %v4420, %v4441
    %v4449 = vsub.f32 %v4425, %v4444
    %v4450 = vmul.f32 %v4445, 1.442695
    %v4451 = vpow.pop %v4450
    %v4452 = vmul.f32 %v4446, 1.442695
    %v4453 = vpow.pop %v4452
    %v4454 = vmul.f32 %v4447, 1.442695
    %v4455 = vpow.pop %v4454
    %v4456 = vmul.f32 %v4448, 1.442695
    %v4457 = vpow.pop %v4456
    %v4458 = vmul.f32 %v4449, 1.442695
    %v4459 = vpow.pop %v4458
    %v4460 = vsel %vm370, %v4451, 0.0
    %4461 = vadd.xlane.f32.xlu0 %v4460
    %v4462 = vpop.xlane.xlu0 %4461
    %v4463 = vsel %vm370, %v4453, 0.0
    %4464 = vadd.xlane.f32.xlu0 %v4463
    %v4465 = vpop.xlane.xlu0 %4464
    %v4466 = vsel %vm370, %v4455, 0.0
    %4467 = vadd.xlane.f32.xlu0 %v4466
    %v4468 = vpop.xlane.xlu0 %4467
    %v4469 = vsel %vm370, %v4457, 0.0
    %4470 = vadd.xlane.f32.xlu0 %v4469
    %v4471 = vpop.xlane.xlu0 %4470
    %v4472 = vsel %vm370, %v4459, 0.0
    %4473 = vadd.xlane.f32.xlu0 %v4472
    %v4474 = vpop.xlane.xlu0 %4473
    %v4475 = vrcp.pop %v4462
    %v4476 = vrcp.pop %v4465
    %v4477 = vrcp.pop %v4468
    %v4478 = vrcp.pop %v4471
    %v4479 = vrcp.pop %v4474
    %v4480 = vmul.f32 %v4451, %v4475
    %v4481 = vmul.f32 %v4453, %v4476
    %v4482 = vmul.f32 %v4455, %v4477
    %v4483 = vmul.f32 %v4457, %v4478
    %v4484 = vmul.f32 %v4459, %v4479
    %v4485 = vpack.c.bf16 %v4481, %v4480
    %v4486 = vpack.c.bf16 %v4483, %v4482
    %v4487 = vpack.c.bf16 %v4484, %v4484
    %4488 = vrot.lane.b32.xlu0 %v895, 8
    %v4489 = vpop.permute.xlu0 %4488
    %4490 = vrot.lane.b32.xlu0 %v896, 8
    %v4491 = vpop.permute.xlu0 %4490
    %4492 = vrot.lane.b32.xlu0 %v897, 8
    %v4493 = vpop.permute.xlu0 %4492
    %4494 = vrot.lane.b32.xlu0 %v898, 8
    %v4495 = vpop.permute.xlu0 %4494
    %v4501 = vsel %vm370, %v4485, 0
    %v4504 = vsel %vm370, %v4486, 0
    %v4507 = vsel %vm370, %v4487, 0
    %4509 = vmatprep.subr.bf16.mxu0 0
    %4510 = vmatpush1.bf16.msra.mxu0 %v4489
    %4511 = vmatprep.subr.bf16.mxu0 0
    %4512 = vmatpush1.bf16.msra.mxu0 %v4491
    %4513 = vmatprep.subr.bf16.mxu0 0
    %4514 = vmatpush1.bf16.msra.mxu0 %v4493
    %4515 = vmatprep.subr.bf16.mxu0 0
    %4516 = vmatpush1.bf16.msra.mxu0 %v4495
    %4517 = vmatprep.subr.bf16.mxu0 0
    %4518 = vmatpush1.bf16.msra.mxu0 0
    %4519 = vmatprep.subr.bf16.mxu0 0
    %4520 = vmatpush1.bf16.msra.mxu0 0
    %4521 = vmatprep.subr.bf16.mxu0 0
    %4522 = vmatpush1.bf16.msra.mxu0 0
    %4523 = vmatprep.subr.bf16.mxu0 0
    %4524 = vmatpush1.bf16.msra.mxu0 0
    %4525 = vmatprep.subr.bf16.mxu0 0
    %4526 = vmatpush1.bf16.msra.mxu0 0
    %4527 = vmatprep.subr.bf16.mxu0 0
    %4528 = vmatpush1.bf16.msra.mxu0 0
    %4529 = vmatprep.subr.bf16.mxu0 0
    %4530 = vmatpush1.bf16.msra.mxu0 0
    %4531 = vmatprep.subr.bf16.mxu0 0
    %4532 = vmatpush1.bf16.msra.mxu0 0
    %4533 = vmatprep.subr.bf16.mxu0 0
    %4534 = vmatpush1.bf16.msra.mxu0 0
    %4535 = vmatprep.subr.bf16.mxu0 0
    %4536 = vmatpush1.bf16.msra.mxu0 0
    %4537 = vmatprep.subr.bf16.mxu0 0
    %4538 = vmatpush1.bf16.msra.mxu0 0
    %4539 = vmatprep.subr.bf16.mxu0 0
    %4540 = vmatpush1.bf16.msra.mxu0 0
    %4541 = vmatprep.mubr.bf16.mxu0 0
    %4542 = vmatmul.mubr.bf16.gmra.mrb[0].mxu0 %v4501
    %v4543 = vpop.f32.mrb[0].mxu0
    %v4544 = vadd.f32 0.0, %v4543
    %v4545 = vpop.f32.mrb[0].mxu0
    %v4546 = vpop.f32.mrb[0].mxu0
    %v4547 = vadd.f32 0.0, %v4546
    %v4548 = vpop.f32.mrb[0].mxu0
    %4549 = vmatprep.mubr.bf16.mxu0 0
    %4550 = vmatmul.mubr.bf16.gmra.mrb[0].mxu0 %v4504
    %v4551 = vpop.f32.mrb[0].mxu0
    %v4552 = vadd.f32 0.0, %v4551
    %v4553 = vpop.f32.mrb[0].mxu0
    %v4554 = vpop.f32.mrb[0].mxu0
    %v4555 = vadd.f32 0.0, %v4554
    %v4556 = vpop.f32.mrb[0].mxu0
    %4557 = vmatprep.mubr.bf16.mxu0 0
    %4558 = vmatmul.mubr.bf16.gmra.mrb[0].mxu0 %v4507
    %v4559 = vpop.f32.mrb[0].mxu0
    %v4560 = vadd.f32 0.0, %v4559
    %v4561 = vpop.f32.mrb[0].mxu0
    %v4562 = vpop.f32.mrb[0].mxu0
    %v4563 = vpop.f32.mrb[0].mxu0
    %4564 = vdwg.mxu0
    %4570 = vrot.lane.b32.xlu0 %v3278, 8
    %v4571 = vpop.permute.xlu0 %4570
    %4572 = vrot.lane.b32.xlu0 %v3281, 8
    %v4573 = vpop.permute.xlu0 %4572
    %4574 = vrot.lane.b32.xlu0 %v3286, 8
    %v4575 = vpop.permute.xlu0 %4574
    %4576 = vrot.lane.b32.xlu0 %v3289, 8
    %v4577 = vpop.permute.xlu0 %4576
    %4578 = vrot.lane.b32.xlu0 %v3294, 8
    %v4579 = vpop.permute.xlu0 %4578
    %4590 = vrot.lane.b32.xlu0 %v3489, 16
    %v4591 = vpop.permute.xlu0 %4590
    %4592 = vrot.lane.b32.xlu0 %v3492, 16
    %v4593 = vpop.permute.xlu0 %4592
    %4594 = vrot.lane.b32.xlu0 %v3497, 16
    %v4595 = vpop.permute.xlu0 %4594
    %4596 = vrot.lane.b32.xlu0 %v3500, 16
    %v4597 = vpop.permute.xlu0 %4596
    %4598 = vrot.lane.b32.xlu0 %v3505, 16
    %v4599 = vpop.permute.xlu0 %4598
    %4610 = vrot.lane.b32.xlu0 %v3700, 24
    %v4611 = vpop.permute.xlu0 %4610
    %4612 = vrot.lane.b32.xlu0 %v3703, 24
    %v4613 = vpop.permute.xlu0 %4612
    %4614 = vrot.lane.b32.xlu0 %v3708, 24
    %v4615 = vpop.permute.xlu0 %4614
    %4616 = vrot.lane.b32.xlu0 %v3711, 24
    %v4617 = vpop.permute.xlu0 %4616
    %4618 = vrot.lane.b32.xlu0 %v3716, 24
    %v4619 = vpop.permute.xlu0 %4618
    %4630 = vrot.lane.b32.xlu0 %v3911, 32
    %v4631 = vpop.permute.xlu0 %4630
    %4632 = vrot.lane.b32.xlu0 %v3914, 32
    %v4633 = vpop.permute.xlu0 %4632
    %4634 = vrot.lane.b32.xlu0 %v3919, 32
    %v4635 = vpop.permute.xlu0 %4634
    %4636 = vrot.lane.b32.xlu0 %v3922, 32
    %v4637 = vpop.permute.xlu0 %4636
    %4638 = vrot.lane.b32.xlu0 %v3927, 32
    %v4639 = vpop.permute.xlu0 %4638
    %4650 = vrot.lane.b32.xlu0 %v4122, 40
    %v4651 = vpop.permute.xlu0 %4650
    %4652 = vrot.lane.b32.xlu0 %v4125, 40
    %v4653 = vpop.permute.xlu0 %4652
    %4654 = vrot.lane.b32.xlu0 %v4130, 40
    %v4655 = vpop.permute.xlu0 %4654
    %4656 = vrot.lane.b32.xlu0 %v4133, 40
    %v4657 = vpop.permute.xlu0 %4656
    %4658 = vrot.lane.b32.xlu0 %v4138, 40
    %v4659 = vpop.permute.xlu0 %4658
    %4670 = vrot.lane.b32.xlu0 %v4333, 48
    %v4671 = vpop.permute.xlu0 %4670
    %4672 = vrot.lane.b32.xlu0 %v4336, 48
    %v4673 = vpop.permute.xlu0 %4672
    %4674 = vrot.lane.b32.xlu0 %v4341, 48
    %v4675 = vpop.permute.xlu0 %4674
    %4676 = vrot.lane.b32.xlu0 %v4344, 48
    %v4677 = vpop.permute.xlu0 %4676
    %4678 = vrot.lane.b32.xlu0 %v4349, 48
    %v4679 = vpop.permute.xlu0 %4678
    %4690 = vrot.lane.b32.xlu0 %v4544, 56
    %v4691 = vpop.permute.xlu0 %4690
    %4692 = vrot.lane.b32.xlu0 %v4547, 56
    %v4693 = vpop.permute.xlu0 %4692
    %4694 = vrot.lane.b32.xlu0 %v4552, 56
    %v4695 = vpop.permute.xlu0 %4694
    %4696 = vrot.lane.b32.xlu0 %v4555, 56
    %v4697 = vpop.permute.xlu0 %4696
    %4698 = vrot.lane.b32.xlu0 %v4560, 56
    %v4699 = vpop.permute.xlu0 %4698
    %v4705 = vsel %vm899, %v3067, %v4571
    %v4706 = vsel %vm899, %v3070, %v4573
    %v4707 = vsel %vm899, %v3075, %v4575
    %v4708 = vsel %vm899, %v3078, %v4577
    %v4709 = vsel %vm899, %v3083, %v4579
    %v4710 = vsel %vm2846, %v4705, %v4591
    %v4711 = vsel %vm2846, %v4706, %v4593
    %v4712 = vsel %vm2846, %v4707, %v4595
    %v4713 = vsel %vm2846, %v4708, %v4597
    %v4714 = vsel %vm2846, %v4709, %v4599
    %v4715 = vsel %vm2852, %v4710, %v4611
    %v4716 = vsel %vm2852, %v4711, %v4613
    %v4717 = vsel %vm2852, %v4712, %v4615
    %v4718 = vsel %vm2852, %v4713, %v4617
    %v4719 = vsel %vm2852, %v4714, %v4619
    %v4720 = vsel %vm161, %v4715, %v4631
    %v4721 = vsel %vm161, %v4716, %v4633
    %v4722 = vsel %vm161, %v4717, %v4635
    %v4723 = vsel %vm161, %v4718, %v4637
    %v4724 = vsel %vm161, %v4719, %v4639
    %v4725 = vsel %vm2863, %v4720, %v4651
    %v4726 = vsel %vm2863, %v4721, %v4653
    %v4727 = vsel %vm2863, %v4722, %v4655
    %v4728 = vsel %vm2863, %v4723, %v4657
    %v4729 = vsel %vm2863, %v4724, %v4659
    %v4730 = vsel %vm2869, %v4725, %v4671
    %v4731 = vsel %vm2869, %v4726, %v4673
    %v4732 = vsel %vm2869, %v4727, %v4675
    %v4733 = vsel %vm2869, %v4728, %v4677
    %v4734 = vsel %vm2869, %v4729, %v4679
    %v4735 = vsel %vm2875, %v4730, %v4691
    %v4736 = vsel %vm2875, %v4731, %v4693
    %v4737 = vsel %vm2875, %v4732, %v4695
    %v4738 = vsel %vm2875, %v4733, %v4697
    %v4739 = vsel %vm2875, %v4734, %v4699
    %v4740 = vpack.c.bf16 %v2877, %v2876
    %v4741 = vpack.c.bf16 %v2879, %v2878
    %v4742 = vpack.c.bf16 %v4735, %v2880
    %v4743 = vpack.c.bf16 %v4737, %v4736
    %v4744 = vpack.c.bf16 %v4739, %v4738
    %v4745 = vld [vmem:[%s13] sm:$0xf]
    %v4746 = vld [vmem:[%s13 + $0x4] sm:$0xf]
    %v4747 = vld [vmem:[%s13 + $0x8] sm:$0xf]
    %v4748 = vld [vmem:[%s13 + $0xc] sm:$0xf]
    %v4749 = vld [vmem:[%s13 + $0x10] sm:$0xf]
    %v4750 = vld [vmem:[%s13 + $0x14] sm:$0xf]
    %v4751 = vld [vmem:[%s13 + $0x18] sm:$0xf]
    %v4752 = vld [vmem:[%s13 + $0x1c] sm:$0xf]
    %v4753 = vld [vmem:[%s14] sm:$0x1]
    %v4755 = vlaneseq
    %v4756 = vshrl.u32 %v4755, 7
    %v4757 = vsub.s32 0, %v4756
    %v4758 = vrot.slane %v4753, %v4757
    %v4768 = vunpack.c.l.b16 %v4745
    %v4769 = vunpack.c.l.b16 %v4746
    %v4770 = vunpack.c.l.b16 %v4747
    %v4771 = vunpack.c.l.b16 %v4748
    %v4772 = vunpack.c.l.b16 %v4749
    %v4773 = vunpack.c.l.b16 %v4750
    %v4774 = vunpack.c.l.b16 %v4751
    %v4775 = vunpack.c.l.b16 %v4752
    %v4776 = vpack.c.b16 %v4769, %v4768
    %v4777 = vpack.c.b16 %v4771, %v4770
    %v4778 = vpack.c.b16 %v4773, %v4772
    %v4779 = vpack.c.b16 %v4775, %v4774
    %v4785 = vsel %vm370, %v4740, 0
    %v4788 = vsel %vm370, %v4741, 0
    %v4791 = vsel %vm370, %v4742, 0
    %v4794 = vsel %vm370, %v4743, 0
    %v4797 = vsel %vm370, %v4744, 0
    %4799 = vmatprep.subr.bf16.mxu0 0
    %4800 = vmatpush1.bf16.msra.mxu0 %v4776
    %4801 = vmatprep.subr.bf16.mxu0 0
    %4802 = vmatpush1.bf16.msra.mxu0 %v4777
    %4803 = vmatprep.subr.bf16.mxu0 0
    %4804 = vmatpush1.bf16.msra.mxu0 %v4778
    %4805 = vmatprep.subr.bf16.mxu0 0
    %4806 = vmatpush1.bf16.msra.mxu0 %v4779
    %4807 = vmatprep.subr.bf16.mxu0 0
    %4808 = vmatpush1.bf16.msra.mxu0 0
    %4809 = vmatprep.subr.bf16.mxu0 0
    %4810 = vmatpush1.bf16.msra.mxu0 0
    %4811 = vmatprep.subr.bf16.mxu0 0
    %4812 = vmatpush1.bf16.msra.mxu0 0
    %4813 = vmatprep.subr.bf16.mxu0 0
    %4814 = vmatpush1.bf16.msra.mxu0 0
    %4815 = vmatprep.subr.bf16.mxu0 0
    %4816 = vmatpush1.bf16.msra.mxu0 0
    %4817 = vmatprep.subr.bf16.mxu0 0
    %4818 = vmatpush1.bf16.msra.mxu0 0
    %4819 = vmatprep.subr.bf16.mxu0 0
    %4820 = vmatpush1.bf16.msra.mxu0 0
    %4821 = vmatprep.subr.bf16.mxu0 0
    %4822 = vmatpush1.bf16.msra.mxu0 0
    %4823 = vmatprep.subr.bf16.mxu0 0
    %4824 = vmatpush1.bf16.msra.mxu0 0
    %4825 = vmatprep.subr.bf16.mxu0 0
    %4826 = vmatpush1.bf16.msra.mxu0 0
    %4827 = vmatprep.subr.bf16.mxu0 0
    %4828 = vmatpush1.bf16.msra.mxu0 0
    %4829 = vmatprep.subr.bf16.mxu0 0
    %4830 = vmatpush1.bf16.msra.mxu0 0
    %4831 = vmatprep.mubr.bf16.mxu0 0
    %4832 = vmatmul.mubr.bf16.gmra.mrb[0].mxu0 %v4785
    %v4833 = vpop.f32.mrb[0].mxu0
    %v4834 = vadd.f32 %v4758, %v4833
    %v4835 = vpop.f32.mrb[0].mxu0
    %v4836 = vpop.f32.mrb[0].mxu0
    %v4837 = vadd.f32 %v4758, %v4836
    %v4838 = vpop.f32.mrb[0].mxu0
    %4839 = vmatprep.mubr.bf16.mxu0 0
    %4840 = vmatmul.mubr.bf16.gmra.mrb[0].mxu0 %v4788
    %v4841 = vpop.f32.mrb[0].mxu0
    %v4842 = vadd.f32 %v4758, %v4841
    %v4843 = vpop.f32.mrb[0].mxu0
    %v4844 = vpop.f32.mrb[0].mxu0
    %v4845 = vadd.f32 %v4758, %v4844
    %v4846 = vpop.f32.mrb[0].mxu0
    %4847 = vmatprep.mubr.bf16.mxu0 0
    %4848 = vmatmul.mubr.bf16.gmra.mrb[0].mxu0 %v4791
    %v4849 = vpop.f32.mrb[0].mxu0
    %v4850 = vadd.f32 %v4758, %v4849
    %v4851 = vpop.f32.mrb[0].mxu0
    %v4852 = vpop.f32.mrb[0].mxu0
    %v4853 = vadd.f32 %v4758, %v4852
    %v4854 = vpop.f32.mrb[0].mxu0
    %4855 = vmatprep.mubr.bf16.mxu0 0
    %4856 = vmatmul.mubr.bf16.gmra.mrb[0].mxu0 %v4794
    %v4857 = vpop.f32.mrb[0].mxu0
    %v4858 = vadd.f32 %v4758, %v4857
    %v4859 = vpop.f32.mrb[0].mxu0
    %v4860 = vpop.f32.mrb[0].mxu0
    %v4861 = vadd.f32 %v4758, %v4860
    %v4862 = vpop.f32.mrb[0].mxu0
    %4863 = vmatprep.mubr.bf16.mxu0 0
    %4864 = vmatmul.mubr.bf16.gmra.mrb[0].mxu0 %v4797
    %v4865 = vpop.f32.mrb[0].mxu0
    %v4866 = vadd.f32 %v4758, %v4865
    %v4867 = vpop.f32.mrb[0].mxu0
    %v4868 = vpop.f32.mrb[0].mxu0
    %v4869 = vadd.f32 %v4758, %v4868
    %v4870 = vpop.f32.mrb[0].mxu0
    %4871 = vdwg.mxu0
    %v4872 = vadd.f32 %v611, %v4834
    %v4873 = vadd.f32 %v612, %v4837
    %v4874 = vadd.f32 %v613, %v4842
    %v4875 = vadd.f32 %v614, %v4845
    %v4876 = vadd.f32 %v615, %v4850
    %v4877 = vadd.f32 %v611, %v4853
    %v4878 = vadd.f32 %v612, %v4858
    %v4879 = vadd.f32 %v613, %v4861
    %v4880 = vadd.f32 %v614, %v4866
    %v4881 = vadd.f32 %v615, %v4869
    %v4882 = vld [vmem:[%s15] sm:$0x1]
    %v4883 = vld [vmem:[%s16] sm:$0x1]
    %v4884 = vsel %vm370, %v4872, 0.0
    %4885 = vadd.xlane.f32.xlu0 %v4884
    %v4886 = vpop.xlane.xlu0 %4885
    %v4887 = vsel %vm370, %v4873, 0.0
    %4888 = vadd.xlane.f32.xlu0 %v4887
    %v4889 = vpop.xlane.xlu0 %4888
    %v4890 = vsel %vm370, %v4874, 0.0
    %4891 = vadd.xlane.f32.xlu0 %v4890
    %v4892 = vpop.xlane.xlu0 %4891
    %v4893 = vsel %vm370, %v4875, 0.0
    %4894 = vadd.xlane.f32.xlu0 %v4893
    %v4895 = vpop.xlane.xlu0 %4894
    %v4896 = vsel %vm370, %v4876, 0.0
    %4897 = vadd.xlane.f32.xlu0 %v4896
    %v4898 = vpop.xlane.xlu0 %4897
    %v4899 = vsel %vm370, %v4877, 0.0
    %4900 = vadd.xlane.f32.xlu0 %v4899
    %v4901 = vpop.xlane.xlu0 %4900
    %v4902 = vsel %vm370, %v4878, 0.0
    %4903 = vadd.xlane.f32.xlu0 %v4902
    %v4904 = vpop.xlane.xlu0 %4903
    %v4905 = vsel %vm370, %v4879, 0.0
    %4906 = vadd.xlane.f32.xlu0 %v4905
    %v4907 = vpop.xlane.xlu0 %4906
    %v4908 = vsel %vm370, %v4880, 0.0
    %4909 = vadd.xlane.f32.xlu0 %v4908
    %v4910 = vpop.xlane.xlu0 %4909
    %v4911 = vsel %vm370, %v4881, 0.0
    %4912 = vadd.xlane.f32.xlu0 %v4911
    %v4913 = vpop.xlane.xlu0 %4912
    %v4914 = vmul.f32 %v4886, %v543
    %v4915 = vmul.f32 %v4889, %v543
    %v4916 = vmul.f32 %v4892, %v543
    %v4917 = vmul.f32 %v4895, %v543
    %v4918 = vmul.f32 %v4898, %v543
    %v4919 = vmul.f32 %v4901, %v543
    %v4920 = vmul.f32 %v4904, %v543
    %v4921 = vmul.f32 %v4907, %v543
    %v4922 = vmul.f32 %v4910, %v543
    %v4923 = vmul.f32 %v4913, %v543
    %v4924 = vsub.f32 %v4872, %v4914
    %v4925 = vsub.f32 %v4873, %v4915
    %v4926 = vsub.f32 %v4874, %v4916
    %v4927 = vsub.f32 %v4875, %v4917
    %v4928 = vsub.f32 %v4876, %v4918
    %v4929 = vsub.f32 %v4877, %v4919
    %v4930 = vsub.f32 %v4878, %v4920
    %v4931 = vsub.f32 %v4879, %v4921
    %v4932 = vsub.f32 %v4880, %v4922
    %v4933 = vsub.f32 %v4881, %v4923
    %v4934 = vmul.f32 %v4924, %v4924
    %v4935 = vmul.f32 %v4925, %v4925
    %v4936 = vmul.f32 %v4926, %v4926
    %v4937 = vmul.f32 %v4927, %v4927
    %v4938 = vmul.f32 %v4928, %v4928
    %v4939 = vmul.f32 %v4929, %v4929
    %v4940 = vmul.f32 %v4930, %v4930
    %v4941 = vmul.f32 %v4931, %v4931
    %v4942 = vmul.f32 %v4932, %v4932
    %v4943 = vmul.f32 %v4933, %v4933
    %v4944 = vsel %vm370, %v4934, 0.0
    %4945 = vadd.xlane.f32.xlu0 %v4944
    %v4946 = vpop.xlane.xlu0 %4945
    %v4947 = vsel %vm370, %v4935, 0.0
    %4948 = vadd.xlane.f32.xlu0 %v4947
    %v4949 = vpop.xlane.xlu0 %4948
    %v4950 = vsel %vm370, %v4936, 0.0
    %4951 = vadd.xlane.f32.xlu0 %v4950
    %v4952 = vpop.xlane.xlu0 %4951
    %v4953 = vsel %vm370, %v4937, 0.0
    %4954 = vadd.xlane.f32.xlu0 %v4953
    %v4955 = vpop.xlane.xlu0 %4954
    %v4956 = vsel %vm370, %v4938, 0.0
    %4957 = vadd.xlane.f32.xlu0 %v4956
    %v4958 = vpop.xlane.xlu0 %4957
    %v4959 = vsel %vm370, %v4939, 0.0
    %4960 = vadd.xlane.f32.xlu0 %v4959
    %v4961 = vpop.xlane.xlu0 %4960
    %v4962 = vsel %vm370, %v4940, 0.0
    %4963 = vadd.xlane.f32.xlu0 %v4962
    %v4964 = vpop.xlane.xlu0 %4963
    %v4965 = vsel %vm370, %v4941, 0.0
    %4966 = vadd.xlane.f32.xlu0 %v4965
    %v4967 = vpop.xlane.xlu0 %4966
    %v4968 = vsel %vm370, %v4942, 0.0
    %4969 = vadd.xlane.f32.xlu0 %v4968
    %v4970 = vpop.xlane.xlu0 %4969
    %v4971 = vsel %vm370, %v4943, 0.0
    %4972 = vadd.xlane.f32.xlu0 %v4971
    %v4973 = vpop.xlane.xlu0 %4972
    %v4974 = vmul.f32 %v4946, %v543
    %v4975 = vmul.f32 %v4949, %v543
    %v4976 = vmul.f32 %v4952, %v543
    %v4977 = vmul.f32 %v4955, %v543
    %v4978 = vmul.f32 %v4958, %v543
    %v4979 = vmul.f32 %v4961, %v543
    %v4980 = vmul.f32 %v4964, %v543
    %v4981 = vmul.f32 %v4967, %v543
    %v4982 = vmul.f32 %v4970, %v543
    %v4983 = vmul.f32 %v4973, %v543
    %v4984 = vadd.f32 %v4974, 1e-05
    %v4985 = vadd.f32 %v4975, 1e-05
    %v4986 = vadd.f32 %v4976, 1e-05
    %v4987 = vadd.f32 %v4977, 1e-05
    %v4988 = vadd.f32 %v4978, 1e-05
    %v4989 = vadd.f32 %v4979, 1e-05
    %v4990 = vadd.f32 %v4980, 1e-05
    %v4991 = vadd.f32 %v4981, 1e-05
    %v4992 = vadd.f32 %v4982, 1e-05
    %v4993 = vadd.f32 %v4983, 1e-05
    %v4994 = vrsqrt.pop %v4984
    %v4995 = vrsqrt.pop %v4985
    %v4996 = vrsqrt.pop %v4986
    %v4997 = vrsqrt.pop %v4987
    %v4998 = vrsqrt.pop %v4988
    %v4999 = vrsqrt.pop %v4989
    %v5000 = vrsqrt.pop %v4990
    %v5001 = vrsqrt.pop %v4991
    %v5002 = vrsqrt.pop %v4992
    %v5003 = vrsqrt.pop %v4993
    %v5004 = vmul.f32 %v4924, %v4994
    %v5005 = vmul.f32 %v4925, %v4995
    %v5006 = vmul.f32 %v4926, %v4996
    %v5007 = vmul.f32 %v4927, %v4997
    %v5008 = vmul.f32 %v4928, %v4998
    %v5009 = vmul.f32 %v4929, %v4999
    %v5010 = vmul.f32 %v4930, %v5000
    %v5011 = vmul.f32 %v4931, %v5001
    %v5012 = vmul.f32 %v4932, %v5002
    %v5013 = vmul.f32 %v4933, %v5003
    %v5015 = vlaneseq
    %v5016 = vshrl.u32 %v5015, 7
    %v5017 = vsub.s32 0, %v5016
    %v5018 = vrot.slane %v4882, %v5017
    %v5020 = vmul.f32 %v5004, %v5018
    %v5021 = vmul.f32 %v5005, %v5018
    %v5022 = vmul.f32 %v5006, %v5018
    %v5023 = vmul.f32 %v5007, %v5018
    %v5024 = vmul.f32 %v5008, %v5018
    %v5025 = vmul.f32 %v5009, %v5018
    %v5026 = vmul.f32 %v5010, %v5018
    %v5027 = vmul.f32 %v5011, %v5018
    %v5028 = vmul.f32 %v5012, %v5018
    %v5029 = vmul.f32 %v5013, %v5018
    %v5031 = vlaneseq
    %v5032 = vshrl.u32 %v5031, 7
    %v5033 = vsub.s32 0, %v5032
    %v5034 = vrot.slane %v4883, %v5033
    %v5036 = vadd.f32 %v5020, %v5034
    %v5037 = vadd.f32 %v5021, %v5034
    %v5038 = vadd.f32 %v5022, %v5034
    %v5039 = vadd.f32 %v5023, %v5034
    %v5040 = vadd.f32 %v5024, %v5034
    %v5041 = vadd.f32 %v5025, %v5034
    %v5042 = vadd.f32 %v5026, %v5034
    %v5043 = vadd.f32 %v5027, %v5034
    %v5044 = vadd.f32 %v5028, %v5034
    %v5045 = vadd.f32 %v5029, %v5034
    %v5046 = vpack.c.bf16 %v5037, %v5036
    %v5047 = vpack.c.bf16 %v5039, %v5038
    %v5048 = vpack.c.bf16 %v5041, %v5040
    %v5049 = vpack.c.bf16 %v5043, %v5042
    %v5050 = vpack.c.bf16 %v5045, %v5044
    %v5051 = vld [vmem:[%s17] sm:$0xf]
    %v5052 = vld [vmem:[%s17 + $0x4] sm:$0xf]
    %v5053 = vld [vmem:[%s17 + $0x8] sm:$0xf]
    %v5054 = vld [vmem:[%s17 + $0xc] sm:$0xf]
    %v5055 = vld [vmem:[%s17 + $0x10] sm:$0xf]
    %v5056 = vld [vmem:[%s17 + $0x14] sm:$0xf]
    %v5057 = vld [vmem:[%s17 + $0x18] sm:$0xf]
    %v5058 = vld [vmem:[%s17 + $0x1c] sm:$0xf]
    %v5059 = vld [vmem:[%s18] sm:$0x1]
    %v5061 = vlaneseq
    %v5062 = vshrl.u32 %v5061, 7
    %v5063 = vsub.s32 0, %v5062
    %v5064 = vrot.slane %v5059, %v5063
    %v5074 = vunpack.c.l.b16 %v5051
    %v5075 = vunpack.c.l.b16 %v5052
    %v5076 = vunpack.c.l.b16 %v5053
    %v5077 = vunpack.c.l.b16 %v5054
    %v5078 = vunpack.c.l.b16 %v5055
    %v5079 = vunpack.c.l.b16 %v5056
    %v5080 = vunpack.c.l.b16 %v5057
    %v5081 = vunpack.c.l.b16 %v5058
    %v5082 = vpack.c.b16 %v5075, %v5074
    %v5083 = vpack.c.b16 %v5077, %v5076
    %v5084 = vpack.c.b16 %v5079, %v5078
    %v5085 = vpack.c.b16 %v5081, %v5080
    %v5091 = vsel %vm370, %v5046, 0
    %v5094 = vsel %vm370, %v5047, 0
    %v5097 = vsel %vm370, %v5048, 0
    %v5100 = vsel %vm370, %v5049, 0
    %v5103 = vsel %vm370, %v5050, 0
    %5105 = vmatprep.subr.bf16.mxu0 0
    %5106 = vmatpush1.bf16.msra.mxu0 %v5082
    %5107 = vmatprep.subr.bf16.mxu0 0
    %5108 = vmatpush1.bf16.msra.mxu0 %v5083
    %5109 = vmatprep.subr.bf16.mxu0 0
    %5110 = vmatpush1.bf16.msra.mxu0 %v5084
    %5111 = vmatprep.subr.bf16.mxu0 0
    %5112 = vmatpush1.bf16.msra.mxu0 %v5085
    %5113 = vmatprep.subr.bf16.mxu0 0
    %5114 = vmatpush1.bf16.msra.mxu0 0
    %5115 = vmatprep.subr.bf16.mxu0 0
    %5116 = vmatpush1.bf16.msra.mxu0 0
    %5117 = vmatprep.subr.bf16.mxu0 0
    %5118 = vmatpush1.bf16.msra.mxu0 0
    %5119 = vmatprep.subr.bf16.mxu0 0
    %5120 = vmatpush1.bf16.msra.mxu0 0
    %5121 = vmatprep.subr.bf16.mxu0 0
    %5122 = vmatpush1.bf16.msra.mxu0 0
    %5123 = vmatprep.subr.bf16.mxu0 0
    %5124 = vmatpush1.bf16.msra.mxu0 0
    %5125 = vmatprep.subr.bf16.mxu0 0
    %5126 = vmatpush1.bf16.msra.mxu0 0
    %5127 = vmatprep.subr.bf16.mxu0 0
    %5128 = vmatpush1.bf16.msra.mxu0 0
    %5129 = vmatprep.subr.bf16.mxu0 0
    %5130 = vmatpush1.bf16.msra.mxu0 0
    %5131 = vmatprep.subr.bf16.mxu0 0
    %5132 = vmatpush1.bf16.msra.mxu0 0
    %5133 = vmatprep.subr.bf16.mxu0 0
    %5134 = vmatpush1.bf16.msra.mxu0 0
    %5135 = vmatprep.subr.bf16.mxu0 0
    %5136 = vmatpush1.bf16.msra.mxu0 0
    %5137 = vmatprep.mubr.bf16.mxu0 0
    %5138 = vmatmul.mubr.bf16.gmra.mrb[0].mxu0 %v5091
    %v5139 = vpop.f32.mrb[0].mxu0
    %v5140 = vadd.f32 %v5064, %v5139
    %v5141 = vpop.f32.mrb[0].mxu0
    %v5142 = vpop.f32.mrb[0].mxu0
    %v5143 = vadd.f32 %v5064, %v5142
    %v5144 = vpop.f32.mrb[0].mxu0
    %5145 = vmatprep.mubr.bf16.mxu0 0
    %5146 = vmatmul.mubr.bf16.gmra.mrb[0].mxu0 %v5094
    %v5147 = vpop.f32.mrb[0].mxu0
    %v5148 = vadd.f32 %v5064, %v5147
    %v5149 = vpop.f32.mrb[0].mxu0
    %v5150 = vpop.f32.mrb[0].mxu0
    %v5151 = vadd.f32 %v5064, %v5150
    %v5152 = vpop.f32.mrb[0].mxu0
    %5153 = vmatprep.mubr.bf16.mxu0 0
    %5154 = vmatmul.mubr.bf16.gmra.mrb[0].mxu0 %v5097
    %v5155 = vpop.f32.mrb[0].mxu0
    %v5156 = vadd.f32 %v5064, %v5155
    %v5157 = vpop.f32.mrb[0].mxu0
    %v5158 = vpop.f32.mrb[0].mxu0
    %v5159 = vadd.f32 %v5064, %v5158
    %v5160 = vpop.f32.mrb[0].mxu0
    %5161 = vmatprep.mubr.bf16.mxu0 0
    %5162 = vmatmul.mubr.bf16.gmra.mrb[0].mxu0 %v5100
    %v5163 = vpop.f32.mrb[0].mxu0
    %v5164 = vadd.f32 %v5064, %v5163
    %v5165 = vpop.f32.mrb[0].mxu0
    %v5166 = vpop.f32.mrb[0].mxu0
    %v5167 = vadd.f32 %v5064, %v5166
    %v5168 = vpop.f32.mrb[0].mxu0
    %5169 = vmatprep.mubr.bf16.mxu0 0
    %5170 = vmatmul.mubr.bf16.gmra.mrb[0].mxu0 %v5103
    %v5171 = vpop.f32.mrb[0].mxu0
    %v5172 = vadd.f32 %v5064, %v5171
    %v5173 = vpop.f32.mrb[0].mxu0
    %v5174 = vpop.f32.mrb[0].mxu0
    %v5175 = vadd.f32 %v5064, %v5174
    %v5176 = vpop.f32.mrb[0].mxu0
    %5177 = vdwg.mxu0
    %v5178 = vmax.f32 %v5140, 0.0
    %v5179 = vmax.f32 %v5143, 0.0
    %v5180 = vmax.f32 %v5148, 0.0
    %v5181 = vmax.f32 %v5151, 0.0
    %v5182 = vmax.f32 %v5156, 0.0
    %v5183 = vmax.f32 %v5159, 0.0
    %v5184 = vmax.f32 %v5164, 0.0
    %v5185 = vmax.f32 %v5167, 0.0
    %v5186 = vmax.f32 %v5172, 0.0
    %v5187 = vmax.f32 %v5175, 0.0
    %v5188 = vpack.c.bf16 %v5179, %v5178
    %v5189 = vpack.c.bf16 %v5181, %v5180
    %v5190 = vpack.c.bf16 %v5183, %v5182
    %v5191 = vpack.c.bf16 %v5185, %v5184
    %v5192 = vpack.c.bf16 %v5187, %v5186
    %v5193 = vld [vmem:[%s19] sm:$0xf]
    %v5194 = vld [vmem:[%s19 + $0x4] sm:$0xf]
    %v5195 = vld [vmem:[%s19 + $0x8] sm:$0xf]
    %v5196 = vld [vmem:[%s19 + $0xc] sm:$0xf]
    %v5197 = vld [vmem:[%s19 + $0x10] sm:$0xf]
    %v5198 = vld [vmem:[%s19 + $0x14] sm:$0xf]
    %v5199 = vld [vmem:[%s19 + $0x18] sm:$0xf]
    %v5200 = vld [vmem:[%s19 + $0x1c] sm:$0xf]
    %v5201 = vld [vmem:[%s19 + $0x20] sm:$0xf]
    %v5202 = vld [vmem:[%s19 + $0x24] sm:$0xf]
    %v5203 = vld [vmem:[%s19 + $0x28] sm:$0xf]
    %v5204 = vld [vmem:[%s19 + $0x2c] sm:$0xf]
    %v5205 = vld [vmem:[%s19 + $0x30] sm:$0xf]
    %v5206 = vld [vmem:[%s19 + $0x34] sm:$0xf]
    %v5207 = vld [vmem:[%s19 + $0x38] sm:$0xf]
    %v5208 = vld [vmem:[%s19 + $0x3c] sm:$0xf]
    %v5209 = vld [vmem:[%s20] sm:$0x1]
    %v5211 = vlaneseq
    %v5212 = vshrl.u32 %v5211, 7
    %v5213 = vsub.s32 0, %v5212
    %v5214 = vrot.slane %v5209, %v5213
    %v5232 = vunpack.c.l.b16 %v5193
    %v5233 = vunpack.c.l.b16 %v5194
    %v5234 = vunpack.c.l.b16 %v5195
    %v5235 = vunpack.c.l.b16 %v5196
    %v5236 = vunpack.c.l.b16 %v5197
    %v5237 = vunpack.c.l.b16 %v5198
    %v5238 = vunpack.c.l.b16 %v5199
    %v5239 = vunpack.c.l.b16 %v5200
    %v5240 = vunpack.c.l.b16 %v5201
    %v5241 = vunpack.c.l.b16 %v5202
    %v5242 = vunpack.c.l.b16 %v5203
    %v5243 = vunpack.c.l.b16 %v5204
    %v5244 = vunpack.c.l.b16 %v5205
    %v5245 = vunpack.c.l.b16 %v5206
    %v5246 = vunpack.c.l.b16 %v5207
    %v5247 = vunpack.c.l.b16 %v5208
    %v5248 = vpack.c.b16 %v5233, %v5232
    %v5249 = vpack.c.b16 %v5235, %v5234
    %v5250 = vpack.c.b16 %v5237, %v5236
    %v5251 = vpack.c.b16 %v5239, %v5238
    %v5252 = vpack.c.b16 %v5241, %v5240
    %v5253 = vpack.c.b16 %v5243, %v5242
    %v5254 = vpack.c.b16 %v5245, %v5244
    %v5255 = vpack.c.b16 %v5247, %v5246
    %5264 = vmatprep.subr.bf16.mxu0 0
    %5265 = vmatpush1.bf16.msra.mxu0 %v5248
    %5266 = vmatprep.subr.bf16.mxu0 0
    %5267 = vmatpush1.bf16.msra.mxu0 %v5249
    %5268 = vmatprep.subr.bf16.mxu0 0
    %5269 = vmatpush1.bf16.msra.mxu0 %v5250
    %5270 = vmatprep.subr.bf16.mxu0 0
    %5271 = vmatpush1.bf16.msra.mxu0 %v5251
    %5272 = vmatprep.subr.bf16.mxu0 0
    %5273 = vmatpush1.bf16.msra.mxu0 %v5252
    %5274 = vmatprep.subr.bf16.mxu0 0
    %5275 = vmatpush1.bf16.msra.mxu0 %v5253
    %5276 = vmatprep.subr.bf16.mxu0 0
    %5277 = vmatpush1.bf16.msra.mxu0 %v5254
    %5278 = vmatprep.subr.bf16.mxu0 0
    %5279 = vmatpush1.bf16.msra.mxu0 %v5255
    %5280 = vmatprep.subr.bf16.mxu0 0
    %5281 = vmatpush1.bf16.msra.mxu0 0
    %5282 = vmatprep.subr.bf16.mxu0 0
    %5283 = vmatpush1.bf16.msra.mxu0 0
    %5284 = vmatprep.subr.bf16.mxu0 0
    %5285 = vmatpush1.bf16.msra.mxu0 0
    %5286 = vmatprep.subr.bf16.mxu0 0
    %5287 = vmatpush1.bf16.msra.mxu0 0
    %5288 = vmatprep.subr.bf16.mxu0 0
    %5289 = vmatpush1.bf16.msra.mxu0 0
    %5290 = vmatprep.subr.bf16.mxu0 0
    %5291 = vmatpush1.bf16.msra.mxu0 0
    %5292 = vmatprep.subr.bf16.mxu0 0
    %5293 = vmatpush1.bf16.msra.mxu0 0
    %5294 = vmatprep.subr.bf16.mxu0 0
    %5295 = vmatpush1.bf16.msra.mxu0 0
    %5296 = vmatprep.mubr.bf16.mxu0 0
    %5297 = vmatmul.mubr.bf16.gmra.mrb[0].mxu0 %v5188
    %v5298 = vpop.f32.mrb[0].mxu0
    %v5299 = vadd.f32 %v5214, %v5298
    %v5300 = vpop.f32.mrb[0].mxu0
    %v5301 = vpop.f32.mrb[0].mxu0
    %v5302 = vadd.f32 %v5214, %v5301
    %v5303 = vpop.f32.mrb[0].mxu0
    %5304 = vmatprep.mubr.bf16.mxu0 0
    %5305 = vmatmul.mubr.bf16.gmra.mrb[0].mxu0 %v5189
    %v5306 = vpop.f32.mrb[0].mxu0
    %v5307 = vadd.f32 %v5214, %v5306
    %v5308 = vpop.f32.mrb[0].mxu0
    %v5309 = vpop.f32.mrb[0].mxu0
    %v5310 = vadd.f32 %v5214, %v5309
    %v5311 = vpop.f32.mrb[0].mxu0
    %5312 = vmatprep.mubr.bf16.mxu0 0
    %5313 = vmatmul.mubr.bf16.gmra.mrb[0].mxu0 %v5190
    %v5314 = vpop.f32.mrb[0].mxu0
    %v5315 = vadd.f32 %v5214, %v5314
    %v5316 = vpop.f32.mrb[0].mxu0
    %v5317 = vpop.f32.mrb[0].mxu0
    %v5318 = vadd.f32 %v5214, %v5317
    %v5319 = vpop.f32.mrb[0].mxu0
    %5320 = vmatprep.mubr.bf16.mxu0 0
    %5321 = vmatmul.mubr.bf16.gmra.mrb[0].mxu0 %v5191
    %v5322 = vpop.f32.mrb[0].mxu0
    %v5323 = vadd.f32 %v5214, %v5322
    %v5324 = vpop.f32.mrb[0].mxu0
    %v5325 = vpop.f32.mrb[0].mxu0
    %v5326 = vadd.f32 %v5214, %v5325
    %v5327 = vpop.f32.mrb[0].mxu0
    %5328 = vmatprep.mubr.bf16.mxu0 0
    %5329 = vmatmul.mubr.bf16.gmra.mrb[0].mxu0 %v5192
    %v5330 = vpop.f32.mrb[0].mxu0
    %v5331 = vadd.f32 %v5214, %v5330
    %v5332 = vpop.f32.mrb[0].mxu0
    %v5333 = vpop.f32.mrb[0].mxu0
    %v5334 = vadd.f32 %v5214, %v5333
    %v5335 = vpop.f32.mrb[0].mxu0
    %5336 = vdwg.mxu0
    %v5337 = vadd.f32 %v5036, %v5299
    %v5338 = vadd.f32 %v5037, %v5302
    %v5339 = vadd.f32 %v5038, %v5307
    %v5340 = vadd.f32 %v5039, %v5310
    %v5341 = vadd.f32 %v5040, %v5315
    %v5342 = vadd.f32 %v5041, %v5318
    %v5343 = vadd.f32 %v5042, %v5323
    %v5344 = vadd.f32 %v5043, %v5326
    %v5345 = vadd.f32 %v5044, %v5331
    %v5346 = vadd.f32 %v5045, %v5334
    %v5347 = vld [vmem:[%s21] sm:$0x1]
    %v5348 = vld [vmem:[%s22] sm:$0x1]
    %v5349 = vsel %vm370, %v5337, 0.0
    %5350 = vadd.xlane.f32.xlu0 %v5349
    %v5351 = vpop.xlane.xlu0 %5350
    %v5352 = vsel %vm370, %v5338, 0.0
    %5353 = vadd.xlane.f32.xlu0 %v5352
    %v5354 = vpop.xlane.xlu0 %5353
    %v5355 = vsel %vm370, %v5339, 0.0
    %5356 = vadd.xlane.f32.xlu0 %v5355
    %v5357 = vpop.xlane.xlu0 %5356
    %v5358 = vsel %vm370, %v5340, 0.0
    %5359 = vadd.xlane.f32.xlu0 %v5358
    %v5360 = vpop.xlane.xlu0 %5359
    %v5361 = vsel %vm370, %v5341, 0.0
    %5362 = vadd.xlane.f32.xlu0 %v5361
    %v5363 = vpop.xlane.xlu0 %5362
    %v5364 = vsel %vm370, %v5342, 0.0
    %5365 = vadd.xlane.f32.xlu0 %v5364
    %v5366 = vpop.xlane.xlu0 %5365
    %v5367 = vsel %vm370, %v5343, 0.0
    %5368 = vadd.xlane.f32.xlu0 %v5367
    %v5369 = vpop.xlane.xlu0 %5368
    %v5370 = vsel %vm370, %v5344, 0.0
    %5371 = vadd.xlane.f32.xlu0 %v5370
    %v5372 = vpop.xlane.xlu0 %5371
    %v5373 = vsel %vm370, %v5345, 0.0
    %5374 = vadd.xlane.f32.xlu0 %v5373
    %v5375 = vpop.xlane.xlu0 %5374
    %v5376 = vsel %vm370, %v5346, 0.0
    %5377 = vadd.xlane.f32.xlu0 %v5376
    %v5378 = vpop.xlane.xlu0 %5377
    %v5379 = vmul.f32 %v5351, %v543
    %v5380 = vmul.f32 %v5354, %v543
    %v5381 = vmul.f32 %v5357, %v543
    %v5382 = vmul.f32 %v5360, %v543
    %v5383 = vmul.f32 %v5363, %v543
    %v5384 = vmul.f32 %v5366, %v543
    %v5385 = vmul.f32 %v5369, %v543
    %v5386 = vmul.f32 %v5372, %v543
    %v5387 = vmul.f32 %v5375, %v543
    %v5388 = vmul.f32 %v5378, %v543
    %v5389 = vsub.f32 %v5337, %v5379
    %v5390 = vsub.f32 %v5338, %v5380
    %v5391 = vsub.f32 %v5339, %v5381
    %v5392 = vsub.f32 %v5340, %v5382
    %v5393 = vsub.f32 %v5341, %v5383
    %v5394 = vsub.f32 %v5342, %v5384
    %v5395 = vsub.f32 %v5343, %v5385
    %v5396 = vsub.f32 %v5344, %v5386
    %v5397 = vsub.f32 %v5345, %v5387
    %v5398 = vsub.f32 %v5346, %v5388
    %v5399 = vmul.f32 %v5389, %v5389
    %v5400 = vmul.f32 %v5390, %v5390
    %v5401 = vmul.f32 %v5391, %v5391
    %v5402 = vmul.f32 %v5392, %v5392
    %v5403 = vmul.f32 %v5393, %v5393
    %v5404 = vmul.f32 %v5394, %v5394
    %v5405 = vmul.f32 %v5395, %v5395
    %v5406 = vmul.f32 %v5396, %v5396
    %v5407 = vmul.f32 %v5397, %v5397
    %v5408 = vmul.f32 %v5398, %v5398
    %v5409 = vsel %vm370, %v5399, 0.0
    %5410 = vadd.xlane.f32.xlu0 %v5409
    %v5411 = vpop.xlane.xlu0 %5410
    %v5412 = vsel %vm370, %v5400, 0.0
    %5413 = vadd.xlane.f32.xlu0 %v5412
    %v5414 = vpop.xlane.xlu0 %5413
    %v5415 = vsel %vm370, %v5401, 0.0
    %5416 = vadd.xlane.f32.xlu0 %v5415
    %v5417 = vpop.xlane.xlu0 %5416
    %v5418 = vsel %vm370, %v5402, 0.0
    %5419 = vadd.xlane.f32.xlu0 %v5418
    %v5420 = vpop.xlane.xlu0 %5419
    %v5421 = vsel %vm370, %v5403, 0.0
    %5422 = vadd.xlane.f32.xlu0 %v5421
    %v5423 = vpop.xlane.xlu0 %5422
    %v5424 = vsel %vm370, %v5404, 0.0
    %5425 = vadd.xlane.f32.xlu0 %v5424
    %v5426 = vpop.xlane.xlu0 %5425
    %v5427 = vsel %vm370, %v5405, 0.0
    %5428 = vadd.xlane.f32.xlu0 %v5427
    %v5429 = vpop.xlane.xlu0 %5428
    %v5430 = vsel %vm370, %v5406, 0.0
    %5431 = vadd.xlane.f32.xlu0 %v5430
    %v5432 = vpop.xlane.xlu0 %5431
    %v5433 = vsel %vm370, %v5407, 0.0
    %5434 = vadd.xlane.f32.xlu0 %v5433
    %v5435 = vpop.xlane.xlu0 %5434
    %v5436 = vsel %vm370, %v5408, 0.0
    %5437 = vadd.xlane.f32.xlu0 %v5436
    %v5438 = vpop.xlane.xlu0 %5437
    %v5439 = vmul.f32 %v5411, %v543
    %v5440 = vmul.f32 %v5414, %v543
    %v5441 = vmul.f32 %v5417, %v543
    %v5442 = vmul.f32 %v5420, %v543
    %v5443 = vmul.f32 %v5423, %v543
    %v5444 = vmul.f32 %v5426, %v543
    %v5445 = vmul.f32 %v5429, %v543
    %v5446 = vmul.f32 %v5432, %v543
    %v5447 = vmul.f32 %v5435, %v543
    %v5448 = vmul.f32 %v5438, %v543
    %v5449 = vadd.f32 %v5439, 1e-05
    %v5450 = vadd.f32 %v5440, 1e-05
    %v5451 = vadd.f32 %v5441, 1e-05
    %v5452 = vadd.f32 %v5442, 1e-05
    %v5453 = vadd.f32 %v5443, 1e-05
    %v5454 = vadd.f32 %v5444, 1e-05
    %v5455 = vadd.f32 %v5445, 1e-05
    %v5456 = vadd.f32 %v5446, 1e-05
    %v5457 = vadd.f32 %v5447, 1e-05
    %v5458 = vadd.f32 %v5448, 1e-05
    %v5459 = vrsqrt.pop %v5449
    %v5460 = vrsqrt.pop %v5450
    %v5461 = vrsqrt.pop %v5451
    %v5462 = vrsqrt.pop %v5452
    %v5463 = vrsqrt.pop %v5453
    %v5464 = vrsqrt.pop %v5454
    %v5465 = vrsqrt.pop %v5455
    %v5466 = vrsqrt.pop %v5456
    %v5467 = vrsqrt.pop %v5457
    %v5468 = vrsqrt.pop %v5458
    %v5469 = vmul.f32 %v5389, %v5459
    %v5470 = vmul.f32 %v5390, %v5460
    %v5471 = vmul.f32 %v5391, %v5461
    %v5472 = vmul.f32 %v5392, %v5462
    %v5473 = vmul.f32 %v5393, %v5463
    %v5474 = vmul.f32 %v5394, %v5464
    %v5475 = vmul.f32 %v5395, %v5465
    %v5476 = vmul.f32 %v5396, %v5466
    %v5477 = vmul.f32 %v5397, %v5467
    %v5478 = vmul.f32 %v5398, %v5468
    %v5480 = vlaneseq
    %v5481 = vshrl.u32 %v5480, 7
    %v5482 = vsub.s32 0, %v5481
    %v5483 = vrot.slane %v5347, %v5482
    %v5485 = vmul.f32 %v5469, %v5483
    %v5486 = vmul.f32 %v5470, %v5483
    %v5487 = vmul.f32 %v5471, %v5483
    %v5488 = vmul.f32 %v5472, %v5483
    %v5489 = vmul.f32 %v5473, %v5483
    %v5490 = vmul.f32 %v5474, %v5483
    %v5491 = vmul.f32 %v5475, %v5483
    %v5492 = vmul.f32 %v5476, %v5483
    %v5493 = vmul.f32 %v5477, %v5483
    %v5494 = vmul.f32 %v5478, %v5483
    %v5496 = vlaneseq
    %v5497 = vshrl.u32 %v5496, 7
    %v5498 = vsub.s32 0, %v5497
    %v5499 = vrot.slane %v5348, %v5498
    %v5501 = vadd.f32 %v5485, %v5499
    %v5502 = vadd.f32 %v5486, %v5499
    %v5503 = vadd.f32 %v5487, %v5499
    %v5504 = vadd.f32 %v5488, %v5499
    %v5505 = vadd.f32 %v5489, %v5499
    %v5506 = vadd.f32 %v5490, %v5499
    %v5507 = vadd.f32 %v5491, %v5499
    %v5508 = vadd.f32 %v5492, %v5499
    %v5509 = vadd.f32 %v5493, %v5499
    %v5510 = vadd.f32 %v5494, %v5499
    %v5511 = vld [vmem:[%s23] sm:$0xff]
    %v5512 = vld [vmem:[%s23 + $0x8] sm:$0xff]
    %v5513 = vld [vmem:[%s23 + $0x10] sm:$0xff]
    %v5514 = vld [vmem:[%s23 + $0x18] sm:$0xff]
    %v5515 = vld [vmem:[%s23 + $0x20] sm:$0xff]
    %v5516 = vld [vmem:[%s24] sm:$0x1]
    %v5517 = vmul.f32 %v5501, %v5511
    %v5518 = vmul.f32 %v5502, %v5512
    %v5519 = vmul.f32 %v5503, %v5513
    %v5520 = vmul.f32 %v5504, %v5514
    %v5521 = vmul.f32 %v5505, %v5515
    %v5522 = vsel %vm370, %v5517, 0.0
    %5523 = vadd.xlane.f32.xlu0 %v5522
    %v5524 = vpop.xlane.xlu0 %5523
    %v5525 = vsel %vm370, %v5518, 0.0
    %5526 = vadd.xlane.f32.xlu0 %v5525
    %v5527 = vpop.xlane.xlu0 %5526
    %v5528 = vsel %vm370, %v5519, 0.0
    %5529 = vadd.xlane.f32.xlu0 %v5528
    %v5530 = vpop.xlane.xlu0 %5529
    %v5531 = vsel %vm370, %v5520, 0.0
    %5532 = vadd.xlane.f32.xlu0 %v5531
    %v5533 = vpop.xlane.xlu0 %5532
    %v5534 = vsel %vm370, %v5521, 0.0
    %5535 = vadd.xlane.f32.xlu0 %v5534
    %v5536 = vpop.xlane.xlu0 %5535
    %v5538 = vlaneseq
    %v5539 = vshrl.u32 %v5538, 7
    %v5540 = vsub.s32 0, %v5539
    %v5541 = vrot.slane %v5516, %v5540
    %5543 = vbcast.lane.b32.xlu0 %v5541, 256
    %v5544 = vpop.permute.xlu0 %5543
    %s5546 = sor.u32 256, 8
    %5547 = vbcast.lane.b32.xlu0 %v5541, %s5546
    %v5548 = vpop.permute.xlu0 %5547
    %s5550 = sor.u32 256, 16
    %5551 = vbcast.lane.b32.xlu0 %v5541, %s5550
    %v5552 = vpop.permute.xlu0 %5551
    %s5554 = sor.u32 256, 24
    %5555 = vbcast.lane.b32.xlu0 %v5541, %s5554
    %v5556 = vpop.permute.xlu0 %5555
    %s5558 = sor.u32 256, 32
    %5559 = vbcast.lane.b32.xlu0 %v5541, %s5558
    %v5560 = vpop.permute.xlu0 %5559
    %v5566 = vadd.f32 %v5524, %v5544
    %v5567 = vadd.f32 %v5527, %v5548
    %v5568 = vadd.f32 %v5530, %v5552
    %v5569 = vadd.f32 %v5533, %v5556
    %v5570 = vadd.f32 %v5536, %v5560
    %5576 = vset.pattern.permute.xlu0 0
    %5577 = vperm.xlu0 %5576, %v5566
    %v5578 = vpop.permute.xlu0 %5577
    %5579 = vset.pattern.permute.xlu0 0
    %5580 = vperm.xlu0 %5579, %v5567
    %v5581 = vpop.permute.xlu0 %5580
    %5582 = vset.pattern.permute.xlu0 0
    %5583 = vperm.xlu0 %5582, %v5568
    %v5584 = vpop.permute.xlu0 %5583
    %5585 = vset.pattern.permute.xlu0 0
    %5586 = vperm.xlu0 %5585, %v5569
    %v5587 = vpop.permute.xlu0 %5586
    %5588 = vset.pattern.permute.xlu0 0
    %5589 = vperm.xlu0 %5588, %v5570
    %v5590 = vpop.permute.xlu0 %5589
    %v5591 = vlaneseq
    %v5592 = vand.u32 %v5591, 127
    %v5593 = vlaneseq
    %v5594 = vshrl.u32 %v5593, 7
    %v5595 = vsub.s32 %v5592, %v5594
    %v5596 = vrot.slane %v5578, %v5595
    %v5597 = vadd.s32 %v5592, 4294967288
    %v5598 = vlaneseq
    %v5599 = vshrl.u32 %v5598, 7
    %v5600 = vsub.s32 %v5597, %v5599
    %v5601 = vrot.slane %v5581, %v5600
    %vm5602 = vcmask 130112
    %v5603 = vsel %vm5602, %v5601, %v5596
    %v5604 = vadd.s32 %v5592, 4294967280
    %v5605 = vlaneseq
    %v5606 = vshrl.u32 %v5605, 7
    %v5607 = vsub.s32 %v5604, %v5606
    %v5608 = vrot.slane %v5584, %v5607
    %vm5609 = vcmask 195712
    %v5610 = vsel %vm5609, %v5608, %v5603
    %v5611 = vadd.s32 %v5592, 4294967272
    %v5612 = vlaneseq
    %v5613 = vshrl.u32 %v5612, 7
    %v5614 = vsub.s32 %v5611, %v5613
    %v5615 = vrot.slane %v5587, %v5614
    %vm5616 = vcmask 261312
    %v5617 = vsel %vm5616, %v5615, %v5610
    %v5618 = vadd.s32 %v5592, 4294967264
    %v5619 = vlaneseq
    %v5620 = vshrl.u32 %v5619, 7
    %v5621 = vsub.s32 %v5618, %v5620
    %v5622 = vrot.slane %v5590, %v5621
    %vm5623 = vcmask 326912
    %v5624 = vsel %vm5623, %v5622, %v5617
    %vm5626 = vcmask 319488
    %5627 = vst.msk [vmem:[#allocation2] sm:$0x1] %vm5626, %v5624
    %v5628 = vmul.f32 %v5506, %v5511
    %v5629 = vmul.f32 %v5507, %v5512
    %v5630 = vmul.f32 %v5508, %v5513
    %v5631 = vmul.f32 %v5509, %v5514
    %v5632 = vmul.f32 %v5510, %v5515
    %v5633 = vsel %vm370, %v5628, 0.0
    %5634 = vadd.xlane.f32.xlu0 %v5633
    %v5635 = vpop.xlane.xlu0 %5634
    %v5636 = vsel %vm370, %v5629, 0.0
    %5637 = vadd.xlane.f32.xlu0 %v5636
    %v5638 = vpop.xlane.xlu0 %5637
    %v5639 = vsel %vm370, %v5630, 0.0
    %5640 = vadd.xlane.f32.xlu0 %v5639
    %v5641 = vpop.xlane.xlu0 %5640
    %v5642 = vsel %vm370, %v5631, 0.0
    %5643 = vadd.xlane.f32.xlu0 %v5642
    %v5644 = vpop.xlane.xlu0 %5643
    %v5645 = vsel %vm370, %v5632, 0.0
    %5646 = vadd.xlane.f32.xlu0 %v5645
    %v5647 = vpop.xlane.xlu0 %5646
    %v5648 = vadd.f32 %v5635, %v5544
    %v5649 = vadd.f32 %v5638, %v5548
    %v5650 = vadd.f32 %v5641, %v5552
    %v5651 = vadd.f32 %v5644, %v5556
    %v5652 = vadd.f32 %v5647, %v5560
    %5658 = vset.pattern.permute.xlu0 0
    %5659 = vperm.xlu0 %5658, %v5648
    %v5660 = vpop.permute.xlu0 %5659
    %5661 = vset.pattern.permute.xlu0 0
    %5662 = vperm.xlu0 %5661, %v5649
    %v5663 = vpop.permute.xlu0 %5662
    %5664 = vset.pattern.permute.xlu0 0
    %5665 = vperm.xlu0 %5664, %v5650
    %v5666 = vpop.permute.xlu0 %5665
    %5667 = vset.pattern.permute.xlu0 0
    %5668 = vperm.xlu0 %5667, %v5651
    %v5669 = vpop.permute.xlu0 %5668
    %5670 = vset.pattern.permute.xlu0 0
    %5671 = vperm.xlu0 %5670, %v5652
    %v5672 = vpop.permute.xlu0 %5671
    %v5673 = vlaneseq
    %v5674 = vshrl.u32 %v5673, 7
    %v5675 = vsub.s32 %v5592, %v5674
    %v5676 = vrot.slane %v5660, %v5675
    %v5677 = vlaneseq
    %v5678 = vshrl.u32 %v5677, 7
    %v5679 = vsub.s32 %v5597, %v5678
    %v5680 = vrot.slane %v5663, %v5679
    %v5681 = vsel %vm5602, %v5680, %v5676
    %v5682 = vlaneseq
    %v5683 = vshrl.u32 %v5682, 7
    %v5684 = vsub.s32 %v5604, %v5683
    %v5685 = vrot.slane %v5666, %v5684
    %v5686 = vsel %vm5609, %v5685, %v5681
    %v5687 = vlaneseq
    %v5688 = vshrl.u32 %v5687, 7
    %v5689 = vsub.s32 %v5611, %v5688
    %v5690 = vrot.slane %v5669, %v5689
    %v5691 = vsel %vm5616, %v5690, %v5686
    %v5692 = vlaneseq
    %v5693 = vshrl.u32 %v5692, 7
    %v5694 = vsub.s32 %v5618, %v5693
    %v5695 = vrot.slane %v5672, %v5694
    %v5696 = vsel %vm5623, %v5695, %v5691
    %5698 = vst.msk [vmem:[#allocation2 + $0x1] sm:$0x1] %vm5626, %v5696
    // Predicated region
    $region102: #{backbone_forward.1} parent=1 // pred_check
      _
    $region103: #{backbone_forward.1} parent=1 // pred_check_branch
      %5700 = sbr.rel (0) target = $region105
    $region104: #{backbone_forward.1} parent=1 // pred_region
      %s5702 = ssub.s32 32, 32
      %5703 = vsyncadd [#allocation3], %s5702
      %s5705 = sshll.u32 [#allocation2], 4
      %s5706 = int_to_ptr.vmem [resolvable:$true] %s5705
      %5708 = dma.vmem_to_hbm [thread:$0]  %s5706, 32, %s25, [#allocation3]
    $region105: #{backbone_forward.1} parent=1 // pred_fallthru
      _
    // Predicated region
    $region106: #{backbone_forward.1} parent=1 // pred_check
      _
    $region107: #{backbone_forward.1} parent=1 // pred_check_branch
      %5710 = sbr.rel (0) target = $region109
    $region108: #{backbone_forward.1} parent=1 // pred_region
      %5711 = dma.done [#allocation3], 32
    $region109: #{backbone_forward.1} parent=1 // pred_fallthru
      _
    %5712 = vsyncpa [#allocation3], 1

</llo_original>
